<compile_context>
chip_gen: v6e
topology: v6e:2x2x1
jax: 0.10.0
libtpu: 0.0.40
codegen_flags: <defaults>
</compile_context>

<pallas_src>
import math

import jax
import jax.numpy as jnp
from jax.experimental import pallas as pl
from jax.experimental.pallas import tpu as pltpu


def _round_up(x, m):
    return ((x + m - 1) // m) * m


def _pad2(a, rows, cols):
    return jnp.pad(a, ((0, rows - a.shape[0]), (0, cols - a.shape[1])))


# ----------------------------------------------------------------------------------
# Kernel
# ----------------------------------------------------------------------------------
def _decoder_kernel(emb_ref, h_ref, enc_ref,
                    wih_t_ref, whh_t_ref, bih_ref, bhh_ref,
                    wch_t_ref, wcc_t_ref, bc_ref,
                    wout_t_ref, wscale_ref, bout_ref,
                    probs_ref, hid_ref,
                    cc_ref, logits_ref, m_ref, l_ref):
    Hp = h_ref.shape[1]
    TN = wout_t_ref.shape[1]
    NJ = logits_ref.shape[0]          # static number of vocab tiles
    j = pl.program_id(0)

    # ---- Stage 1 (first vocab tile only): GRU cell + dot attention + concat layer ----
    # Runs fully in f32 so the recurrent hidden state does not accumulate bf16 error.
    @pl.when(j == 0)
    def _stage1():
        x = emb_ref[...]                               # (Bp, Hp) f32 (dropout = eval identity)
        h = h_ref[...]                                 # (Bp, Hp) f32

        # GRU gates, PyTorch order [r, z, n].
        gi = jnp.dot(x, wih_t_ref[...], preferred_element_type=jnp.float32) + bih_ref[...]
        gh = jnp.dot(h, whh_t_ref[...], preferred_element_type=jnp.float32) + bhh_ref[...]
        r = jax.nn.sigmoid(gi[:, 0:Hp] + gh[:, 0:Hp])
        z = jax.nn.sigmoid(gi[:, Hp:2 * Hp] + gh[:, Hp:2 * Hp])
        n = jnp.tanh(gi[:, 2 * Hp:3 * Hp] + r * gh[:, 2 * Hp:3 * Hp])
        h_new = (1.0 - z) * n + z * h                                        # (Bp, Hp)

        # Dot attention (exact softmax over L: strict parity with PyTorch).
        enc = enc_ref[...]                                                   # (Bp, L, Hp)
        energies = jnp.sum(enc * h_new[:, None, :], axis=-1)                 # (Bp, L)
        e_max = jnp.max(energies, axis=-1, keepdims=True)
        e = jnp.exp(energies - e_max)
        attn = e / jnp.sum(e, axis=-1, keepdims=True)
        context = jnp.sum(attn[:, :, None] * enc, axis=1)                    # (Bp, Hp)

        # Concat linear split in two matmuls (avoids in-kernel concatenate).
        concat_out = jnp.tanh(
            jnp.dot(h_new, wch_t_ref[...], preferred_element_type=jnp.float32)
            + jnp.dot(context, wcc_t_ref[...], preferred_element_type=jnp.float32)
            + bc_ref[...])                                                   # (Bp, Hp)

        hid_ref[...] = h_new
        cc_ref[...] = concat_out

    # ---- Stage 2 (every vocab tile): streamed output-projection tile + online stats ----
    w = wout_t_ref[...]
    if w.dtype != jnp.bfloat16:                   # int8 path: dequant (exact in bf16)
        w = w.astype(jnp.float32)
    w = w.astype(jnp.bfloat16)
    logits = jnp.dot(cc_ref[...].astype(jnp.bfloat16), w,
                     preferred_element_type=jnp.float32)                      # (Bp, TN)
    logits = logits * wscale_ref[...] + bout_ref[...]                         # per-column scale
    logits_ref[j] = logits                        # VMEM-resident tile buffer

    t_max = jnp.max(logits, axis=-1, keepdims=True)                           # (Bp, 1)

    @pl.when(j == 0)
    def _init_stats():
        m_ref[...] = t_max
        l_ref[...] = jnp.sum(jnp.exp(logits - t_max), axis=-1, keepdims=True)

    @pl.when(j > 0)
    def _update_stats():
        m_prev = m_ref[...]
        m_new = jnp.maximum(m_prev, t_max)
        l_ref[...] = (l_ref[...] * jnp.exp(m_prev - m_new)
                      + jnp.sum(jnp.exp(logits - m_new), axis=-1, keepdims=True))
        m_ref[...] = m_new

    # ---- Finalize (last vocab tile): normalize the resident logits in VMEM ----
    @pl.when(j == NJ - 1)
    def _finalize():
        m = m_ref[...]
        inv_l = 1.0 / l_ref[...]
        for jj in range(NJ):                       # NJ is static -> unrolled static slices
            tile = logits_ref[jj]                                             # (Bp, TN)
            probs_ref[:, jj * TN:(jj + 1) * TN] = (
                jnp.exp(tile - m) * inv_l).astype(probs_ref.dtype)


# ----------------------------------------------------------------------------------
# One-time preparation (hoisted out of the decode loop)
# ----------------------------------------------------------------------------------
def prepare_decoder_params(params, *, wout_dtype="int8", lane=128, tile_n=2048):
    """Transpose / pad / cast / quantize weights once.

    tile_n >= 2048 recommended (sweep 2048-8192; go higher on v7x) so the streamed
    output-projection tiles amortize per-grid-step overhead.
    wout_dtype: "int8" (per-column scales, halves the dominant HBM stream) or "bfloat16".
    """
    assert tile_n % 128 == 0
    H = params["w_hh"].shape[1]
    V = params["w_out"].shape[0]
    Hp = _round_up(H, lane)
    Vp = _round_up(V, tile_n)

    def gate_w(w):   # (3H, H) torch layout -> (Hp, 3Hp) f32, transposed + per-gate lane padding
        blocks = [_pad2(w[g * H:(g + 1) * H, :].T.astype(jnp.float32), Hp, Hp)
                  for g in range(3)]
        return jnp.concatenate(blocks, axis=1)

    def gate_b(b):   # (3H,) -> (1, 3Hp) f32 with per-gate zero padding
        blocks = [jnp.pad(b[g * H:(g + 1) * H].astype(jnp.float32), (0, Hp - H))
                  for g in range(3)]
        return jnp.concatenate(blocks)[None, :]

    w_concat = params["w_concat"].astype(jnp.float32)                         # (H, 2H)

    # Output projection: stored transposed (H, V); int8 per-column quantization.
    wt = params["w_out"].T.astype(jnp.float32)                                # (H, V)
    if wout_dtype == "int8":
        absmax = jnp.max(jnp.abs(wt), axis=0)                                 # (V,)
        scale = jnp.where(absmax > 0, absmax / 127.0, 1.0)
        q = jnp.clip(jnp.round(wt / scale[None, :]), -127, 127).astype(jnp.int8)
        wout_t = _pad2(q, Hp, Vp)                                             # int8
        wscale = jnp.pad(scale, (0, Vp - V), constant_values=1.0)[None, :].astype(jnp.float32)
    else:
        wout_t = _pad2(wt, Hp, Vp).astype(jnp.bfloat16)
        wscale = jnp.ones((1, Vp), jnp.float32)

    return {
        "H": H, "V": V, "Hp": Hp, "Vp": Vp, "tile_n": tile_n,
        "embedding": params["embedding"],
        "wih_t": gate_w(params["w_ih"]),
        "whh_t": gate_w(params["w_hh"]),
        "bih": gate_b(params["b_ih"]),
        "bhh": gate_b(params["b_hh"]),
        "wch_t": _pad2(w_concat[:, :H].T, Hp, Hp),        # acts on rnn_output (f32)
        "wcc_t": _pad2(w_concat[:, H:].T, Hp, Hp),        # acts on context   (f32)
        "bc": jnp.pad(params["b_concat"].astype(jnp.float32), (0, Hp - H))[None, :],
        "wout_t": wout_t,
        "wscale": wscale,
        # padded vocab columns get a -1e9 bias so they vanish under softmax
        "bout": jnp.pad(params["b_out"].astype(jnp.float32), (0, Vp - V),
                        constant_values=-1e9)[None, :],
    }


def prepare_encoder_outputs(encoder_outputs, prep):
    """PyTorch (L, B, H) -> batch-major, (8,128)-padded (Bp, L, Hp) f32. Done once per sequence."""
    L, B, H = encoder_outputs.shape
    Bp = _round_up(B, 8)
    enc = jnp.transpose(encoder_outputs, (1, 0, 2)).astype(jnp.float32)
    return jnp.pad(enc, ((0, Bp - B), (0, 0), (0, prep["Hp"] - H)))


# ----------------------------------------------------------------------------------
# One decode step
# ----------------------------------------------------------------------------------
def luong_attn_decoder_forward(input_step, last_hidden, enc_blh_pad, prep,
                               out_dtype=jnp.float32):
    """Mirrors LuongAttnDecoderRNN.forward (attn_model='dot', n_layers=1, eval mode).

    out_dtype=jnp.bfloat16 halves the probability writeback for greedy/beam decode.
    """
    B = input_step.shape[1]
    H, V, Hp, Vp, TN = prep["H"], prep["V"], prep["Hp"], prep["Vp"], prep["tile_n"]
    Bp = _round_up(B, 8)
    NJ = Vp // TN
    L = enc_blh_pad.shape[1]
    assert enc_blh_pad.shape[0] == Bp and enc_blh_pad.shape[2] == Hp

    # Embedding lookup (gather stays in XLA) + eval-mode dropout (identity), then pad.
    # TODO(synk): nn.Dropout(p=0.1) on the embedding is treated as eval-mode identity.
    emb = prep["embedding"][input_step[0]].astype(jnp.float32)                # (B, H)
    emb = _pad2(emb, Bp, Hp)                                                  # (Bp, Hp) f32
    h_prev = _pad2(last_hidden[0].astype(jnp.float32), Bp, Hp)                # (Bp, Hp) f32

    full2 = lambda a: pl.BlockSpec(a.shape, lambda j: (0, 0))
    full3 = lambda a: pl.BlockSpec(a.shape, lambda j: (0, 0, 0))

    args = (emb, h_prev, enc_blh_pad,
            prep["wih_t"], prep["whh_t"], prep["bih"], prep["bhh"],
            prep["wch_t"], prep["wcc_t"], prep["bc"],
            prep["wout_t"], prep["wscale"], prep["bout"])

    in_specs = [
        full2(emb), full2(h_prev), full3(enc_blh_pad),
        full2(prep["wih_t"]), full2(prep["whh_t"]), full2(prep["bih"]), full2(prep["bhh"]),
        full2(prep["wch_t"]), full2(prep["wcc_t"]), full2(prep["bc"]),
        pl.BlockSpec((Hp, TN), lambda j: (0, j)),     # wout tile: streamed / pipelined
        pl.BlockSpec((1, TN), lambda j: (0, j)),      # per-column dequant scale tile
        pl.BlockSpec((1, TN), lambda j: (0, j)),      # bout tile
    ]
    out_shape = (
        jax.ShapeDtypeStruct((Bp, Vp), out_dtype),    # softmax probabilities (finalized in-kernel)
        jax.ShapeDtypeStruct((Bp, Hp), jnp.float32),  # new hidden
    )
    out_specs = (
        pl.BlockSpec((Bp, Vp), lambda j: (0, 0)),     # VMEM-resident across all vocab tiles
        pl.BlockSpec((Bp, Hp), lambda j: (0, 0)),
    )
    scratch_shapes = [
        pltpu.VMEM((Bp, Hp), jnp.float32),            # concat output, resident
        pltpu.VMEM((NJ, Bp, TN), jnp.float32),        # per-tile logits, resident
        pltpu.VMEM((Bp, 1), jnp.float32),             # running max
        pltpu.VMEM((Bp, 1), jnp.float32),             # running sum-exp
    ]

    flops = int(2 * Bp * (2 * Hp * 3 * Hp + 2 * Hp * Hp + Hp * Vp) + 4 * Bp * L * Hp)
    transcendentals = int(Bp * (3 * Hp + 2 * L + 3 * Vp))
    bytes_accessed = int(sum(a.size * a.dtype.itemsize for a in args)
                         + sum(math.prod(s.shape) * jnp.dtype(s.dtype).itemsize
                               for s in out_shape))

    probs_pad, h_new = pl.pallas_call(
        _decoder_kernel,
        out_shape=out_shape,
        grid=(NJ,),
        in_specs=in_specs,
        out_specs=out_specs,
        scratch_shapes=scratch_shapes,
        compiler_params=pltpu.CompilerParams(
            # vocab-tile axis carries the softmax stats and the resident scratch/output,
            # so it must stay sequential ("arbitrary").
            dimension_semantics=("arbitrary",),
            vmem_limit_bytes=32 * 1024 * 1024),
        cost_estimate=pl.CostEstimate(flops=flops, transcendentals=transcendentals,
                                      bytes_accessed=bytes_accessed),
    )(*args)

    return probs_pad[:B, :V], h_new[:B, :H][None, :, :]        # ((B, V), (1, B, H))


# ----------------------------------------------------------------------------------
# Pure-JAX reference (f32) matching the PyTorch forward (eval mode)
# ----------------------------------------------------------------------------------
def _reference_forward(input_step, last_hidden, encoder_outputs, params):
    H = params["w_hh"].shape[1]
    x = params["embedding"][input_step[0]]
    h = last_hidden[0]
    gi = x @ params["w_ih"].T + params["b_ih"]
    gh = h @ params["w_hh"].T + params["b_hh"]
    r = jax.nn.sigmoid(gi[:, :H] + gh[:, :H])
    z = jax.nn.sigmoid(gi[:, H:2 * H] + gh[:, H:2 * H])
    n = jnp.tanh(gi[:, 2 * H:] + r * gh[:, 2 * H:])
    h_new = (1.0 - z) * n + z * h                                       # (B, H)
    rnn_output = h_new[None]                                            # (1, B, H)
    energies = jnp.sum(rnn_output * encoder_outputs, axis=2)            # (L, B)
    attn = jax.nn.softmax(energies.T, axis=1)[:, None, :]               # (B, 1, L)
    context = jnp.einsum("bol,lbh->boh", attn, encoder_outputs)[:, 0]   # (B, H)
    concat_in = jnp.concatenate([h_new, context], axis=1)
    concat_out = jnp.tanh(concat_in @ params["w_concat"].T + params["b_concat"])
    logits = concat_out @ params["w_out"].T + params["b_out"]
    return jax.nn.softmax(logits, axis=1), h_new[None]


def _init_params(key, hidden_size, output_size):
    ks = jax.random.split(key, 10)
    u = lambda k, shape, s: jax.random.uniform(k, shape, jnp.float32, -s, s)
    s = 1.0 / (hidden_size ** 0.5)
    return {
        "embedding": jax.random.normal(ks[0], (output_size, hidden_size), jnp.float32),
        "w_ih": u(ks[1], (3 * hidden_size, hidden_size), s),
        "w_hh": u(ks[2], (3 * hidden_size, hidden_size), s),
        "b_ih": u(ks[3], (3 * hidden_size,), s),
        "b_hh": u(ks[4], (3 * hidden_size,), s),
        "w_concat": u(ks[5], (hidden_size, 2 * hidden_size), s),
        "b_concat": u(ks[6], (hidden_size,), s),
        "w_out": u(ks[7], (output_size, hidden_size), s),
        "b_out": u(ks[8], (output_size,), s),
    }


if __name__ == "__main__":
    B, H, L, V = 4, 128, 8, 4000   # batch, hidden_size, encoder max length, vocab size

    key = jax.random.PRNGKey(0)
    k_par, k_tok, k_hid, k_enc = jax.random.split(key, 4)
    params = _init_params(k_par, H, V)

    input_step = jax.random.randint(k_tok, (1, B), 0, V, dtype=jnp.int32)      # (1, B)
    last_hidden = jax.random.normal(k_hid, (1, B, H), jnp.float32)             # (n_layers, B, H)
    encoder_outputs = jax.random.normal(k_enc, (L, B, H), jnp.float32)         # (L, B, H)

    # Hoisted one-time preparation (would live outside the autoregressive decode loop).
    # int8 wout streaming (v5e/v6e recommendation); tile_n=2048 -> Vp=4096, 2 vocab tiles.
    prep = prepare_decoder_params(params, wout_dtype="int8", tile_n=2048)
    enc_prep = prepare_encoder_outputs(encoder_outputs, prep)

    step_fn = jax.jit(lambda ts, hs, es: luong_attn_decoder_forward(ts, hs, es, prep))
    out, hidden = jax.block_until_ready(step_fn(input_step, last_hidden, enc_prep))

    ref_out, ref_hidden = _reference_forward(input_step, last_hidden, encoder_outputs, params)
    assert out.shape == (B, V) and hidden.shape == (1, B, H)
    # int8 weight streaming + bf16 projection matmul -> loosened tolerance vs f32 reference.
    assert jnp.allclose(out, ref_out, rtol=2e-2, atol=2e-2), \
        float(jnp.max(jnp.abs(out - ref_out)))
    assert jnp.allclose(hidden, ref_hidden, rtol=2e-2, atol=2e-2), \
        float(jnp.max(jnp.abs(hidden - ref_hidden)))
    assert jnp.allclose(jnp.sum(out, axis=1), 1.0, atol=1e-3)

    print("KERNEL_OK")
</pallas_src>

<mosaic_0001>
module attributes {stable_mosaic.version = 11 : i64} {
  func.func @_decoder_kernel(%arg0: i32, %arg1: memref<8x128xf32, #tpu.memory_space<vmem>>, %arg2: memref<8x128xf32, #tpu.memory_space<vmem>>, %arg3: memref<8x8x128xf32, #tpu.memory_space<vmem>>, %arg4: memref<128x384xf32, #tpu.memory_space<vmem>>, %arg5: memref<128x384xf32, #tpu.memory_space<vmem>>, %arg6: memref<1x384xf32, #tpu.memory_space<vmem>>, %arg7: memref<1x384xf32, #tpu.memory_space<vmem>>, %arg8: memref<128x128xf32, #tpu.memory_space<vmem>>, %arg9: memref<128x128xf32, #tpu.memory_space<vmem>>, %arg10: memref<1x128xf32, #tpu.memory_space<vmem>>, %arg11: memref<128x2048xi8, #tpu.memory_space<vmem>>, %arg12: memref<1x2048xf32, #tpu.memory_space<vmem>>, %arg13: memref<1x2048xf32, #tpu.memory_space<vmem>>, %arg14: memref<8x4096xf32, #tpu.memory_space<vmem>>, %arg15: memref<8x128xf32, #tpu.memory_space<vmem>>, %arg16: memref<8x128xf32, #tpu.memory_space<vmem>>, %arg17: memref<2x8x2048xf32, #tpu.memory_space<vmem>>, %arg18: memref<8x1xf32, #tpu.memory_space<vmem>>, %arg19: memref<8x1xf32, #tpu.memory_space<vmem>>) attributes {dimension_semantics = [#tpu.dimension_semantics<arbitrary>], iteration_bounds = array<i64: 2>, scalar_prefetch = 0 : i64, scratch_operands = 4 : i64, tpu.core_type = #tpu.core_type<tc>, window_params = [{pipeline_mode = #tpu.pipeline_mode<synchronous>, transform_indices = @transform_0, window_bounds = array<i64: 8, 128>}, {pipeline_mode = #tpu.pipeline_mode<synchronous>, transform_indices = @transform_1, window_bounds = array<i64: 8, 128>}, {pipeline_mode = #tpu.pipeline_mode<synchronous>, transform_indices = @transform_2, window_bounds = array<i64: 8, 8, 128>}, {pipeline_mode = #tpu.pipeline_mode<synchronous>, transform_indices = @transform_3, window_bounds = array<i64: 128, 384>}, {pipeline_mode = #tpu.pipeline_mode<synchronous>, transform_indices = @transform_4, window_bounds = array<i64: 128, 384>}, {pipeline_mode = #tpu.pipeline_mode<synchronous>, transform_indices = @transform_5, window_bounds = array<i64: 1, 384>}, {pipeline_mode = #tpu.pipeline_mode<synchronous>, transform_indices = @transform_6, window_bounds = array<i64: 1, 384>}, {pipeline_mode = #tpu.pipeline_mode<synchronous>, transform_indices = @transform_7, window_bounds = array<i64: 128, 128>}, {pipeline_mode = #tpu.pipeline_mode<synchronous>, transform_indices = @transform_8, window_bounds = array<i64: 128, 128>}, {pipeline_mode = #tpu.pipeline_mode<synchronous>, transform_indices = @transform_9, window_bounds = array<i64: 1, 128>}, {transform_indices = @transform_10, window_bounds = array<i64: 128, 2048>}, {transform_indices = @transform_11, window_bounds = array<i64: 1, 2048>}, {transform_indices = @transform_12, window_bounds = array<i64: 1, 2048>}, {pipeline_mode = #tpu.pipeline_mode<synchronous>, transform_indices = @transform_13, window_bounds = array<i64: 8, 4096>}, {pipeline_mode = #tpu.pipeline_mode<synchronous>, transform_indices = @transform_14, window_bounds = array<i64: 8, 128>}]} {
    %c0_i32 = arith.constant 0 : i32
    %0 = arith.cmpi eq, %arg0, %c0_i32 : i32
    %1 = arith.extui %0 : i1 to i32
    %c0_i32_0 = arith.constant 0 : i32
    %2 = arith.cmpi ne, %1, %c0_i32_0 : i32
    scf.if %2 {
      %c0_16 = arith.constant 0 : index
      %c0_17 = arith.constant 0 : index
      %30 = vector.load %arg1[%c0_16, %c0_17] : memref<8x128xf32, #tpu.memory_space<vmem>>, vector<8x128xf32>
      %c0_18 = arith.constant 0 : index
      %c0_19 = arith.constant 0 : index
      %31 = vector.load %arg2[%c0_18, %c0_19] : memref<8x128xf32, #tpu.memory_space<vmem>>, vector<8x128xf32>
      %c0_20 = arith.constant 0 : index
      %c0_21 = arith.constant 0 : index
      %32 = vector.load %arg4[%c0_20, %c0_21] : memref<128x384xf32, #tpu.memory_space<vmem>>, vector<128x384xf32>
      %cst_22 = arith.constant dense<0.000000e+00> : vector<8x384xf32>
      %33 = tpu.matmul %30, %32, %cst_22 {dimension_numbers = #tpu.dot_dimension_numbers<[1], [0], [0], [1], [0, 0, 1, 1], [], []>} : vector<8x128xf32>, vector<128x384xf32>, vector<8x384xf32> -> vector<8x384xf32>
      %c0_23 = arith.constant 0 : index
      %c0_24 = arith.constant 0 : index
      %34 = vector.load %arg6[%c0_23, %c0_24] : memref<1x384xf32, #tpu.memory_space<vmem>>, vector<1x384xf32>
      %35 = vector.broadcast %34 : vector<1x384xf32> to vector<8x384xf32>
      %36 = arith.addf %33, %35 : vector<8x384xf32>
      %c0_25 = arith.constant 0 : index
      %c0_26 = arith.constant 0 : index
      %37 = vector.load %arg5[%c0_25, %c0_26] : memref<128x384xf32, #tpu.memory_space<vmem>>, vector<128x384xf32>
      %cst_27 = arith.constant dense<0.000000e+00> : vector<8x384xf32>
      %38 = tpu.matmul %31, %37, %cst_27 {dimension_numbers = #tpu.dot_dimension_numbers<[1], [0], [0], [1], [0, 0, 1, 1], [], []>} : vector<8x128xf32>, vector<128x384xf32>, vector<8x384xf32> -> vector<8x384xf32>
      %c0_28 = arith.constant 0 : index
      %c0_29 = arith.constant 0 : index
      %39 = vector.load %arg7[%c0_28, %c0_29] : memref<1x384xf32, #tpu.memory_space<vmem>>, vector<1x384xf32>
      %40 = vector.broadcast %39 : vector<1x384xf32> to vector<8x384xf32>
      %41 = arith.addf %38, %40 : vector<8x384xf32>
      %42 = vector.extract_strided_slice %36 {offsets = [0, 0], sizes = [8, 128], strides = [1, 1]} : vector<8x384xf32> to vector<8x128xf32>
      %43 = vector.extract_strided_slice %41 {offsets = [0, 0], sizes = [8, 128], strides = [1, 1]} : vector<8x384xf32> to vector<8x128xf32>
      %44 = arith.addf %42, %43 : vector<8x128xf32>
      %45 = arith.negf %44 : vector<8x128xf32>
      %46 = math.exp %45 : vector<8x128xf32>
      %cst_30 = arith.constant 1.000000e+00 : f32
      %47 = vector.broadcast %cst_30 : f32 to vector<8x128xf32>
      %48 = arith.addf %47, %46 : vector<8x128xf32>
      %49 = arith.divf %47, %48 : vector<8x128xf32>
      %50 = vector.extract_strided_slice %36 {offsets = [0, 128], sizes = [8, 128], strides = [1, 1]} : vector<8x384xf32> to vector<8x128xf32>
      %51 = vector.extract_strided_slice %41 {offsets = [0, 128], sizes = [8, 128], strides = [1, 1]} : vector<8x384xf32> to vector<8x128xf32>
      %52 = arith.addf %50, %51 : vector<8x128xf32>
      %53 = arith.negf %52 : vector<8x128xf32>
      %54 = math.exp %53 : vector<8x128xf32>
      %cst_31 = arith.constant 1.000000e+00 : f32
      %55 = vector.broadcast %cst_31 : f32 to vector<8x128xf32>
      %56 = arith.addf %55, %54 : vector<8x128xf32>
      %57 = arith.divf %55, %56 : vector<8x128xf32>
      %58 = vector.extract_strided_slice %36 {offsets = [0, 256], sizes = [8, 128], strides = [1, 1]} : vector<8x384xf32> to vector<8x128xf32>
      %59 = vector.extract_strided_slice %41 {offsets = [0, 256], sizes = [8, 128], strides = [1, 1]} : vector<8x384xf32> to vector<8x128xf32>
      %60 = arith.mulf %49, %59 : vector<8x128xf32>
      %61 = arith.addf %58, %60 : vector<8x128xf32>
      %62 = math.tanh %61 : vector<8x128xf32>
      %cst_32 = arith.constant 1.000000e+00 : f32
      %63 = vector.broadcast %cst_32 : f32 to vector<8x128xf32>
      %64 = arith.subf %63, %57 : vector<8x128xf32>
      %65 = arith.mulf %64, %62 : vector<8x128xf32>
      %66 = arith.mulf %57, %31 : vector<8x128xf32>
      %67 = arith.addf %65, %66 : vector<8x128xf32>
      %c0_33 = arith.constant 0 : index
      %c0_34 = arith.constant 0 : index
      %c0_35 = arith.constant 0 : index
      %68 = vector.load %arg3[%c0_33, %c0_34, %c0_35] : memref<8x8x128xf32, #tpu.memory_space<vmem>>, vector<8x8x128xf32>
      %69 = vector.shape_cast %67 : vector<8x128xf32> to vector<8x1x128xf32>
      %70 = vector.broadcast %69 : vector<8x1x128xf32> to vector<8x8x128xf32>
      %71 = arith.mulf %68, %70 : vector<8x8x128xf32>
      %cst_36 = arith.constant dense<0.000000e+00> : vector<8x8xf32>
      %72 = vector.multi_reduction <add>, %71, %cst_36 [2] : vector<8x8x128xf32> to vector<8x8xf32>
      %cst_37 = arith.constant dense<0xFF800000> : vector<8xf32>
      %73 = vector.multi_reduction <maximumf>, %72, %cst_37 [1] : vector<8x8xf32> to vector<8xf32>
      %74 = vector.shape_cast %73 : vector<8xf32> to vector<8x1xf32>
      %75 = vector.broadcast %74 : vector<8x1xf32> to vector<8x8xf32>
      %76 = arith.subf %72, %75 : vector<8x8xf32>
      %77 = math.exp %76 : vector<8x8xf32>
      %cst_38 = arith.constant dense<0.000000e+00> : vector<8xf32>
      %78 = vector.multi_reduction <add>, %77, %cst_38 [1] : vector<8x8xf32> to vector<8xf32>
      %79 = vector.shape_cast %78 : vector<8xf32> to vector<8x1xf32>
      %80 = vector.broadcast %79 : vector<8x1xf32> to vector<8x8xf32>
      %81 = arith.divf %77, %80 : vector<8x8xf32>
      %82 = vector.shape_cast %81 : vector<8x8xf32> to vector<8x8x1xf32>
      %83 = vector.broadcast %82 : vector<8x8x1xf32> to vector<8x8x128xf32>
      %84 = arith.mulf %83, %68 : vector<8x8x128xf32>
      %cst_39 = arith.constant dense<0.000000e+00> : vector<8x128xf32>
      %85 = vector.multi_reduction <add>, %84, %cst_39 [1] : vector<8x8x128xf32> to vector<8x128xf32>
      %c0_40 = arith.constant 0 : index
      %c0_41 = arith.constant 0 : index
      %86 = vector.load %arg8[%c0_40, %c0_41] : memref<128x128xf32, #tpu.memory_space<vmem>>, vector<128x128xf32>
      %cst_42 = arith.constant dense<0.000000e+00> : vector<8x128xf32>
      %87 = tpu.matmul %67, %86, %cst_42 {dimension_numbers = #tpu.dot_dimension_numbers<[1], [0], [0], [1], [0, 0, 1, 1], [], []>} : vector<8x128xf32>, vector<128x128xf32>, vector<8x128xf32> -> vector<8x128xf32>
      %c0_43 = arith.constant 0 : index
      %c0_44 = arith.constant 0 : index
      %88 = vector.load %arg9[%c0_43, %c0_44] : memref<128x128xf32, #tpu.memory_space<vmem>>, vector<128x128xf32>
      %cst_45 = arith.constant dense<0.000000e+00> : vector<8x128xf32>
      %89 = tpu.matmul %85, %88, %cst_45 {dimension_numbers = #tpu.dot_dimension_numbers<[1], [0], [0], [1], [0, 0, 1, 1], [], []>} : vector<8x128xf32>, vector<128x128xf32>, vector<8x128xf32> -> vector<8x128xf32>
      %90 = arith.addf %87, %89 : vector<8x128xf32>
      %c0_46 = arith.constant 0 : index
      %c0_47 = arith.constant 0 : index
      %91 = vector.load %arg10[%c0_46, %c0_47] : memref<1x128xf32, #tpu.memory_space<vmem>>, vector<1x128xf32>
      %92 = vector.broadcast %91 : vector<1x128xf32> to vector<8x128xf32>
      %93 = arith.addf %90, %92 : vector<8x128xf32>
      %94 = math.tanh %93 : vector<8x128xf32>
      %c0_48 = arith.constant 0 : index
      %c0_49 = arith.constant 0 : index
      %95 = vector.load %arg15[%c0_48, %c0_49] : memref<8x128xf32, #tpu.memory_space<vmem>>, vector<8x128xf32>
      tpu.vector_store %arg15[%c0_48, %c0_49], %67 {strides = array<i32>} : memref<8x128xf32, #tpu.memory_space<vmem>>, vector<8x128xf32>,
      %c0_50 = arith.constant 0 : index
      %c0_51 = arith.constant 0 : index
      %96 = vector.load %arg16[%c0_50, %c0_51] : memref<8x128xf32, #tpu.memory_space<vmem>>, vector<8x128xf32>
      tpu.vector_store %arg16[%c0_50, %c0_51], %94 {strides = array<i32>} : memref<8x128xf32, #tpu.memory_space<vmem>>, vector<8x128xf32>,
    } else {
    }
    %c0 = arith.constant 0 : index
    %c0_1 = arith.constant 0 : index
    %3 = vector.load %arg11[%c0, %c0_1] : memref<128x2048xi8, #tpu.memory_space<vmem>>, vector<128x2048xi8>
    %4 = arith.sitofp %3 : vector<128x2048xi8> to vector<128x2048xf32>
    %5 = arith.truncf %4 : vector<128x2048xf32> to vector<128x2048xbf16>
    %c0_2 = arith.constant 0 : index
    %c0_3 = arith.constant 0 : index
    %6 = vector.load %arg16[%c0_2, %c0_3] : memref<8x128xf32, #tpu.memory_space<vmem>>, vector<8x128xf32>
    %7 = arith.truncf %6 : vector<8x128xf32> to vector<8x128xbf16>
    %cst = arith.constant dense<0.000000e+00> : vector<8x2048xf32>
    %8 = tpu.matmul %7, %5, %cst {dimension_numbers = #tpu.dot_dimension_numbers<[1], [0], [0], [1], [0, 0, 1, 1], [], []>} : vector<8x128xbf16>, vector<128x2048xbf16>, vector<8x2048xf32> -> vector<8x2048xf32>
    %c0_4 = arith.constant 0 : index
    %c0_5 = arith.constant 0 : index
    %9 = vector.load %arg12[%c0_4, %c0_5] : memref<1x2048xf32, #tpu.memory_space<vmem>>, vector<1x2048xf32>
    %10 = vector.broadcast %9 : vector<1x2048xf32> to vector<8x2048xf32>
    %11 = arith.mulf %8, %10 : vector<8x2048xf32>
    %c0_6 = arith.constant 0 : index
    %c0_7 = arith.constant 0 : index
    %12 = vector.load %arg13[%c0_6, %c0_7] : memref<1x2048xf32, #tpu.memory_space<vmem>>, vector<1x2048xf32>
    %13 = vector.broadcast %12 : vector<1x2048xf32> to vector<8x2048xf32>
    %14 = arith.addf %11, %13 : vector<8x2048xf32>
    %15 = arith.index_cast %arg0 : i32 to index
    %c0_8 = arith.constant 0 : index
    %c0_9 = arith.constant 0 : index
    %16 = vector.load %arg17[%15, %c0_8, %c0_9] : memref<2x8x2048xf32, #tpu.memory_space<vmem>>, vector<1x8x2048xf32>
    %17 = vector.shape_cast %16 : vector<1x8x2048xf32> to vector<8x2048xf32>
    %18 = vector.shape_cast %14 : vector<8x2048xf32> to vector<1x8x2048xf32>
    tpu.vector_store %arg17[%15, %c0_8, %c0_9], %18 {strides = array<i32>} : memref<2x8x2048xf32, #tpu.memory_space<vmem>>, vector<1x8x2048xf32>,
    %cst_10 = arith.constant dense<0xFF800000> : vector<8xf32>
    %19 = vector.multi_reduction <maximumf>, %14, %cst_10 [1] : vector<8x2048xf32> to vector<8xf32>
    %20 = vector.shape_cast %19 : vector<8xf32> to vector<8x1xf32>
    %c0_i32_11 = arith.constant 0 : i32
    %21 = arith.cmpi eq, %arg0, %c0_i32_11 : i32
    %22 = arith.extui %21 : i1 to i32
    %c0_i32_12 = arith.constant 0 : i32
    %23 = arith.cmpi ne, %22, %c0_i32_12 : i32
    scf.if %23 {
      %c0_16 = arith.constant 0 : index
      %c0_17 = arith.constant 0 : index
      %30 = vector.load %arg18[%c0_16, %c0_17] : memref<8x1xf32, #tpu.memory_space<vmem>>, vector<8x1xf32>
      tpu.vector_store %arg18[%c0_16, %c0_17], %20 {strides = array<i32>} : memref<8x1xf32, #tpu.memory_space<vmem>>, vector<8x1xf32>,
      %31 = vector.broadcast %20 : vector<8x1xf32> to vector<8x2048xf32>
      %32 = arith.subf %14, %31 : vector<8x2048xf32>
      %33 = math.exp %32 : vector<8x2048xf32>
      %cst_18 = arith.constant dense<0.000000e+00> : vector<8xf32>
      %34 = vector.multi_reduction <add>, %33, %cst_18 [1] : vector<8x2048xf32> to vector<8xf32>
      %35 = vector.shape_cast %34 : vector<8xf32> to vector<8x1xf32>
      %c0_19 = arith.constant 0 : index
      %c0_20 = arith.constant 0 : index
      %36 = vector.load %arg19[%c0_19, %c0_20] : memref<8x1xf32, #tpu.memory_space<vmem>>, vector<8x1xf32>
      tpu.vector_store %arg19[%c0_19, %c0_20], %35 {strides = array<i32>} : memref<8x1xf32, #tpu.memory_space<vmem>>, vector<8x1xf32>,
    } else {
    }
    %c0_i32_13 = arith.constant 0 : i32
    %24 = arith.cmpi sgt, %arg0, %c0_i32_13 : i32
    %25 = arith.extui %24 : i1 to i32
    %c0_i32_14 = arith.constant 0 : i32
    %26 = arith.cmpi ne, %25, %c0_i32_14 : i32
    scf.if %26 {
      %c0_16 = arith.constant 0 : index
      %c0_17 = arith.constant 0 : index
      %30 = vector.load %arg18[%c0_16, %c0_17] : memref<8x1xf32, #tpu.memory_space<vmem>>, vector<8x1xf32>
      %31 = arith.maximumf %30, %20 : vector<8x1xf32>
      %c0_18 = arith.constant 0 : index
      %c0_19 = arith.constant 0 : index
      %32 = vector.load %arg19[%c0_18, %c0_19] : memref<8x1xf32, #tpu.memory_space<vmem>>, vector<8x1xf32>
      %33 = arith.subf %30, %31 : vector<8x1xf32>
      %34 = math.exp %33 : vector<8x1xf32>
      %35 = arith.mulf %32, %34 : vector<8x1xf32>
      %36 = vector.broadcast %31 : vector<8x1xf32> to vector<8x2048xf32>
      %37 = arith.subf %14, %36 : vector<8x2048xf32>
      %38 = math.exp %37 : vector<8x2048xf32>
      %cst_20 = arith.constant dense<0.000000e+00> : vector<8xf32>
      %39 = vector.multi_reduction <add>, %38, %cst_20 [1] : vector<8x2048xf32> to vector<8xf32>
      %40 = vector.shape_cast %39 : vector<8xf32> to vector<8x1xf32>
      %41 = arith.addf %35, %40 : vector<8x1xf32>
      %c0_21 = arith.constant 0 : index
      %c0_22 = arith.constant 0 : index
      %42 = vector.load %arg19[%c0_21, %c0_22] : memref<8x1xf32, #tpu.memory_space<vmem>>, vector<8x1xf32>
      tpu.vector_store %arg19[%c0_21, %c0_22], %41 {strides = array<i32>} : memref<8x1xf32, #tpu.memory_space<vmem>>, vector<8x1xf32>,
      %c0_23 = arith.constant 0 : index
      %c0_24 = arith.constant 0 : index
      %43 = vector.load %arg18[%c0_23, %c0_24] : memref<8x1xf32, #tpu.memory_space<vmem>>, vector<8x1xf32>
      tpu.vector_store %arg18[%c0_23, %c0_24], %31 {strides = array<i32>} : memref<8x1xf32, #tpu.memory_space<vmem>>, vector<8x1xf32>,
    } else {
    }
    %c1_i32 = arith.constant 1 : i32
    %27 = arith.cmpi eq, %arg0, %c1_i32 : i32
    %28 = arith.extui %27 : i1 to i32
    %c0_i32_15 = arith.constant 0 : i32
    %29 = arith.cmpi ne, %28, %c0_i32_15 : i32
    scf.if %29 {
      %c0_16 = arith.constant 0 : index
      %c0_17 = arith.constant 0 : index
      %30 = vector.load %arg18[%c0_16, %c0_17] : memref<8x1xf32, #tpu.memory_space<vmem>>, vector<8x1xf32>
      %c0_18 = arith.constant 0 : index
      %c0_19 = arith.constant 0 : index
      %31 = vector.load %arg19[%c0_18, %c0_19] : memref<8x1xf32, #tpu.memory_space<vmem>>, vector<8x1xf32>
      %cst_20 = arith.constant 1.000000e+00 : f32
      %32 = vector.broadcast %cst_20 : f32 to vector<8x1xf32>
      %33 = arith.divf %32, %31 : vector<8x1xf32>
      %c0_21 = arith.constant 0 : index
      %c0_22 = arith.constant 0 : index
      %c0_23 = arith.constant 0 : index
      %34 = vector.load %arg17[%c0_21, %c0_22, %c0_23] : memref<2x8x2048xf32, #tpu.memory_space<vmem>>, vector<1x8x2048xf32>
      %35 = vector.shape_cast %34 : vector<1x8x2048xf32> to vector<8x2048xf32>
      %36 = vector.broadcast %30 : vector<8x1xf32> to vector<8x2048xf32>
      %37 = arith.subf %35, %36 : vector<8x2048xf32>
      %38 = math.exp %37 : vector<8x2048xf32>
      %39 = vector.broadcast %33 : vector<8x1xf32> to vector<8x2048xf32>
      %40 = arith.mulf %38, %39 : vector<8x2048xf32>
      %c0_24 = arith.constant 0 : index
      %c0_25 = arith.constant 0 : index
      %41 = vector.load %arg14[%c0_24, %c0_25] : memref<8x4096xf32, #tpu.memory_space<vmem>>, vector<8x2048xf32>
      tpu.vector_store %arg14[%c0_24, %c0_25], %40 {strides = array<i32>} : memref<8x4096xf32, #tpu.memory_space<vmem>>, vector<8x2048xf32>,
      %c1 = arith.constant 1 : index
      %c0_26 = arith.constant 0 : index
      %c0_27 = arith.constant 0 : index
      %42 = vector.load %arg17[%c1, %c0_26, %c0_27] : memref<2x8x2048xf32, #tpu.memory_space<vmem>>, vector<1x8x2048xf32>
      %43 = vector.shape_cast %42 : vector<1x8x2048xf32> to vector<8x2048xf32>
      %44 = vector.broadcast %30 : vector<8x1xf32> to vector<8x2048xf32>
      %45 = arith.subf %43, %44 : vector<8x2048xf32>
      %46 = math.exp %45 : vector<8x2048xf32>
      %47 = vector.broadcast %33 : vector<8x1xf32> to vector<8x2048xf32>
      %48 = arith.mulf %46, %47 : vector<8x2048xf32>
      %c0_28 = arith.constant 0 : index
      %c2048 = arith.constant 2048 : index
      %49 = vector.load %arg14[%c0_28, %c2048] : memref<8x4096xf32, #tpu.memory_space<vmem>>, vector<8x2048xf32>
      tpu.vector_store %arg14[%c0_28, %c2048], %48 {strides = array<i32>} : memref<8x4096xf32, #tpu.memory_space<vmem>>, vector<8x2048xf32>,
    } else {
    }
    return
  }
  func.func @transform_0(%arg0: i32) -> (i32, i32) {
    %c0_i32 = arith.constant 0 : i32
    %c0_i32_0 = arith.constant 0 : i32
    %c0_i32_1 = arith.constant 0 : i32
    return %c0_i32, %c0_i32_0 : i32, i32
  }
  func.func @transform_1(%arg0: i32) -> (i32, i32) {
    %c0_i32 = arith.constant 0 : i32
    %c0_i32_0 = arith.constant 0 : i32
    %c0_i32_1 = arith.constant 0 : i32
    return %c0_i32, %c0_i32_0 : i32, i32
  }
  func.func @transform_2(%arg0: i32) -> (i32, i32, i32) {
    %c0_i32 = arith.constant 0 : i32
    %c0_i32_0 = arith.constant 0 : i32
    %c0_i32_1 = arith.constant 0 : i32
    %c0_i32_2 = arith.constant 0 : i32
    return %c0_i32, %c0_i32_0, %c0_i32_1 : i32, i32, i32
  }
  func.func @transform_3(%arg0: i32) -> (i32, i32) {
    %c0_i32 = arith.constant 0 : i32
    %c0_i32_0 = arith.constant 0 : i32
    %c0_i32_1 = arith.constant 0 : i32
    return %c0_i32, %c0_i32_0 : i32, i32
  }
  func.func @transform_4(%arg0: i32) -> (i32, i32) {
    %c0_i32 = arith.constant 0 : i32
    %c0_i32_0 = arith.constant 0 : i32
    %c0_i32_1 = arith.constant 0 : i32
    return %c0_i32, %c0_i32_0 : i32, i32
  }
  func.func @transform_5(%arg0: i32) -> (i32, i32) {
    %c0_i32 = arith.constant 0 : i32
    %c0_i32_0 = arith.constant 0 : i32
    %c0_i32_1 = arith.constant 0 : i32
    return %c0_i32, %c0_i32_0 : i32, i32
  }
  func.func @transform_6(%arg0: i32) -> (i32, i32) {
    %c0_i32 = arith.constant 0 : i32
    %c0_i32_0 = arith.constant 0 : i32
    %c0_i32_1 = arith.constant 0 : i32
    return %c0_i32, %c0_i32_0 : i32, i32
  }
  func.func @transform_7(%arg0: i32) -> (i32, i32) {
    %c0_i32 = arith.constant 0 : i32
    %c0_i32_0 = arith.constant 0 : i32
    %c0_i32_1 = arith.constant 0 : i32
    return %c0_i32, %c0_i32_0 : i32, i32
  }
  func.func @transform_8(%arg0: i32) -> (i32, i32) {
    %c0_i32 = arith.constant 0 : i32
    %c0_i32_0 = arith.constant 0 : i32
    %c0_i32_1 = arith.constant 0 : i32
    return %c0_i32, %c0_i32_0 : i32, i32
  }
  func.func @transform_9(%arg0: i32) -> (i32, i32) {
    %c0_i32 = arith.constant 0 : i32
    %c0_i32_0 = arith.constant 0 : i32
    %c0_i32_1 = arith.constant 0 : i32
    return %c0_i32, %c0_i32_0 : i32, i32
  }
  func.func @transform_10(%arg0: i32) -> (i32, i32) {
    %c0_i32 = arith.constant 0 : i32
    %c0_i32_0 = arith.constant 0 : i32
    return %c0_i32, %arg0 : i32, i32
  }
  func.func @transform_11(%arg0: i32) -> (i32, i32) {
    %c0_i32 = arith.constant 0 : i32
    %c0_i32_0 = arith.constant 0 : i32
    return %c0_i32, %arg0 : i32, i32
  }
  func.func @transform_12(%arg0: i32) -> (i32, i32) {
    %c0_i32 = arith.constant 0 : i32
    %c0_i32_0 = arith.constant 0 : i32
    return %c0_i32, %arg0 : i32, i32
  }
  func.func @transform_13(%arg0: i32) -> (i32, i32) {
    %c0_i32 = arith.constant 0 : i32
    %c0_i32_0 = arith.constant 0 : i32
    %c0_i32_1 = arith.constant 0 : i32
    return %c0_i32, %c0_i32_0 : i32, i32
  }
  func.func @transform_14(%arg0: i32) -> (i32, i32) {
    %c0_i32 = arith.constant 0 : i32
    %c0_i32_0 = arith.constant 0 : i32
    %c0_i32_1 = arith.constant 0 : i32
    return %c0_i32, %c0_i32_0 : i32, i32
  }
}

</mosaic_0001>

<llo_original>
// kernel: _lambda_.1
$region0: #{_lambda_.1}
  #allocation0 [shape = 'u32[]', space=smem, size = 0x4, offset = 0x4, fixed_abs, tag = 'smem constant byte address 0x4 - core index']
  #allocation1 [shape = 'u32[144,128]{1,0:T(1,128)}', space=vmem, size = 0x12000, scoped, tag = 'internal scratch']
  #allocation2 [shape = 'f32[8,128]{1,0:T(8,128)}', space=vmem, size = 0x1000, scoped, tag = 'scratch operand']
  #allocation3 [shape = 'f32[2,8,2048]{2,1,0:T(8,128)}', space=vmem, size = 0x20000, scoped, tag = 'scratch operand']
  #allocation4 [shape = 'f32[8,1]{1,0:T(8,128)}', space=vmem, size = 0x1000, scoped, tag = 'scratch operand']
  #allocation5 [shape = 'f32[8,1]{1,0:T(8,128)}', space=vmem, size = 0x1000, scoped, tag = 'scratch operand']
  %s0 = inlined_call_operand.vmem [shape: f32[8,128], index: 0, kind: input, shape index: {}]
  %s1 = inlined_call_operand.vmem [shape: f32[8,128], index: 1, kind: input, shape index: {}]
  %s2 = inlined_call_operand.hbm [shape: f32[8,8,128], index: 2, kind: input, shape index: {}]
  %s3 = inlined_call_operand.hbm [shape: f32[128,384], index: 3, kind: input, shape index: {}]
  %s4 = inlined_call_operand.hbm [shape: f32[128,384], index: 4, kind: input, shape index: {}]
  %s5 = inlined_call_operand.hbm [shape: f32[1,384], index: 5, kind: input, shape index: {}]
  %s6 = inlined_call_operand.hbm [shape: f32[1,384], index: 6, kind: input, shape index: {}]
  %s7 = inlined_call_operand.hbm [shape: f32[128,128], index: 7, kind: input, shape index: {}]
  %s8 = inlined_call_operand.hbm [shape: f32[128,128], index: 8, kind: input, shape index: {}]
  %s9 = inlined_call_operand.hbm [shape: f32[1,128], index: 9, kind: input, shape index: {}]
  %s10 = inlined_call_operand.hbm [shape: s8[128,4096], index: 10, kind: input, shape index: {}]
  %s11 = inlined_call_operand.hbm [shape: f32[1,4096], index: 11, kind: input, shape index: {}]
  %s12 = inlined_call_operand.hbm [shape: f32[1,4096], index: 12, kind: input, shape index: {}]
  %s13 = inlined_call_operand.vmem [shape: f32[8,4096], index: 13, kind: output, shape index: {0}]
  %s14 = inlined_call_operand.vmem [shape: f32[8,128], index: 14, kind: output, shape index: {1}]
  %15 = xla_tuple %s13, %s14
  %s16 = sld [smem:[#allocation0]]
  $region153: #{_lambda_.1} parent=0
    _
  %s18 = ssub.s32 1, %s16
  %s19 = scalar_select 0, %s18, %s16
  $region1: #{_lambda_.1} parent=0
    #allocation6 [shape = 'u8[32768]{0}', space=vmem, size = 0x8000, scoped, tag = 'input window, operand 2, single buffered']
    #allocation7 [shape = 's32[2]{0}', space=sflag, size = 0x8, scoped, tag = 'scoped memory for _lambda_.1']
    #allocation8 [shape = 'u8[196608]{0}', space=vmem, size = 0x30000, scoped, tag = 'input window, operand 3, single buffered']
    #allocation9 [shape = 's32[1]{0}', space=sflag, size = 0x4, scoped, tag = 'scoped memory for _lambda_.1']
    #allocation10 [shape = 'u8[196608]{0}', space=vmem, size = 0x30000, scoped, tag = 'input window, operand 4, single buffered']
    #allocation11 [shape = 'u8[1536]{0}', space=vmem, size = 0x800, scoped, tag = 'input window, operand 5, single buffered']
    #allocation12 [shape = 's32[1]{0}', space=sflag, size = 0x4, scoped, tag = 'scoped memory for _lambda_.1']
    #allocation13 [shape = 'u8[1536]{0}', space=vmem, size = 0x800, scoped, tag = 'input window, operand 6, single buffered']
    #allocation14 [shape = 'u8[65536]{0}', space=vmem, size = 0x10000, scoped, tag = 'input window, operand 7, single buffered']
    #allocation15 [shape = 's32[1]{0}', space=sflag, size = 0x4, scoped, tag = 'scoped memory for _lambda_.1']
    #allocation16 [shape = 'u8[65536]{0}', space=vmem, size = 0x10000, scoped, tag = 'input window, operand 8, single buffered']
    #allocation17 [shape = 'u8[512]{0}', space=vmem, size = 0x400, scoped, tag = 'input window, operand 9, single buffered']
    #allocation18 [shape = 's32[1]{0}', space=sflag, size = 0x4, scoped, tag = 'scoped memory for _lambda_.1']
    #allocation19 [shape = 'u8[524288]{0}', space=vmem, size = 0x80000, scoped, tag = 'input window, operand 10']
    #allocation20 [shape = 'u8[16384]{0}', space=vmem, size = 0x4000, scoped, tag = 'input window, operand 11']
    #allocation21 [shape = 'u8[16384]{0}', space=vmem, size = 0x4000, scoped, tag = 'input window, operand 12']
    %20 = vsyncpa [#allocation7], 0
    %21 = vsyncpa [#allocation9], 0
    %22 = vsyncpa [#allocation12], 0
    %23 = vsyncpa [#allocation15], 0
    %24 = vsyncpa [#allocation18], 0
    loop: start=0, step=1, limit=4
    $region2: #{_lambda_.1} parent=1 // loop_pre_header
      _
    $region3: #{_lambda_.1} parent=1 // loop_header
      %s26 = sphi 0, %s30
      %p27 = scmp.ge.s32.totalorder %s26, 4
      %s34 = sphi 0, %s34
      %s36 = sphi 0, %s34
      %s37 = sphi 0, %s36
      %s51 = sphi 0, %s37
      %s55 = sphi 0, %s55
      %s57 = sphi 0, %s55
      %s58 = sphi 0, %s57
      %s72 = sphi 0, %s58
      %s76 = sphi 0, %s76
      %s78 = sphi 0, %s76
      %s79 = sphi 0, %s78
      %s93 = sphi 0, %s79
      %s97 = sphi 0, %s97
      %s99 = sphi 0, %s97
      %s100 = sphi 0, %s99
      %s114 = sphi 0, %s100
      %s118 = sphi 0, %s118
      %s120 = sphi 0, %s118
      %s121 = sphi 0, %s120
      %s135 = sphi 0, %s121
      %s139 = sphi 0, %s139
      %s141 = sphi 0, %s139
      %s142 = sphi 0, %s141
      %s156 = sphi 0, %s142
      %s160 = sphi 0, %s160
      %s162 = sphi 0, %s160
      %s163 = sphi 0, %s162
      %s177 = sphi 0, %s163
      %s181 = sphi 0, %s181
      %s183 = sphi 0, %s181
      %s184 = sphi 0, %s183
      %s198 = sphi 0, %s184
      %s202 = sphi 0, %s202
      %s204 = sphi 0, %s202
      %s205 = sphi 0, %s204
      %s219 = sphi 0, %s205
      %s223 = sphi 0, %s223
      %s225 = sphi 0, %s223
      %s226 = sphi 0, %s225
      %s240 = sphi 0, %s226
      %s246 = sphi 0, %s248
      %s249 = sphi 0, %s246
      %s250 = sphi 0, %s249
      %s266 = sphi 0, %s250
      %s272 = sphi 0, %s274
      %s275 = sphi 0, %s272
      %s276 = sphi 0, %s275
      %s292 = sphi 0, %s276
      %s298 = sphi 0, %s300
      %s301 = sphi 0, %s298
      %s302 = sphi 0, %s301
      %s318 = sphi 0, %s302
      %s322 = sphi 0, %s322
      %s324 = sphi 0, %s322
      %s325 = sphi 0, %s324
      %s339 = sphi 0, %s325
      %s343 = sphi 0, %s343
      %s345 = sphi 0, %s343
      %s346 = sphi 0, %s345
      %s360 = sphi 0, %s346
    $region4: #{_lambda_.1} parent=1 // loop_header_branch
      %29 = sbr.rel (%p27) target = $region8
    $region5: #{_lambda_.1} parent=1 // loop_body
      %s31 = ssub.s32 %s26, 1
      %s32 = ssub.s32 %s26, 2
      %s33 = sadd.s32 %s26, 1
      %s35 = sadd.s32 %s34, 1
      %p38 = scmp.eq.s32.totalorder %s26, 1
      %p39 = scmp.ne.s32.totalorder %s34, %s36
      %p40 = scmp.eq.s32.totalorder %s26, 0
      %p41 = por %p39, %p40
      %p42 = scmp.ne.s32.totalorder %s34, %s36
      %p43 = scmp.eq.s32.totalorder %s31, 1
      %p44 = por %p42, %p43
      %p45 = scmp.ne.s32.totalorder %s36, %s37
      %p46 = scmp.eq.s32.totalorder %s31, 0
      %p47 = por %p45, %p46
      %p48 = scmp.ne.s32.totalorder %s36, %s37
      %p49 = scmp.eq.s32.totalorder %s32, 1
      %p50 = por %p48, %p49
      %p52 = scmp.ne.s32.totalorder %s37, %s51
      %p53 = scmp.eq.s32.totalorder %s32, 0
      %p54 = por %p52, %p53
      %s56 = sadd.s32 %s55, 1
      %p59 = scmp.eq.s32.totalorder %s26, 1
      %p60 = scmp.ne.s32.totalorder %s55, %s57
      %p61 = scmp.eq.s32.totalorder %s26, 0
      %p62 = por %p60, %p61
      %p63 = scmp.ne.s32.totalorder %s55, %s57
      %p64 = scmp.eq.s32.totalorder %s31, 1
      %p65 = por %p63, %p64
      %p66 = scmp.ne.s32.totalorder %s57, %s58
      %p67 = scmp.eq.s32.totalorder %s31, 0
      %p68 = por %p66, %p67
      %p69 = scmp.ne.s32.totalorder %s57, %s58
      %p70 = scmp.eq.s32.totalorder %s32, 1
      %p71 = por %p69, %p70
      %p73 = scmp.ne.s32.totalorder %s58, %s72
      %p74 = scmp.eq.s32.totalorder %s32, 0
      %p75 = por %p73, %p74
      %s77 = sadd.s32 %s76, 1
      %p80 = scmp.eq.s32.totalorder %s26, 1
      %p81 = scmp.ne.s32.totalorder %s76, %s78
      %p82 = scmp.eq.s32.totalorder %s26, 0
      %p83 = por %p81, %p82
      %p84 = scmp.ne.s32.totalorder %s76, %s78
      %p85 = scmp.eq.s32.totalorder %s31, 1
      %p86 = por %p84, %p85
      %p87 = scmp.ne.s32.totalorder %s78, %s79
      %p88 = scmp.eq.s32.totalorder %s31, 0
      %p89 = por %p87, %p88
      %p90 = scmp.ne.s32.totalorder %s78, %s79
      %p91 = scmp.eq.s32.totalorder %s32, 1
      %p92 = por %p90, %p91
      %p94 = scmp.ne.s32.totalorder %s79, %s93
      %p95 = scmp.eq.s32.totalorder %s32, 0
      %p96 = por %p94, %p95
      %s98 = sadd.s32 %s97, 1
      %p101 = scmp.eq.s32.totalorder %s26, 1
      %p102 = scmp.ne.s32.totalorder %s97, %s99
      %p103 = scmp.eq.s32.totalorder %s26, 0
      %p104 = por %p102, %p103
      %p105 = scmp.ne.s32.totalorder %s97, %s99
      %p106 = scmp.eq.s32.totalorder %s31, 1
      %p107 = por %p105, %p106
      %p108 = scmp.ne.s32.totalorder %s99, %s100
      %p109 = scmp.eq.s32.totalorder %s31, 0
      %p110 = por %p108, %p109
      %p111 = scmp.ne.s32.totalorder %s99, %s100
      %p112 = scmp.eq.s32.totalorder %s32, 1
      %p113 = por %p111, %p112
      %p115 = scmp.ne.s32.totalorder %s100, %s114
      %p116 = scmp.eq.s32.totalorder %s32, 0
      %p117 = por %p115, %p116
      %s119 = sadd.s32 %s118, 1
      %p122 = scmp.eq.s32.totalorder %s26, 1
      %p123 = scmp.ne.s32.totalorder %s118, %s120
      %p124 = scmp.eq.s32.totalorder %s26, 0
      %p125 = por %p123, %p124
      %p126 = scmp.ne.s32.totalorder %s118, %s120
      %p127 = scmp.eq.s32.totalorder %s31, 1
      %p128 = por %p126, %p127
      %p129 = scmp.ne.s32.totalorder %s120, %s121
      %p130 = scmp.eq.s32.totalorder %s31, 0
      %p131 = por %p129, %p130
      %p132 = scmp.ne.s32.totalorder %s120, %s121
      %p133 = scmp.eq.s32.totalorder %s32, 1
      %p134 = por %p132, %p133
      %p136 = scmp.ne.s32.totalorder %s121, %s135
      %p137 = scmp.eq.s32.totalorder %s32, 0
      %p138 = por %p136, %p137
      %s140 = sadd.s32 %s139, 1
      %p143 = scmp.eq.s32.totalorder %s26, 1
      %p144 = scmp.ne.s32.totalorder %s139, %s141
      %p145 = scmp.eq.s32.totalorder %s26, 0
      %p146 = por %p144, %p145
      %p147 = scmp.ne.s32.totalorder %s139, %s141
      %p148 = scmp.eq.s32.totalorder %s31, 1
      %p149 = por %p147, %p148
      %p150 = scmp.ne.s32.totalorder %s141, %s142
      %p151 = scmp.eq.s32.totalorder %s31, 0
      %p152 = por %p150, %p151
      %p153 = scmp.ne.s32.totalorder %s141, %s142
      %p154 = scmp.eq.s32.totalorder %s32, 1
      %p155 = por %p153, %p154
      %p157 = scmp.ne.s32.totalorder %s142, %s156
      %p158 = scmp.eq.s32.totalorder %s32, 0
      %p159 = por %p157, %p158
      %s161 = sadd.s32 %s160, 1
      %p164 = scmp.eq.s32.totalorder %s26, 1
      %p165 = scmp.ne.s32.totalorder %s160, %s162
      %p166 = scmp.eq.s32.totalorder %s26, 0
      %p167 = por %p165, %p166
      %p168 = scmp.ne.s32.totalorder %s160, %s162
      %p169 = scmp.eq.s32.totalorder %s31, 1
      %p170 = por %p168, %p169
      %p171 = scmp.ne.s32.totalorder %s162, %s163
      %p172 = scmp.eq.s32.totalorder %s31, 0
      %p173 = por %p171, %p172
      %p174 = scmp.ne.s32.totalorder %s162, %s163
      %p175 = scmp.eq.s32.totalorder %s32, 1
      %p176 = por %p174, %p175
      %p178 = scmp.ne.s32.totalorder %s163, %s177
      %p179 = scmp.eq.s32.totalorder %s32, 0
      %p180 = por %p178, %p179
      %s182 = sadd.s32 %s181, 1
      %p185 = scmp.eq.s32.totalorder %s26, 1
      %p186 = scmp.ne.s32.totalorder %s181, %s183
      %p187 = scmp.eq.s32.totalorder %s26, 0
      %p188 = por %p186, %p187
      %p189 = scmp.ne.s32.totalorder %s181, %s183
      %p190 = scmp.eq.s32.totalorder %s31, 1
      %p191 = por %p189, %p190
      %p192 = scmp.ne.s32.totalorder %s183, %s184
      %p193 = scmp.eq.s32.totalorder %s31, 0
      %p194 = por %p192, %p193
      %p195 = scmp.ne.s32.totalorder %s183, %s184
      %p196 = scmp.eq.s32.totalorder %s32, 1
      %p197 = por %p195, %p196
      %p199 = scmp.ne.s32.totalorder %s184, %s198
      %p200 = scmp.eq.s32.totalorder %s32, 0
      %p201 = por %p199, %p200
      %s203 = sadd.s32 %s202, 1
      %p206 = scmp.eq.s32.totalorder %s26, 1
      %p207 = scmp.ne.s32.totalorder %s202, %s204
      %p208 = scmp.eq.s32.totalorder %s26, 0
      %p209 = por %p207, %p208
      %p210 = scmp.ne.s32.totalorder %s202, %s204
      %p211 = scmp.eq.s32.totalorder %s31, 1
      %p212 = por %p210, %p211
      %p213 = scmp.ne.s32.totalorder %s204, %s205
      %p214 = scmp.eq.s32.totalorder %s31, 0
      %p215 = por %p213, %p214
      %p216 = scmp.ne.s32.totalorder %s204, %s205
      %p217 = scmp.eq.s32.totalorder %s32, 1
      %p218 = por %p216, %p217
      %p220 = scmp.ne.s32.totalorder %s205, %s219
      %p221 = scmp.eq.s32.totalorder %s32, 0
      %p222 = por %p220, %p221
      %s224 = sadd.s32 %s223, 1
      %p227 = scmp.eq.s32.totalorder %s26, 1
      %p228 = scmp.ne.s32.totalorder %s223, %s225
      %p229 = scmp.eq.s32.totalorder %s26, 0
      %p230 = por %p228, %p229
      %p231 = scmp.ne.s32.totalorder %s223, %s225
      %p232 = scmp.eq.s32.totalorder %s31, 1
      %p233 = por %p231, %p232
      %p234 = scmp.ne.s32.totalorder %s225, %s226
      %p235 = scmp.eq.s32.totalorder %s31, 0
      %p236 = por %p234, %p235
      %p237 = scmp.ne.s32.totalorder %s225, %s226
      %p238 = scmp.eq.s32.totalorder %s32, 1
      %p239 = por %p237, %p238
      %p241 = scmp.ne.s32.totalorder %s226, %s240
      %p242 = scmp.eq.s32.totalorder %s32, 0
      %p243 = por %p241, %p242
      %s244 = ssub.s32 %s26, %s33
      %p245 = scmp.eq.s32.totalorder %s244, 0
      %s247 = sadd.s32 %s246, 1
      %s248 = scalar_select %p245, %s246, %s247
      %p251 = pneg %p245
      %p252 = scmp.eq.s32.totalorder %s26, 1
      %p253 = por %p251, %p252
      %p254 = scmp.ne.s32.totalorder %s246, %s249
      %p255 = scmp.eq.s32.totalorder %s26, 0
      %p256 = por %p254, %p255
      %p257 = scmp.ne.s32.totalorder %s246, %s249
      %p258 = scmp.eq.s32.totalorder %s31, 1
      %p259 = por %p257, %p258
      %p260 = scmp.ne.s32.totalorder %s249, %s250
      %p261 = scmp.eq.s32.totalorder %s31, 0
      %p262 = por %p260, %p261
      %p263 = scmp.ne.s32.totalorder %s249, %s250
      %p264 = scmp.eq.s32.totalorder %s32, 1
      %p265 = por %p263, %p264
      %p267 = scmp.ne.s32.totalorder %s250, %s266
      %p268 = scmp.eq.s32.totalorder %s32, 0
      %p269 = por %p267, %p268
      %s270 = ssub.s32 %s26, %s33
      %p271 = scmp.eq.s32.totalorder %s270, 0
      %s273 = sadd.s32 %s272, 1
      %s274 = scalar_select %p271, %s272, %s273
      %p277 = pneg %p271
      %p278 = scmp.eq.s32.totalorder %s26, 1
      %p279 = por %p277, %p278
      %p280 = scmp.ne.s32.totalorder %s272, %s275
      %p281 = scmp.eq.s32.totalorder %s26, 0
      %p282 = por %p280, %p281
      %p283 = scmp.ne.s32.totalorder %s272, %s275
      %p284 = scmp.eq.s32.totalorder %s31, 1
      %p285 = por %p283, %p284
      %p286 = scmp.ne.s32.totalorder %s275, %s276
      %p287 = scmp.eq.s32.totalorder %s31, 0
      %p288 = por %p286, %p287
      %p289 = scmp.ne.s32.totalorder %s275, %s276
      %p290 = scmp.eq.s32.totalorder %s32, 1
      %p291 = por %p289, %p290
      %p293 = scmp.ne.s32.totalorder %s276, %s292
      %p294 = scmp.eq.s32.totalorder %s32, 0
      %p295 = por %p293, %p294
      %s296 = ssub.s32 %s26, %s33
      %p297 = scmp.eq.s32.totalorder %s296, 0
      %s299 = sadd.s32 %s298, 1
      %s300 = scalar_select %p297, %s298, %s299
      %p303 = pneg %p297
      %p304 = scmp.eq.s32.totalorder %s26, 1
      %p305 = por %p303, %p304
      %p306 = scmp.ne.s32.totalorder %s298, %s301
      %p307 = scmp.eq.s32.totalorder %s26, 0
      %p308 = por %p306, %p307
      %p309 = scmp.ne.s32.totalorder %s298, %s301
      %p310 = scmp.eq.s32.totalorder %s31, 1
      %p311 = por %p309, %p310
      %p312 = scmp.ne.s32.totalorder %s301, %s302
      %p313 = scmp.eq.s32.totalorder %s31, 0
      %p314 = por %p312, %p313
      %p315 = scmp.ne.s32.totalorder %s301, %s302
      %p316 = scmp.eq.s32.totalorder %s32, 1
      %p317 = por %p315, %p316
      %p319 = scmp.ne.s32.totalorder %s302, %s318
      %p320 = scmp.eq.s32.totalorder %s32, 0
      %p321 = por %p319, %p320
      %s323 = sadd.s32 %s322, 1
      %p326 = scmp.eq.s32.totalorder %s26, 1
      %p327 = scmp.ne.s32.totalorder %s322, %s324
      %p328 = scmp.eq.s32.totalorder %s26, 0
      %p329 = por %p327, %p328
      %p330 = scmp.ne.s32.totalorder %s322, %s324
      %p331 = scmp.eq.s32.totalorder %s31, 1
      %p332 = por %p330, %p331
      %p333 = scmp.ne.s32.totalorder %s324, %s325
      %p334 = scmp.eq.s32.totalorder %s31, 0
      %p335 = por %p333, %p334
      %p336 = scmp.ne.s32.totalorder %s324, %s325
      %p337 = scmp.eq.s32.totalorder %s32, 1
      %p338 = por %p336, %p337
      %p340 = scmp.ne.s32.totalorder %s325, %s339
      %p341 = scmp.eq.s32.totalorder %s32, 0
      %p342 = por %p340, %p341
      %s344 = sadd.s32 %s343, 1
      %p347 = scmp.eq.s32.totalorder %s26, 1
      %p348 = scmp.ne.s32.totalorder %s343, %s345
      %p349 = scmp.eq.s32.totalorder %s26, 0
      %p350 = por %p348, %p349
      %p351 = scmp.ne.s32.totalorder %s343, %s345
      %p352 = scmp.eq.s32.totalorder %s31, 1
      %p353 = por %p351, %p352
      %p354 = scmp.ne.s32.totalorder %s345, %s346
      %p355 = scmp.eq.s32.totalorder %s31, 0
      %p356 = por %p354, %p355
      %p357 = scmp.ne.s32.totalorder %s345, %s346
      %p358 = scmp.eq.s32.totalorder %s32, 1
      %p359 = por %p357, %p358
      %p361 = scmp.ne.s32.totalorder %s346, %s360
      %p362 = scmp.eq.s32.totalorder %s32, 0
      %p363 = por %p361, %p362
      %p364 = scmp.le.s32.totalorder 1, %s26
      %p365 = scmp.lt.s32.totalorder %s26, 3
      %p366 = pnand %p364, %p365
      %p367 = pneg %p366
      // Predicated region
      $region9: #{_lambda_.1} parent=5 // pred_check
        _
      $region10: #{_lambda_.1} parent=5 // pred_check_branch
        %369 = sbr.rel (%p366) target = $region12
      $region11: #{_lambda_.1} parent=5 // pred_region
        %s370 = ssub.s32 %s26, 1
        // Predicated region
        $region13: #{_lambda_.1} parent=11 // pred_check
          %p371 = pneg %p47
        $region14: #{_lambda_.1} parent=11 // pred_check_branch
          %373 = sbr.rel (%p371) target = $region16
        $region15: #{_lambda_.1} parent=11 // pred_region
          _
        $region16: #{_lambda_.1} parent=11 // pred_fallthru
          _
        // Predicated region
        $region17: #{_lambda_.1} parent=11 // pred_check
          %p374 = pneg %p68
        $region18: #{_lambda_.1} parent=11 // pred_check_branch
          %376 = sbr.rel (%p374) target = $region20
        $region19: #{_lambda_.1} parent=11 // pred_region
          _
        $region20: #{_lambda_.1} parent=11 // pred_fallthru
          _
        // Predicated region
        $region21: #{_lambda_.1} parent=11 // pred_check
          %p377 = pneg %p89
        $region22: #{_lambda_.1} parent=11 // pred_check_branch
          %379 = sbr.rel (%p377) target = $region24
        $region23: #{_lambda_.1} parent=11 // pred_region
          %s381 = ssub.s32 1024, 1024
          %382 = vsyncadd [#allocation7], %s381
          %s383 = sshll.u32 [#allocation6], 4
          %s384 = int_to_ptr.vmem [resolvable:$true] %s383
          %389 = dma.hbm_to_vmem [thread:$0]  %s2, 1024, %s384, [#allocation7], 128, 128, 8
        $region24: #{_lambda_.1} parent=11 // pred_fallthru
          _
        // Predicated region
        $region25: #{_lambda_.1} parent=11 // pred_check
          %p390 = pneg %p110
        $region26: #{_lambda_.1} parent=11 // pred_check_branch
          %392 = sbr.rel (%p390) target = $region28
        $region27: #{_lambda_.1} parent=11 // pred_region
          %s394 = ssub.s32 6144, 6144
          %395 = vsyncadd [#allocation9], %s394
          %s396 = sshll.u32 [#allocation8], 4
          %s397 = int_to_ptr.vmem [resolvable:$true] %s396
          %402 = dma.hbm_to_vmem [thread:$0]  %s3, 6144, %s397, [#allocation9], 384, 384, 24
        $region28: #{_lambda_.1} parent=11 // pred_fallthru
          _
        // Predicated region
        $region29: #{_lambda_.1} parent=11 // pred_check
          %p403 = pneg %p131
        $region30: #{_lambda_.1} parent=11 // pred_check_branch
          %405 = sbr.rel (%p403) target = $region32
        $region31: #{_lambda_.1} parent=11 // pred_region
          %s407 = ssub.s32 6144, 6144
          %408 = vsyncadd [#allocation9], %s407
          %s409 = sshll.u32 [#allocation10], 4
          %s410 = int_to_ptr.vmem [resolvable:$true] %s409
          %415 = dma.hbm_to_vmem [thread:$0]  %s4, 6144, %s410, [#allocation9], 384, 384, 24
        $region32: #{_lambda_.1} parent=11 // pred_fallthru
          _
        // Predicated region
        $region33: #{_lambda_.1} parent=11 // pred_check
          %p416 = pneg %p152
        $region34: #{_lambda_.1} parent=11 // pred_check_branch
          %418 = sbr.rel (%p416) target = $region36
        $region35: #{_lambda_.1} parent=11 // pred_region
          %s420 = ssub.s32 48, 48
          %421 = vsyncadd [#allocation12], %s420
          %s423 = sshll.u32 [#allocation11], 4
          %s424 = int_to_ptr.vmem [resolvable:$true] %s423
          %426 = dma.hbm_to_vmem [thread:$0]  %s5, 48, %s424, [#allocation12]
        $region36: #{_lambda_.1} parent=11 // pred_fallthru
          _
        // Predicated region
        $region37: #{_lambda_.1} parent=11 // pred_check
          %p427 = pneg %p173
        $region38: #{_lambda_.1} parent=11 // pred_check_branch
          %429 = sbr.rel (%p427) target = $region40
        $region39: #{_lambda_.1} parent=11 // pred_region
          %s431 = ssub.s32 48, 48
          %432 = vsyncadd [#allocation12], %s431
          %s434 = sshll.u32 [#allocation13], 4
          %s435 = int_to_ptr.vmem [resolvable:$true] %s434
          %437 = dma.hbm_to_vmem [thread:$0]  %s6, 48, %s435, [#allocation12]
        $region40: #{_lambda_.1} parent=11 // pred_fallthru
          _
        // Predicated region
        $region41: #{_lambda_.1} parent=11 // pred_check
          %p438 = pneg %p194
        $region42: #{_lambda_.1} parent=11 // pred_check_branch
          %440 = sbr.rel (%p438) target = $region44
        $region43: #{_lambda_.1} parent=11 // pred_region
          %s442 = ssub.s32 2048, 2048
          %443 = vsyncadd [#allocation15], %s442
          %s444 = sshll.u32 [#allocation14], 4
          %s445 = int_to_ptr.vmem [resolvable:$true] %s444
          %450 = dma.hbm_to_vmem [thread:$0]  %s7, 2048, %s445, [#allocation15], 128, 128, 8
        $region44: #{_lambda_.1} parent=11 // pred_fallthru
          _
        // Predicated region
        $region45: #{_lambda_.1} parent=11 // pred_check
          %p451 = pneg %p215
        $region46: #{_lambda_.1} parent=11 // pred_check_branch
          %453 = sbr.rel (%p451) target = $region48
        $region47: #{_lambda_.1} parent=11 // pred_region
          %s455 = ssub.s32 2048, 2048
          %456 = vsyncadd [#allocation15], %s455
          %s457 = sshll.u32 [#allocation16], 4
          %s458 = int_to_ptr.vmem [resolvable:$true] %s457
          %463 = dma.hbm_to_vmem [thread:$0]  %s8, 2048, %s458, [#allocation15], 128, 128, 8
        $region48: #{_lambda_.1} parent=11 // pred_fallthru
          _
        // Predicated region
        $region49: #{_lambda_.1} parent=11 // pred_check
          %p464 = pneg %p236
        $region50: #{_lambda_.1} parent=11 // pred_check_branch
          %466 = sbr.rel (%p464) target = $region52
        $region51: #{_lambda_.1} parent=11 // pred_region
          %s468 = ssub.s32 16, 16
          %469 = vsyncadd [#allocation18], %s468
          %s471 = sshll.u32 [#allocation17], 4
          %s472 = int_to_ptr.vmem [resolvable:$true] %s471
          %474 = dma.hbm_to_vmem [thread:$0]  %s9, 16, %s472, [#allocation18]
        $region52: #{_lambda_.1} parent=11 // pred_fallthru
          _
      $region12: #{_lambda_.1} parent=5 // pred_fallthru
        _
      %p475 = scmp.lt.s32.totalorder %s26, 2
      // Predicated region
      $region53: #{_lambda_.1} parent=5 // pred_check
        %p476 = pneg %p475
      $region54: #{_lambda_.1} parent=5 // pred_check_branch
        %478 = sbr.rel (%p476) target = $region56
      $region55: #{_lambda_.1} parent=5 // pred_region
        // Predicated region
        $region57: #{_lambda_.1} parent=55 // pred_check
          %p479 = pneg %p256
        $region58: #{_lambda_.1} parent=55 // pred_check_branch
          %481 = sbr.rel (%p479) target = $region60
        $region59: #{_lambda_.1} parent=55 // pred_region
          %s482 = sand.u32 %s26, 1
          %s483 = scalar_lea.sflag [#allocation7], %s482
          %s484 = sand.u32 %s246, 1
          %s485 = smul.addr %s484, 512
          %s486 = scalar_lea.vmem [#allocation19], %s485
          %s487 = smul.u32 16, %s26
          %s489 = ssub.s32 8192, 8192
          %490 = vsyncadd %s483, %s489
          %s491 = smul.addr %s487, 128
          %s492 = scalar_lea.hbm %s10, %s491
          %s493 = sshll.u32 %s486, 4
          %s494 = int_to_ptr.vmem [resolvable:$true] %s493
          %499 = dma.hbm_to_vmem [thread:$0]  %s492, 8192, %s494, %s483, 4096, 2048, 128
        $region60: #{_lambda_.1} parent=55 // pred_fallthru
          _
        // Predicated region
        $region61: #{_lambda_.1} parent=55 // pred_check
          %p500 = pneg %p282
        $region62: #{_lambda_.1} parent=55 // pred_check_branch
          %502 = sbr.rel (%p500) target = $region64
        $region63: #{_lambda_.1} parent=55 // pred_region
          %s503 = sand.u32 %s26, 1
          %s504 = scalar_lea.sflag [#allocation7], %s503
          %s505 = sand.u32 %s272, 1
          %s506 = smul.addr %s505, 16
          %s507 = scalar_lea.vmem [#allocation20], %s506
          %s508 = smul.u32 16, %s26
          %s510 = ssub.s32 256, 256
          %511 = vsyncadd %s504, %s510
          %s512 = smul.addr %s508, 16
          %s513 = scalar_lea.hbm %s11, %s512
          %s515 = sshll.u32 %s507, 4
          %s516 = int_to_ptr.vmem [resolvable:$true] %s515
          %518 = dma.hbm_to_vmem [thread:$0]  %s513, 256, %s516, %s504
        $region64: #{_lambda_.1} parent=55 // pred_fallthru
          _
        // Predicated region
        $region65: #{_lambda_.1} parent=55 // pred_check
          %p519 = pneg %p308
        $region66: #{_lambda_.1} parent=55 // pred_check_branch
          %521 = sbr.rel (%p519) target = $region68
        $region67: #{_lambda_.1} parent=55 // pred_region
          %s522 = sand.u32 %s26, 1
          %s523 = scalar_lea.sflag [#allocation7], %s522
          %s524 = sand.u32 %s298, 1
          %s525 = smul.addr %s524, 16
          %s526 = scalar_lea.vmem [#allocation21], %s525
          %s527 = smul.u32 16, %s26
          %s529 = ssub.s32 256, 256
          %530 = vsyncadd %s523, %s529
          %s531 = smul.addr %s527, 16
          %s532 = scalar_lea.hbm %s12, %s531
          %s534 = sshll.u32 %s526, 4
          %s535 = int_to_ptr.vmem [resolvable:$true] %s534
          %537 = dma.hbm_to_vmem [thread:$0]  %s532, 256, %s535, %s523
        $region68: #{_lambda_.1} parent=55 // pred_fallthru
          _
      $region56: #{_lambda_.1} parent=5 // pred_fallthru
        _
      %p538 = scmp.le.s32.totalorder 1, %s26
      %p539 = scmp.lt.s32.totalorder %s26, 3
      %p540 = pnand %p538, %p539
      %p541 = pneg %p540
      // Predicated region
      $region69: #{_lambda_.1} parent=5 // pred_check
        _
      $region70: #{_lambda_.1} parent=5 // pred_check_branch
        %543 = sbr.rel (%p540) target = $region72
      $region71: #{_lambda_.1} parent=5 // pred_region
        %s544 = ssub.s32 %s26, 1
        // Predicated region
        $region73: #{_lambda_.1} parent=71 // pred_check
          %p545 = pneg %p89
        $region74: #{_lambda_.1} parent=71 // pred_check_branch
          %547 = sbr.rel (%p545) target = $region76
        $region75: #{_lambda_.1} parent=71 // pred_region
          %548 = dma.done [#allocation7], 1024
        $region76: #{_lambda_.1} parent=71 // pred_fallthru
          _
        // Predicated region
        $region77: #{_lambda_.1} parent=71 // pred_check
          %p549 = pneg %p110
        $region78: #{_lambda_.1} parent=71 // pred_check_branch
          %551 = sbr.rel (%p549) target = $region80
        $region79: #{_lambda_.1} parent=71 // pred_region
          %552 = dma.done [#allocation9], 6144
        $region80: #{_lambda_.1} parent=71 // pred_fallthru
          _
        // Predicated region
        $region81: #{_lambda_.1} parent=71 // pred_check
          %p553 = pneg %p131
        $region82: #{_lambda_.1} parent=71 // pred_check_branch
          %555 = sbr.rel (%p553) target = $region84
        $region83: #{_lambda_.1} parent=71 // pred_region
          %556 = dma.done [#allocation9], 6144
        $region84: #{_lambda_.1} parent=71 // pred_fallthru
          _
        // Predicated region
        $region85: #{_lambda_.1} parent=71 // pred_check
          %p557 = pneg %p152
        $region86: #{_lambda_.1} parent=71 // pred_check_branch
          %559 = sbr.rel (%p557) target = $region88
        $region87: #{_lambda_.1} parent=71 // pred_region
          %560 = dma.done [#allocation12], 48
        $region88: #{_lambda_.1} parent=71 // pred_fallthru
          _
        // Predicated region
        $region89: #{_lambda_.1} parent=71 // pred_check
          %p561 = pneg %p173
        $region90: #{_lambda_.1} parent=71 // pred_check_branch
          %563 = sbr.rel (%p561) target = $region92
        $region91: #{_lambda_.1} parent=71 // pred_region
          %564 = dma.done [#allocation12], 48
        $region92: #{_lambda_.1} parent=71 // pred_fallthru
          _
        // Predicated region
        $region93: #{_lambda_.1} parent=71 // pred_check
          %p565 = pneg %p194
        $region94: #{_lambda_.1} parent=71 // pred_check_branch
          %567 = sbr.rel (%p565) target = $region96
        $region95: #{_lambda_.1} parent=71 // pred_region
          %568 = dma.done [#allocation15], 2048
        $region96: #{_lambda_.1} parent=71 // pred_fallthru
          _
        // Predicated region
        $region97: #{_lambda_.1} parent=71 // pred_check
          %p569 = pneg %p215
        $region98: #{_lambda_.1} parent=71 // pred_check_branch
          %571 = sbr.rel (%p569) target = $region100
        $region99: #{_lambda_.1} parent=71 // pred_region
          %572 = dma.done [#allocation15], 2048
        $region100: #{_lambda_.1} parent=71 // pred_fallthru
          _
        // Predicated region
        $region101: #{_lambda_.1} parent=71 // pred_check
          %p573 = pneg %p236
        $region102: #{_lambda_.1} parent=71 // pred_check_branch
          %575 = sbr.rel (%p573) target = $region104
        $region103: #{_lambda_.1} parent=71 // pred_region
          %576 = dma.done [#allocation18], 16
        $region104: #{_lambda_.1} parent=71 // pred_fallthru
          _
        %s577 = sand.u32 %s31, 1
        %s578 = scalar_lea.sflag [#allocation7], %s577
        %s579 = sand.u32 %s249, 1
        %s580 = smul.addr %s579, 512
        %s581 = scalar_lea.vmem [#allocation19], %s580
        // Predicated region
        $region105: #{_lambda_.1} parent=71 // pred_check
          %p582 = pneg %p262
        $region106: #{_lambda_.1} parent=71 // pred_check_branch
          %584 = sbr.rel (%p582) target = $region108
        $region107: #{_lambda_.1} parent=71 // pred_region
          %585 = dma.done %s578, 8192
        $region108: #{_lambda_.1} parent=71 // pred_fallthru
          _
        %s586 = sand.u32 %s31, 1
        %s587 = scalar_lea.sflag [#allocation7], %s586
        %s588 = sand.u32 %s275, 1
        %s589 = smul.addr %s588, 16
        %s590 = scalar_lea.vmem [#allocation20], %s589
        // Predicated region
        $region109: #{_lambda_.1} parent=71 // pred_check
          %p591 = pneg %p288
        $region110: #{_lambda_.1} parent=71 // pred_check_branch
          %593 = sbr.rel (%p591) target = $region112
        $region111: #{_lambda_.1} parent=71 // pred_region
          %594 = dma.done %s587, 256
        $region112: #{_lambda_.1} parent=71 // pred_fallthru
          _
        %s595 = sand.u32 %s31, 1
        %s596 = scalar_lea.sflag [#allocation7], %s595
        %s597 = sand.u32 %s301, 1
        %s598 = smul.addr %s597, 16
        %s599 = scalar_lea.vmem [#allocation21], %s598
        // Predicated region
        $region113: #{_lambda_.1} parent=71 // pred_check
          %p600 = pneg %p314
        $region114: #{_lambda_.1} parent=71 // pred_check_branch
          %602 = sbr.rel (%p600) target = $region116
        $region115: #{_lambda_.1} parent=71 // pred_region
          %603 = dma.done %s596, 256
        $region116: #{_lambda_.1} parent=71 // pred_fallthru
          _
        %p604 = pneg %p47
        %p605 = pneg %p44
        %p606 = pneg %p68
        %p607 = pneg %p65
        %p608 = pneg %p89
        %p609 = pneg %p86
        %p610 = pneg %p110
        %p611 = pneg %p107
        %p612 = pneg %p131
        %p613 = pneg %p128
        %p614 = pneg %p152
        %p615 = pneg %p149
        %p616 = pneg %p173
        %p617 = pneg %p170
        %p618 = pneg %p194
        %p619 = pneg %p191
        %p620 = pneg %p215
        %p621 = pneg %p212
        %p622 = pneg %p236
        %p623 = pneg %p233
        %s624 = sand.u32 %s31, 1
        %s625 = scalar_lea.sflag [#allocation7], %s624
        %s626 = sand.u32 %s249, 1
        %s627 = smul.addr %s626, 512
        %s628 = scalar_lea.vmem [#allocation19], %s627
        %p629 = pneg %p262
        %p630 = pneg %p259
        %s631 = sand.u32 %s31, 1
        %s632 = scalar_lea.sflag [#allocation7], %s631
        %s633 = sand.u32 %s275, 1
        %s634 = smul.addr %s633, 16
        %s635 = scalar_lea.vmem [#allocation20], %s634
        %p636 = pneg %p288
        %p637 = pneg %p285
        %s638 = sand.u32 %s31, 1
        %s639 = scalar_lea.sflag [#allocation7], %s638
        %s640 = sand.u32 %s301, 1
        %s641 = smul.addr %s640, 16
        %s642 = scalar_lea.vmem [#allocation21], %s641
        %p643 = pneg %p314
        %p644 = pneg %p311
        %p645 = pneg %p335
        %p646 = pneg %p332
        %p647 = pneg %p356
        %p648 = pneg %p353
        %s649 = smul.u32 16, %s31
        %s650 = smul.u32 16, %s31
        %s651 = smul.u32 16, %s31
        %p653 = scmp.eq.s32.totalorder %s31, 0
        // Predicated region
        $region117: #{_lambda_.1} parent=71 // pred_check
          %p654 = pneg %p653
        $region118: #{_lambda_.1} parent=71 // pred_check_branch
          %656 = sbr.rel (%p654) target = $region120
        $region119: #{_lambda_.1} parent=71 // pred_region
          %v657 = vld [vmem:[%s0] sm:$0xff]
          %v658 = vld [vmem:[%s1] sm:$0xff]
          %v659 = vld [vmem:[#allocation8] sm:$0xff]
          %v660 = vld [vmem:[#allocation8 + $0x8] sm:$0xff]
          %v661 = vld [vmem:[#allocation8 + $0x10] sm:$0xff]
          %v662 = vld [vmem:[#allocation8 + $0x18] sm:$0xff]
          %v663 = vld [vmem:[#allocation8 + $0x20] sm:$0xff]
          %v664 = vld [vmem:[#allocation8 + $0x28] sm:$0xff]
          %v665 = vld [vmem:[#allocation8 + $0x30] sm:$0xff]
          %v666 = vld [vmem:[#allocation8 + $0x38] sm:$0xff]
          %v667 = vld [vmem:[#allocation8 + $0x40] sm:$0xff]
          %v668 = vld [vmem:[#allocation8 + $0x48] sm:$0xff]
          %v669 = vld [vmem:[#allocation8 + $0x50] sm:$0xff]
          %v670 = vld [vmem:[#allocation8 + $0x58] sm:$0xff]
          %v671 = vld [vmem:[#allocation8 + $0x60] sm:$0xff]
          %v672 = vld [vmem:[#allocation8 + $0x68] sm:$0xff]
          %v673 = vld [vmem:[#allocation8 + $0x70] sm:$0xff]
          %v674 = vld [vmem:[#allocation8 + $0x78] sm:$0xff]
          %v675 = vld [vmem:[#allocation8 + $0x80] sm:$0xff]
          %v676 = vld [vmem:[#allocation8 + $0x88] sm:$0xff]
          %v677 = vld [vmem:[#allocation8 + $0x90] sm:$0xff]
          %v678 = vld [vmem:[#allocation8 + $0x98] sm:$0xff]
          %v679 = vld [vmem:[#allocation8 + $0xa0] sm:$0xff]
          %v680 = vld [vmem:[#allocation8 + $0xa8] sm:$0xff]
          %v681 = vld [vmem:[#allocation8 + $0xb0] sm:$0xff]
          %v682 = vld [vmem:[#allocation8 + $0xb8] sm:$0xff]
          %v683 = vld [vmem:[#allocation8 + $0xc0] sm:$0xff]
          %v684 = vld [vmem:[#allocation8 + $0xc8] sm:$0xff]
          %v685 = vld [vmem:[#allocation8 + $0xd0] sm:$0xff]
          %v686 = vld [vmem:[#allocation8 + $0xd8] sm:$0xff]
          %v687 = vld [vmem:[#allocation8 + $0xe0] sm:$0xff]
          %v688 = vld [vmem:[#allocation8 + $0xe8] sm:$0xff]
          %v689 = vld [vmem:[#allocation8 + $0xf0] sm:$0xff]
          %v690 = vld [vmem:[#allocation8 + $0xf8] sm:$0xff]
          %v691 = vld [vmem:[#allocation8 + $0x100] sm:$0xff]
          %v692 = vld [vmem:[#allocation8 + $0x108] sm:$0xff]
          %v693 = vld [vmem:[#allocation8 + $0x110] sm:$0xff]
          %v694 = vld [vmem:[#allocation8 + $0x118] sm:$0xff]
          %v695 = vld [vmem:[#allocation8 + $0x120] sm:$0xff]
          %v696 = vld [vmem:[#allocation8 + $0x128] sm:$0xff]
          %v697 = vld [vmem:[#allocation8 + $0x130] sm:$0xff]
          %v698 = vld [vmem:[#allocation8 + $0x138] sm:$0xff]
          %v699 = vld [vmem:[#allocation8 + $0x140] sm:$0xff]
          %v700 = vld [vmem:[#allocation8 + $0x148] sm:$0xff]
          %v701 = vld [vmem:[#allocation8 + $0x150] sm:$0xff]
          %v702 = vld [vmem:[#allocation8 + $0x158] sm:$0xff]
          %v703 = vld [vmem:[#allocation8 + $0x160] sm:$0xff]
          %v704 = vld [vmem:[#allocation8 + $0x168] sm:$0xff]
          %v705 = vld [vmem:[#allocation8 + $0x170] sm:$0xff]
          %v706 = vld [vmem:[#allocation8 + $0x178] sm:$0xff]
          %v707 = vld [vmem:[#allocation11] sm:$0x7]
          %v709 = vlaneseq
          %v710 = vshrl.u32 %v709, 7
          %v711 = vsub.s32 0, %v710
          %v712 = vrot.slane %v707, %v711
          %v713 = vlaneseq
          %v714 = vshrl.u32 %v713, 7
          %v715 = vsub.s32 1, %v714
          %v716 = vrot.slane %v707, %v715
          %v717 = vlaneseq
          %v718 = vshrl.u32 %v717, 7
          %v719 = vsub.s32 2, %v718
          %v720 = vrot.slane %v707, %v719
          %724 = vmatprep.subr.mxu0 %v705
          %725 = vmatpush1.msra.mxu0 %v704
          %726 = vmatprep.subr.mxu0 %v702
          %727 = vmatpush1.msra.mxu0 %v701
          %728 = vmatprep.subr.mxu0 %v699
          %729 = vmatpush1.msra.mxu0 %v698
          %730 = vmatprep.subr.mxu0 %v696
          %731 = vmatpush1.msra.mxu0 %v695
          %732 = vmatprep.subr.mxu0 %v693
          %733 = vmatpush1.msra.mxu0 %v692
          %734 = vmatprep.subr.mxu0 %v690
          %735 = vmatpush1.msra.mxu0 %v689
          %736 = vmatprep.subr.mxu0 %v687
          %737 = vmatpush1.msra.mxu0 %v686
          %738 = vmatprep.subr.mxu0 %v684
          %739 = vmatpush1.msra.mxu0 %v683
          %740 = vmatprep.subr.mxu0 %v681
          %741 = vmatpush1.msra.mxu0 %v680
          %742 = vmatprep.subr.mxu0 %v678
          %743 = vmatpush1.msra.mxu0 %v677
          %744 = vmatprep.subr.mxu0 %v675
          %745 = vmatpush1.msra.mxu0 %v674
          %746 = vmatprep.subr.mxu0 %v672
          %747 = vmatpush1.msra.mxu0 %v671
          %748 = vmatprep.subr.mxu0 %v669
          %749 = vmatpush1.msra.mxu0 %v668
          %750 = vmatprep.subr.mxu0 %v666
          %751 = vmatpush1.msra.mxu0 %v665
          %752 = vmatprep.subr.mxu0 %v663
          %753 = vmatpush1.msra.mxu0 %v662
          %754 = vmatprep.subr.mxu0 %v660
          %755 = vmatpush1.msra.mxu0 %v659
          %756 = vmatprep.subr.mxu0 0.0
          %757 = vmatpush2.msra.mxu0 0.0
          %758 = vmatprep.subr.mxu0 0.0
          %759 = vmatpush2.msra.mxu0 0.0
          %760 = vmatprep.subr.mxu0 0.0
          %761 = vmatpush2.msra.mxu0 0.0
          %762 = vmatprep.subr.mxu0 0.0
          %763 = vmatpush2.msra.mxu0 0.0
          %764 = vmatprep.subr.mxu0 0.0
          %765 = vmatpush2.msra.mxu0 0.0
          %766 = vmatprep.subr.mxu0 0.0
          %767 = vmatpush2.msra.mxu0 0.0
          %768 = vmatprep.subr.mxu0 0.0
          %769 = vmatpush2.msra.mxu0 0.0
          %770 = vmatprep.subr.mxu0 0.0
          %771 = vmatpush2.msra.mxu0 0.0
          %772 = vmatprep.subr.mxu0 0.0
          %773 = vmatpush2.msra.mxu0 0.0
          %774 = vmatprep.subr.mxu0 0.0
          %775 = vmatpush2.msra.mxu0 0.0
          %776 = vmatprep.subr.mxu0 0.0
          %777 = vmatpush2.msra.mxu0 0.0
          %778 = vmatprep.subr.mxu0 0.0
          %779 = vmatpush2.msra.mxu0 0.0
          %780 = vmatprep.subr.mxu0 0.0
          %781 = vmatpush2.msra.mxu0 0.0
          %782 = vmatprep.subr.mxu0 0.0
          %783 = vmatpush2.msra.mxu0 0.0
          %784 = vmatprep.subr.mxu0 0.0
          %785 = vmatpush2.msra.mxu0 0.0
          %786 = vmatprep.subr.mxu0 0.0
          %787 = vmatpush2.msra.mxu0 0.0
          %788 = vmatprep.mubr.f32.mxu0 0.0
          %789 = vmatmul.mubr.f32.gmra.mxu0 %v657
          %v790 = vpop.f32.mrf.mxu0
          %v791 = vadd.f32 %v712, %v790
          %v792 = vpop.f32.mrf.mxu0
          %v793 = vadd.f32 %v716, %v792
          %794 = vdwg.mxu0
          %795 = vmatprep.subr.mxu0 0.0
          %796 = vmatpush1.msra.mxu0 %v706
          %797 = vmatprep.subr.mxu0 0.0
          %798 = vmatpush1.msra.mxu0 %v703
          %799 = vmatprep.subr.mxu0 0.0
          %800 = vmatpush1.msra.mxu0 %v700
          %801 = vmatprep.subr.mxu0 0.0
          %802 = vmatpush1.msra.mxu0 %v697
          %803 = vmatprep.subr.mxu0 0.0
          %804 = vmatpush1.msra.mxu0 %v694
          %805 = vmatprep.subr.mxu0 0.0
          %806 = vmatpush1.msra.mxu0 %v691
          %807 = vmatprep.subr.mxu0 0.0
          %808 = vmatpush1.msra.mxu0 %v688
          %809 = vmatprep.subr.mxu0 0.0
          %810 = vmatpush1.msra.mxu0 %v685
          %811 = vmatprep.subr.mxu0 0.0
          %812 = vmatpush1.msra.mxu0 %v682
          %813 = vmatprep.subr.mxu0 0.0
          %814 = vmatpush1.msra.mxu0 %v679
          %815 = vmatprep.subr.mxu0 0.0
          %816 = vmatpush1.msra.mxu0 %v676
          %817 = vmatprep.subr.mxu0 0.0
          %818 = vmatpush1.msra.mxu0 %v673
          %819 = vmatprep.subr.mxu0 0.0
          %820 = vmatpush1.msra.mxu0 %v670
          %821 = vmatprep.subr.mxu0 0.0
          %822 = vmatpush1.msra.mxu0 %v667
          %823 = vmatprep.subr.mxu0 0.0
          %824 = vmatpush1.msra.mxu0 %v664
          %825 = vmatprep.subr.mxu0 0.0
          %826 = vmatpush1.msra.mxu0 %v661
          %827 = vmatprep.subr.mxu0 0.0
          %828 = vmatpush2.msra.mxu0 0.0
          %829 = vmatprep.subr.mxu0 0.0
          %830 = vmatpush2.msra.mxu0 0.0
          %831 = vmatprep.subr.mxu0 0.0
          %832 = vmatpush2.msra.mxu0 0.0
          %833 = vmatprep.subr.mxu0 0.0
          %834 = vmatpush2.msra.mxu0 0.0
          %835 = vmatprep.subr.mxu0 0.0
          %836 = vmatpush2.msra.mxu0 0.0
          %837 = vmatprep.subr.mxu0 0.0
          %838 = vmatpush2.msra.mxu0 0.0
          %839 = vmatprep.subr.mxu0 0.0
          %840 = vmatpush2.msra.mxu0 0.0
          %841 = vmatprep.subr.mxu0 0.0
          %842 = vmatpush2.msra.mxu0 0.0
          %843 = vmatprep.subr.mxu0 0.0
          %844 = vmatpush2.msra.mxu0 0.0
          %845 = vmatprep.subr.mxu0 0.0
          %846 = vmatpush2.msra.mxu0 0.0
          %847 = vmatprep.subr.mxu0 0.0
          %848 = vmatpush2.msra.mxu0 0.0
          %849 = vmatprep.subr.mxu0 0.0
          %850 = vmatpush2.msra.mxu0 0.0
          %851 = vmatprep.subr.mxu0 0.0
          %852 = vmatpush2.msra.mxu0 0.0
          %853 = vmatprep.subr.mxu0 0.0
          %854 = vmatpush2.msra.mxu0 0.0
          %855 = vmatprep.subr.mxu0 0.0
          %856 = vmatpush2.msra.mxu0 0.0
          %857 = vmatprep.subr.mxu0 0.0
          %858 = vmatpush2.msra.mxu0 0.0
          %859 = vmatprep.mubr.f32.mxu0 0.0
          %860 = vmatmul.mubr.f32.gmra.mxu0 %v657
          %v861 = vpop.f32.mrf.mxu0
          %v862 = vadd.f32 %v720, %v861
          %v863 = vpop.f32.mrf.mxu0
          %864 = vdwg.mxu0
          %v865 = vld [vmem:[#allocation10] sm:$0xff]
          %v866 = vld [vmem:[#allocation10 + $0x8] sm:$0xff]
          %v867 = vld [vmem:[#allocation10 + $0x10] sm:$0xff]
          %v868 = vld [vmem:[#allocation10 + $0x18] sm:$0xff]
          %v869 = vld [vmem:[#allocation10 + $0x20] sm:$0xff]
          %v870 = vld [vmem:[#allocation10 + $0x28] sm:$0xff]
          %v871 = vld [vmem:[#allocation10 + $0x30] sm:$0xff]
          %v872 = vld [vmem:[#allocation10 + $0x38] sm:$0xff]
          %v873 = vld [vmem:[#allocation10 + $0x40] sm:$0xff]
          %v874 = vld [vmem:[#allocation10 + $0x48] sm:$0xff]
          %v875 = vld [vmem:[#allocation10 + $0x50] sm:$0xff]
          %v876 = vld [vmem:[#allocation10 + $0x58] sm:$0xff]
          %v877 = vld [vmem:[#allocation10 + $0x60] sm:$0xff]
          %v878 = vld [vmem:[#allocation10 + $0x68] sm:$0xff]
          %v879 = vld [vmem:[#allocation10 + $0x70] sm:$0xff]
          %v880 = vld [vmem:[#allocation10 + $0x78] sm:$0xff]
          %v881 = vld [vmem:[#allocation10 + $0x80] sm:$0xff]
          %v882 = vld [vmem:[#allocation10 + $0x88] sm:$0xff]
          %v883 = vld [vmem:[#allocation10 + $0x90] sm:$0xff]
          %v884 = vld [vmem:[#allocation10 + $0x98] sm:$0xff]
          %v885 = vld [vmem:[#allocation10 + $0xa0] sm:$0xff]
          %v886 = vld [vmem:[#allocation10 + $0xa8] sm:$0xff]
          %v887 = vld [vmem:[#allocation10 + $0xb0] sm:$0xff]
          %v888 = vld [vmem:[#allocation10 + $0xb8] sm:$0xff]
          %v889 = vld [vmem:[#allocation10 + $0xc0] sm:$0xff]
          %v890 = vld [vmem:[#allocation10 + $0xc8] sm:$0xff]
          %v891 = vld [vmem:[#allocation10 + $0xd0] sm:$0xff]
          %v892 = vld [vmem:[#allocation10 + $0xd8] sm:$0xff]
          %v893 = vld [vmem:[#allocation10 + $0xe0] sm:$0xff]
          %v894 = vld [vmem:[#allocation10 + $0xe8] sm:$0xff]
          %v895 = vld [vmem:[#allocation10 + $0xf0] sm:$0xff]
          %v896 = vld [vmem:[#allocation10 + $0xf8] sm:$0xff]
          %v897 = vld [vmem:[#allocation10 + $0x100] sm:$0xff]
          %v898 = vld [vmem:[#allocation10 + $0x108] sm:$0xff]
          %v899 = vld [vmem:[#allocation10 + $0x110] sm:$0xff]
          %v900 = vld [vmem:[#allocation10 + $0x118] sm:$0xff]
          %v901 = vld [vmem:[#allocation10 + $0x120] sm:$0xff]
          %v902 = vld [vmem:[#allocation10 + $0x128] sm:$0xff]
          %v903 = vld [vmem:[#allocation10 + $0x130] sm:$0xff]
          %v904 = vld [vmem:[#allocation10 + $0x138] sm:$0xff]
          %v905 = vld [vmem:[#allocation10 + $0x140] sm:$0xff]
          %v906 = vld [vmem:[#allocation10 + $0x148] sm:$0xff]
          %v907 = vld [vmem:[#allocation10 + $0x150] sm:$0xff]
          %v908 = vld [vmem:[#allocation10 + $0x158] sm:$0xff]
          %v909 = vld [vmem:[#allocation10 + $0x160] sm:$0xff]
          %v910 = vld [vmem:[#allocation10 + $0x168] sm:$0xff]
          %v911 = vld [vmem:[#allocation10 + $0x170] sm:$0xff]
          %v912 = vld [vmem:[#allocation10 + $0x178] sm:$0xff]
          %v913 = vld [vmem:[#allocation13] sm:$0x7]
          %v915 = vlaneseq
          %v916 = vshrl.u32 %v915, 7
          %v917 = vsub.s32 0, %v916
          %v918 = vrot.slane %v913, %v917
          %v919 = vlaneseq
          %v920 = vshrl.u32 %v919, 7
          %v921 = vsub.s32 1, %v920
          %v922 = vrot.slane %v913, %v921
          %v923 = vlaneseq
          %v924 = vshrl.u32 %v923, 7
          %v925 = vsub.s32 2, %v924
          %v926 = vrot.slane %v913, %v925
          %930 = vmatprep.subr.mxu0 %v911
          %931 = vmatpush1.msra.mxu0 %v910
          %932 = vmatprep.subr.mxu0 %v908
          %933 = vmatpush1.msra.mxu0 %v907
          %934 = vmatprep.subr.mxu0 %v905
          %935 = vmatpush1.msra.mxu0 %v904
          %936 = vmatprep.subr.mxu0 %v902
          %937 = vmatpush1.msra.mxu0 %v901
          %938 = vmatprep.subr.mxu0 %v899
          %939 = vmatpush1.msra.mxu0 %v898
          %940 = vmatprep.subr.mxu0 %v896
          %941 = vmatpush1.msra.mxu0 %v895
          %942 = vmatprep.subr.mxu0 %v893
          %943 = vmatpush1.msra.mxu0 %v892
          %944 = vmatprep.subr.mxu0 %v890
          %945 = vmatpush1.msra.mxu0 %v889
          %946 = vmatprep.subr.mxu0 %v887
          %947 = vmatpush1.msra.mxu0 %v886
          %948 = vmatprep.subr.mxu0 %v884
          %949 = vmatpush1.msra.mxu0 %v883
          %950 = vmatprep.subr.mxu0 %v881
          %951 = vmatpush1.msra.mxu0 %v880
          %952 = vmatprep.subr.mxu0 %v878
          %953 = vmatpush1.msra.mxu0 %v877
          %954 = vmatprep.subr.mxu0 %v875
          %955 = vmatpush1.msra.mxu0 %v874
          %956 = vmatprep.subr.mxu0 %v872
          %957 = vmatpush1.msra.mxu0 %v871
          %958 = vmatprep.subr.mxu0 %v869
          %959 = vmatpush1.msra.mxu0 %v868
          %960 = vmatprep.subr.mxu0 %v866
          %961 = vmatpush1.msra.mxu0 %v865
          %962 = vmatprep.subr.mxu0 0.0
          %963 = vmatpush2.msra.mxu0 0.0
          %964 = vmatprep.subr.mxu0 0.0
          %965 = vmatpush2.msra.mxu0 0.0
          %966 = vmatprep.subr.mxu0 0.0
          %967 = vmatpush2.msra.mxu0 0.0
          %968 = vmatprep.subr.mxu0 0.0
          %969 = vmatpush2.msra.mxu0 0.0
          %970 = vmatprep.subr.mxu0 0.0
          %971 = vmatpush2.msra.mxu0 0.0
          %972 = vmatprep.subr.mxu0 0.0
          %973 = vmatpush2.msra.mxu0 0.0
          %974 = vmatprep.subr.mxu0 0.0
          %975 = vmatpush2.msra.mxu0 0.0
          %976 = vmatprep.subr.mxu0 0.0
          %977 = vmatpush2.msra.mxu0 0.0
          %978 = vmatprep.subr.mxu0 0.0
          %979 = vmatpush2.msra.mxu0 0.0
          %980 = vmatprep.subr.mxu0 0.0
          %981 = vmatpush2.msra.mxu0 0.0
          %982 = vmatprep.subr.mxu0 0.0
          %983 = vmatpush2.msra.mxu0 0.0
          %984 = vmatprep.subr.mxu0 0.0
          %985 = vmatpush2.msra.mxu0 0.0
          %986 = vmatprep.subr.mxu0 0.0
          %987 = vmatpush2.msra.mxu0 0.0
          %988 = vmatprep.subr.mxu0 0.0
          %989 = vmatpush2.msra.mxu0 0.0
          %990 = vmatprep.subr.mxu0 0.0
          %991 = vmatpush2.msra.mxu0 0.0
          %992 = vmatprep.subr.mxu0 0.0
          %993 = vmatpush2.msra.mxu0 0.0
          %994 = vmatprep.mubr.f32.mxu0 0.0
          %995 = vmatmul.mubr.f32.gmra.mxu0 %v658
          %v996 = vpop.f32.mrf.mxu0
          %v997 = vadd.f32 %v918, %v996
          %v998 = vpop.f32.mrf.mxu0
          %v999 = vadd.f32 %v922, %v998
          %1000 = vdwg.mxu0
          %1001 = vmatprep.subr.mxu0 0.0
          %1002 = vmatpush1.msra.mxu0 %v912
          %1003 = vmatprep.subr.mxu0 0.0
          %1004 = vmatpush1.msra.mxu0 %v909
          %1005 = vmatprep.subr.mxu0 0.0
          %1006 = vmatpush1.msra.mxu0 %v906
          %1007 = vmatprep.subr.mxu0 0.0
          %1008 = vmatpush1.msra.mxu0 %v903
          %1009 = vmatprep.subr.mxu0 0.0
          %1010 = vmatpush1.msra.mxu0 %v900
          %1011 = vmatprep.subr.mxu0 0.0
          %1012 = vmatpush1.msra.mxu0 %v897
          %1013 = vmatprep.subr.mxu0 0.0
          %1014 = vmatpush1.msra.mxu0 %v894
          %1015 = vmatprep.subr.mxu0 0.0
          %1016 = vmatpush1.msra.mxu0 %v891
          %1017 = vmatprep.subr.mxu0 0.0
          %1018 = vmatpush1.msra.mxu0 %v888
          %1019 = vmatprep.subr.mxu0 0.0
          %1020 = vmatpush1.msra.mxu0 %v885
          %1021 = vmatprep.subr.mxu0 0.0
          %1022 = vmatpush1.msra.mxu0 %v882
          %1023 = vmatprep.subr.mxu0 0.0
          %1024 = vmatpush1.msra.mxu0 %v879
          %1025 = vmatprep.subr.mxu0 0.0
          %1026 = vmatpush1.msra.mxu0 %v876
          %1027 = vmatprep.subr.mxu0 0.0
          %1028 = vmatpush1.msra.mxu0 %v873
          %1029 = vmatprep.subr.mxu0 0.0
          %1030 = vmatpush1.msra.mxu0 %v870
          %1031 = vmatprep.subr.mxu0 0.0
          %1032 = vmatpush1.msra.mxu0 %v867
          %1033 = vmatprep.subr.mxu0 0.0
          %1034 = vmatpush2.msra.mxu0 0.0
          %1035 = vmatprep.subr.mxu0 0.0
          %1036 = vmatpush2.msra.mxu0 0.0
          %1037 = vmatprep.subr.mxu0 0.0
          %1038 = vmatpush2.msra.mxu0 0.0
          %1039 = vmatprep.subr.mxu0 0.0
          %1040 = vmatpush2.msra.mxu0 0.0
          %1041 = vmatprep.subr.mxu0 0.0
          %1042 = vmatpush2.msra.mxu0 0.0
          %1043 = vmatprep.subr.mxu0 0.0
          %1044 = vmatpush2.msra.mxu0 0.0
          %1045 = vmatprep.subr.mxu0 0.0
          %1046 = vmatpush2.msra.mxu0 0.0
          %1047 = vmatprep.subr.mxu0 0.0
          %1048 = vmatpush2.msra.mxu0 0.0
          %1049 = vmatprep.subr.mxu0 0.0
          %1050 = vmatpush2.msra.mxu0 0.0
          %1051 = vmatprep.subr.mxu0 0.0
          %1052 = vmatpush2.msra.mxu0 0.0
          %1053 = vmatprep.subr.mxu0 0.0
          %1054 = vmatpush2.msra.mxu0 0.0
          %1055 = vmatprep.subr.mxu0 0.0
          %1056 = vmatpush2.msra.mxu0 0.0
          %1057 = vmatprep.subr.mxu0 0.0
          %1058 = vmatpush2.msra.mxu0 0.0
          %1059 = vmatprep.subr.mxu0 0.0
          %1060 = vmatpush2.msra.mxu0 0.0
          %1061 = vmatprep.subr.mxu0 0.0
          %1062 = vmatpush2.msra.mxu0 0.0
          %1063 = vmatprep.subr.mxu0 0.0
          %1064 = vmatpush2.msra.mxu0 0.0
          %1065 = vmatprep.mubr.f32.mxu0 0.0
          %1066 = vmatmul.mubr.f32.gmra.mxu0 %v658
          %v1067 = vpop.f32.mrf.mxu0
          %v1068 = vadd.f32 %v926, %v1067
          %v1069 = vpop.f32.mrf.mxu0
          %1070 = vdwg.mxu0
          %v1071 = vadd.f32 %v791, %v997
          %v1072 = vxor.u32 %v1071, 2147483648
          %v1073 = vmul.f32 %v1072, 1.442695
          %v1074 = vpow.pop %v1073
          %v1075 = vadd.f32 %v1074, 1.0
          %v1076 = vrcp.pop %v1075
          %v1077 = vmul.f32 1.0, %v1076
          %v1078 = vadd.f32 %v793, %v999
          %v1079 = vxor.u32 %v1078, 2147483648
          %v1080 = vmul.f32 %v1079, 1.442695
          %v1081 = vpow.pop %v1080
          %v1082 = vadd.f32 %v1081, 1.0
          %v1083 = vrcp.pop %v1082
          %v1084 = vmul.f32 1.0, %v1083
          %v1085 = vmul.f32 %v1077, %v1068
          %v1086 = vadd.f32 %v862, %v1085
          %v1087 = vtanh.pop %v1086
          %v1088 = vsub.f32 1.0, %v1084
          %v1089 = vmul.f32 %v1088, %v1087
          %v1090 = vmul.f32 %v1084, %v658
          %v1091 = vadd.f32 %v1089, %v1090
          %v1092 = vld [vmem:[#allocation6] sm:$0xff]
          %v1093 = vld [vmem:[#allocation6 + $0x8] sm:$0xff]
          %v1094 = vld [vmem:[#allocation6 + $0x10] sm:$0xff]
          %v1095 = vld [vmem:[#allocation6 + $0x18] sm:$0xff]
          %v1096 = vld [vmem:[#allocation6 + $0x20] sm:$0xff]
          %v1097 = vld [vmem:[#allocation6 + $0x28] sm:$0xff]
          %v1098 = vld [vmem:[#allocation6 + $0x30] sm:$0xff]
          %v1099 = vld [vmem:[#allocation6 + $0x38] sm:$0xff]
          %v1101 = vcombine.high %v1091, %v1091
          %v1103 = vunpack.c.l.s4 1966171168
          %v1104 = vunpack.c.0.s8 %v1103
          %v1105 = vlaneseq
          %v1106 = vshrl.u32 %v1105, 7
          %v1107 = vsub.s32 %v1104, %v1106
          %v1108 = vrot.slane %v1091, %v1107
          %v1110 = vunpack.c.l.s4 1966171168
          %v1111 = vunpack.c.0.s8 %v1110
          %v1112 = vlaneseq
          %v1113 = vshrl.u32 %v1112, 7
          %v1114 = vsub.s32 %v1111, %v1113
          %v1115 = vrot.slane %v1101, %v1114
          %v1116 = vcombine.high %v1108, %v1108
          %v1117 = vcombine.high %v1115, %v1115
          %v1119 = vunpack.c.l.s4 1966171168
          %v1120 = vunpack.c.0.s8 %v1119
          %v1121 = vlaneseq
          %v1122 = vshrl.u32 %v1121, 7
          %v1123 = vsub.s32 %v1120, %v1122
          %v1124 = vrot.slane %v1108, %v1123
          %v1126 = vunpack.c.l.s4 1966171168
          %v1127 = vunpack.c.0.s8 %v1126
          %v1128 = vlaneseq
          %v1129 = vshrl.u32 %v1128, 7
          %v1130 = vsub.s32 %v1127, %v1129
          %v1131 = vrot.slane %v1115, %v1130
          %v1133 = vunpack.c.l.s4 1966171168
          %v1134 = vunpack.c.0.s8 %v1133
          %v1135 = vlaneseq
          %v1136 = vshrl.u32 %v1135, 7
          %v1137 = vsub.s32 %v1134, %v1136
          %v1138 = vrot.slane %v1116, %v1137
          %v1140 = vunpack.c.l.s4 1966171168
          %v1141 = vunpack.c.0.s8 %v1140
          %v1142 = vlaneseq
          %v1143 = vshrl.u32 %v1142, 7
          %v1144 = vsub.s32 %v1141, %v1143
          %v1145 = vrot.slane %v1117, %v1144
          %v1146 = vcombine.high %v1124, %v1124
          %v1147 = vcombine.high %v1131, %v1131
          %v1148 = vcombine.high %v1138, %v1138
          %v1149 = vcombine.high %v1145, %v1145
          %v1150 = vlaneseq
          %v1151 = vshrl.u32 %v1150, 7
          %v1152 = vsub.s32 0, %v1151
          %v1153 = vrot.slane %v1124, %v1152
          %v1154 = vlaneseq
          %v1155 = vshrl.u32 %v1154, 7
          %v1156 = vsub.s32 0, %v1155
          %v1157 = vrot.slane %v1138, %v1156
          %v1158 = vlaneseq
          %v1159 = vshrl.u32 %v1158, 7
          %v1160 = vsub.s32 0, %v1159
          %v1161 = vrot.slane %v1146, %v1160
          %v1162 = vlaneseq
          %v1163 = vshrl.u32 %v1162, 7
          %v1164 = vsub.s32 0, %v1163
          %v1165 = vrot.slane %v1148, %v1164
          %v1166 = vlaneseq
          %v1167 = vshrl.u32 %v1166, 7
          %v1168 = vsub.s32 0, %v1167
          %v1169 = vrot.slane %v1131, %v1168
          %v1170 = vlaneseq
          %v1171 = vshrl.u32 %v1170, 7
          %v1172 = vsub.s32 0, %v1171
          %v1173 = vrot.slane %v1145, %v1172
          %v1174 = vlaneseq
          %v1175 = vshrl.u32 %v1174, 7
          %v1176 = vsub.s32 0, %v1175
          %v1177 = vrot.slane %v1147, %v1176
          %v1178 = vlaneseq
          %v1179 = vshrl.u32 %v1178, 7
          %v1180 = vsub.s32 0, %v1179
          %v1181 = vrot.slane %v1149, %v1180
          %v1190 = vmul.f32 %v1092, %v1153
          %v1191 = vmul.f32 %v1093, %v1157
          %v1192 = vmul.f32 %v1094, %v1161
          %v1193 = vmul.f32 %v1095, %v1165
          %v1194 = vmul.f32 %v1096, %v1169
          %v1195 = vmul.f32 %v1097, %v1173
          %v1196 = vmul.f32 %v1098, %v1177
          %v1197 = vmul.f32 %v1099, %v1181
          %1198 = vadd.xlane.f32.xlu0 %v1190
          %v1199 = vpop.xlane.xlu0 %1198
          %1200 = vadd.xlane.f32.xlu0 %v1191
          %v1201 = vpop.xlane.xlu0 %1200
          %1202 = vadd.xlane.f32.xlu0 %v1192
          %v1203 = vpop.xlane.xlu0 %1202
          %1204 = vadd.xlane.f32.xlu0 %v1193
          %v1205 = vpop.xlane.xlu0 %1204
          %1206 = vadd.xlane.f32.xlu0 %v1194
          %v1207 = vpop.xlane.xlu0 %1206
          %1208 = vadd.xlane.f32.xlu0 %v1195
          %v1209 = vpop.xlane.xlu0 %1208
          %1210 = vadd.xlane.f32.xlu0 %v1196
          %v1211 = vpop.xlane.xlu0 %1210
          %1212 = vadd.xlane.f32.xlu0 %v1197
          %v1213 = vpop.xlane.xlu0 %1212
          %v1222 = vlaneseq
          %v1223 = vand.u32 %v1222, 127
          %v1224 = vlaneseq
          %v1225 = vshrl.u32 %v1224, 7
          %v1226 = vsub.s32 %v1223, %v1225
          %v1227 = vrot.slane %v1199, %v1226
          %v1228 = vlaneseq
          %v1229 = vshrl.u32 %v1228, 7
          %v1230 = vsub.s32 %v1223, %v1229
          %v1231 = vrot.slane %v1201, %v1230
          %v1232 = vlaneseq
          %v1233 = vshrl.u32 %v1232, 7
          %v1234 = vsub.s32 %v1223, %v1233
          %v1235 = vrot.slane %v1203, %v1234
          %v1236 = vlaneseq
          %v1237 = vshrl.u32 %v1236, 7
          %v1238 = vsub.s32 %v1223, %v1237
          %v1239 = vrot.slane %v1205, %v1238
          %v1240 = vlaneseq
          %v1241 = vshrl.u32 %v1240, 7
          %v1242 = vsub.s32 %v1223, %v1241
          %v1243 = vrot.slane %v1207, %v1242
          %v1244 = vlaneseq
          %v1245 = vshrl.u32 %v1244, 7
          %v1246 = vsub.s32 %v1223, %v1245
          %v1247 = vrot.slane %v1209, %v1246
          %v1248 = vlaneseq
          %v1249 = vshrl.u32 %v1248, 7
          %v1250 = vsub.s32 %v1223, %v1249
          %v1251 = vrot.slane %v1211, %v1250
          %v1252 = vlaneseq
          %v1253 = vshrl.u32 %v1252, 7
          %v1254 = vsub.s32 %v1223, %v1253
          %v1255 = vrot.slane %v1213, %v1254
          %vm1256 = vcmask 1041409
          %v1257 = vsel %vm1256, %v1231, %v1227
          %vm1258 = vcmask 1042434
          %v1259 = vsel %vm1258, %v1235, %v1257
          %vm1260 = vcmask 1043459
          %v1261 = vsel %vm1260, %v1239, %v1259
          %vm1262 = vcmask 1044484
          %v1263 = vsel %vm1262, %v1243, %v1261
          %vm1264 = vcmask 1045509
          %v1265 = vsel %vm1264, %v1247, %v1263
          %vm1266 = vcmask 1046534
          %v1267 = vsel %vm1266, %v1251, %v1265
          %vm1268 = vcmask 1047559
          %v1269 = vsel %vm1268, %v1255, %v1267
          %vm1271 = vcmask 64512
          %v1272 = vsel %vm1271, %v1269, -inf
          %1273 = vmax.xlane.f32.xlu0 %v1272
          %v1274 = vpop.xlane.xlu0 %1273
          %v1276 = vlaneseq
          %v1277 = vshrl.u32 %v1276, 7
          %v1278 = vsub.s32 0, %v1277
          %v1279 = vrot.slane %v1274, %v1278
          %v1280 = vlaneseq
          %v1281 = vshrl.u32 %v1280, 7
          %v1282 = vsub.s32 1, %v1281
          %v1283 = vrot.slane %v1274, %v1282
          %v1284 = vlaneseq
          %v1285 = vshrl.u32 %v1284, 7
          %v1286 = vsub.s32 2, %v1285
          %v1287 = vrot.slane %v1274, %v1286
          %v1288 = vlaneseq
          %v1289 = vshrl.u32 %v1288, 7
          %v1290 = vsub.s32 3, %v1289
          %v1291 = vrot.slane %v1274, %v1290
          %v1292 = vlaneseq
          %v1293 = vshrl.u32 %v1292, 7
          %v1294 = vsub.s32 4, %v1293
          %v1295 = vrot.slane %v1274, %v1294
          %v1296 = vlaneseq
          %v1297 = vshrl.u32 %v1296, 7
          %v1298 = vsub.s32 5, %v1297
          %v1299 = vrot.slane %v1274, %v1298
          %v1300 = vlaneseq
          %v1301 = vshrl.u32 %v1300, 7
          %v1302 = vsub.s32 6, %v1301
          %v1303 = vrot.slane %v1274, %v1302
          %v1304 = vlaneseq
          %v1305 = vshrl.u32 %v1304, 7
          %v1306 = vsub.s32 7, %v1305
          %v1307 = vrot.slane %v1274, %v1306
          %v1316 = vsub.f32 %v1199, %v1279
          %v1317 = vsub.f32 %v1201, %v1283
          %v1318 = vsub.f32 %v1203, %v1287
          %v1319 = vsub.f32 %v1205, %v1291
          %v1320 = vsub.f32 %v1207, %v1295
          %v1321 = vsub.f32 %v1209, %v1299
          %v1322 = vsub.f32 %v1211, %v1303
          %v1323 = vsub.f32 %v1213, %v1307
          %v1324 = vmul.f32 %v1316, 1.442695
          %v1325 = vpow.pop %v1324
          %v1326 = vmul.f32 %v1317, 1.442695
          %v1327 = vpow.pop %v1326
          %v1328 = vmul.f32 %v1318, 1.442695
          %v1329 = vpow.pop %v1328
          %v1330 = vmul.f32 %v1319, 1.442695
          %v1331 = vpow.pop %v1330
          %v1332 = vmul.f32 %v1320, 1.442695
          %v1333 = vpow.pop %v1332
          %v1334 = vmul.f32 %v1321, 1.442695
          %v1335 = vpow.pop %v1334
          %v1336 = vmul.f32 %v1322, 1.442695
          %v1337 = vpow.pop %v1336
          %v1338 = vmul.f32 %v1323, 1.442695
          %v1339 = vpow.pop %v1338
          %1348 = vset.pattern.permute.xlu0 0
          %1349 = vperm.xlu0 %1348, %v1325
          %v1350 = vpop.permute.xlu0 %1349
          %1351 = vset.pattern.permute.xlu0 0
          %1352 = vperm.xlu0 %1351, %v1327
          %v1353 = vpop.permute.xlu0 %1352
          %1354 = vset.pattern.permute.xlu0 0
          %1355 = vperm.xlu0 %1354, %v1329
          %v1356 = vpop.permute.xlu0 %1355
          %1357 = vset.pattern.permute.xlu0 0
          %1358 = vperm.xlu0 %1357, %v1331
          %v1359 = vpop.permute.xlu0 %1358
          %1360 = vset.pattern.permute.xlu0 0
          %1361 = vperm.xlu0 %1360, %v1333
          %v1362 = vpop.permute.xlu0 %1361
          %1363 = vset.pattern.permute.xlu0 0
          %1364 = vperm.xlu0 %1363, %v1335
          %v1365 = vpop.permute.xlu0 %1364
          %1366 = vset.pattern.permute.xlu0 0
          %1367 = vperm.xlu0 %1366, %v1337
          %v1368 = vpop.permute.xlu0 %1367
          %1369 = vset.pattern.permute.xlu0 0
          %1370 = vperm.xlu0 %1369, %v1339
          %v1371 = vpop.permute.xlu0 %1370
          %v1372 = vlaneseq
          %v1373 = vshrl.u32 %v1372, 7
          %v1374 = vsub.s32 %v1223, %v1373
          %v1375 = vrot.slane %v1350, %v1374
          %v1376 = vlaneseq
          %v1377 = vshrl.u32 %v1376, 7
          %v1378 = vsub.s32 %v1223, %v1377
          %v1379 = vrot.slane %v1353, %v1378
          %v1380 = vlaneseq
          %v1381 = vshrl.u32 %v1380, 7
          %v1382 = vsub.s32 %v1223, %v1381
          %v1383 = vrot.slane %v1356, %v1382
          %v1384 = vlaneseq
          %v1385 = vshrl.u32 %v1384, 7
          %v1386 = vsub.s32 %v1223, %v1385
          %v1387 = vrot.slane %v1359, %v1386
          %v1388 = vlaneseq
          %v1389 = vshrl.u32 %v1388, 7
          %v1390 = vsub.s32 %v1223, %v1389
          %v1391 = vrot.slane %v1362, %v1390
          %v1392 = vlaneseq
          %v1393 = vshrl.u32 %v1392, 7
          %v1394 = vsub.s32 %v1223, %v1393
          %v1395 = vrot.slane %v1365, %v1394
          %v1396 = vlaneseq
          %v1397 = vshrl.u32 %v1396, 7
          %v1398 = vsub.s32 %v1223, %v1397
          %v1399 = vrot.slane %v1368, %v1398
          %v1400 = vlaneseq
          %v1401 = vshrl.u32 %v1400, 7
          %v1402 = vsub.s32 %v1223, %v1401
          %v1403 = vrot.slane %v1371, %v1402
          %v1404 = vsel %vm1256, %v1379, %v1375
          %v1405 = vsel %vm1258, %v1383, %v1404
          %v1406 = vsel %vm1260, %v1387, %v1405
          %v1407 = vsel %vm1262, %v1391, %v1406
          %v1408 = vsel %vm1264, %v1395, %v1407
          %v1409 = vsel %vm1266, %v1399, %v1408
          %v1410 = vsel %vm1268, %v1403, %v1409
          %v1412 = vsel %vm1271, %v1410, 0.0
          %1413 = vadd.xlane.f32.xlu0 %v1412
          %v1414 = vpop.xlane.xlu0 %1413
          %v1416 = vlaneseq
          %v1417 = vshrl.u32 %v1416, 7
          %v1418 = vsub.s32 0, %v1417
          %v1419 = vrot.slane %v1414, %v1418
          %v1420 = vlaneseq
          %v1421 = vshrl.u32 %v1420, 7
          %v1422 = vsub.s32 1, %v1421
          %v1423 = vrot.slane %v1414, %v1422
          %v1424 = vlaneseq
          %v1425 = vshrl.u32 %v1424, 7
          %v1426 = vsub.s32 2, %v1425
          %v1427 = vrot.slane %v1414, %v1426
          %v1428 = vlaneseq
          %v1429 = vshrl.u32 %v1428, 7
          %v1430 = vsub.s32 3, %v1429
          %v1431 = vrot.slane %v1414, %v1430
          %v1432 = vlaneseq
          %v1433 = vshrl.u32 %v1432, 7
          %v1434 = vsub.s32 4, %v1433
          %v1435 = vrot.slane %v1414, %v1434
          %v1436 = vlaneseq
          %v1437 = vshrl.u32 %v1436, 7
          %v1438 = vsub.s32 5, %v1437
          %v1439 = vrot.slane %v1414, %v1438
          %v1440 = vlaneseq
          %v1441 = vshrl.u32 %v1440, 7
          %v1442 = vsub.s32 6, %v1441
          %v1443 = vrot.slane %v1414, %v1442
          %v1444 = vlaneseq
          %v1445 = vshrl.u32 %v1444, 7
          %v1446 = vsub.s32 7, %v1445
          %v1447 = vrot.slane %v1414, %v1446
          %v1456 = vrcp.pop %v1419
          %v1457 = vmul.f32 %v1325, %v1456
          %v1458 = vrcp.pop %v1423
          %v1459 = vmul.f32 %v1327, %v1458
          %v1460 = vrcp.pop %v1427
          %v1461 = vmul.f32 %v1329, %v1460
          %v1462 = vrcp.pop %v1431
          %v1463 = vmul.f32 %v1331, %v1462
          %v1464 = vrcp.pop %v1435
          %v1465 = vmul.f32 %v1333, %v1464
          %v1466 = vrcp.pop %v1439
          %v1467 = vmul.f32 %v1335, %v1466
          %v1468 = vrcp.pop %v1443
          %v1469 = vmul.f32 %v1337, %v1468
          %v1470 = vrcp.pop %v1447
          %v1471 = vmul.f32 %v1339, %v1470
          %1473 = vset.pattern.permute.xlu0 0
          %1474 = vperm.xlu0 %1473, %v1457
          %v1475 = vpop.permute.xlu0 %1474
          %1478 = vset.pattern.permute.xlu0 0
          %1479 = vperm.xlu0 %1478, %v1459
          %v1480 = vpop.permute.xlu0 %1479
          %1483 = vset.pattern.permute.xlu0 0
          %1484 = vperm.xlu0 %1483, %v1461
          %v1485 = vpop.permute.xlu0 %1484
          %1488 = vset.pattern.permute.xlu0 0
          %1489 = vperm.xlu0 %1488, %v1463
          %v1490 = vpop.permute.xlu0 %1489
          %1493 = vset.pattern.permute.xlu0 0
          %1494 = vperm.xlu0 %1493, %v1465
          %v1495 = vpop.permute.xlu0 %1494
          %1498 = vset.pattern.permute.xlu0 0
          %1499 = vperm.xlu0 %1498, %v1467
          %v1500 = vpop.permute.xlu0 %1499
          %1503 = vset.pattern.permute.xlu0 0
          %1504 = vperm.xlu0 %1503, %v1469
          %v1505 = vpop.permute.xlu0 %1504
          %1508 = vset.pattern.permute.xlu0 0
          %1509 = vperm.xlu0 %1508, %v1471
          %v1510 = vpop.permute.xlu0 %1509
          %v1512 = vmul.f32 %v1475, %v1092
          %v1513 = vmul.f32 %v1480, %v1093
          %v1514 = vmul.f32 %v1485, %v1094
          %v1515 = vmul.f32 %v1490, %v1095
          %v1516 = vmul.f32 %v1495, %v1096
          %v1517 = vmul.f32 %v1500, %v1097
          %v1518 = vmul.f32 %v1505, %v1098
          %v1519 = vmul.f32 %v1510, %v1099
          %v1520 = vrot.slane %v1512, 4
          %v1521 = vadd.f32 %v1512, %v1520
          %v1522 = vrot.slane %v1521, 2
          %v1523 = vadd.f32 %v1521, %v1522
          %v1524 = vrot.slane %v1523, 1
          %v1525 = vadd.f32 %v1523, %v1524
          %v1526 = vrot.slane %v1513, 4
          %v1527 = vadd.f32 %v1513, %v1526
          %v1528 = vrot.slane %v1527, 2
          %v1529 = vadd.f32 %v1527, %v1528
          %v1530 = vrot.slane %v1529, 1
          %v1531 = vadd.f32 %v1529, %v1530
          %v1532 = vrot.slane %v1514, 4
          %v1533 = vadd.f32 %v1514, %v1532
          %v1534 = vrot.slane %v1533, 2
          %v1535 = vadd.f32 %v1533, %v1534
          %v1536 = vrot.slane %v1535, 1
          %v1537 = vadd.f32 %v1535, %v1536
          %v1538 = vrot.slane %v1515, 4
          %v1539 = vadd.f32 %v1515, %v1538
          %v1540 = vrot.slane %v1539, 2
          %v1541 = vadd.f32 %v1539, %v1540
          %v1542 = vrot.slane %v1541, 1
          %v1543 = vadd.f32 %v1541, %v1542
          %v1544 = vrot.slane %v1516, 4
          %v1545 = vadd.f32 %v1516, %v1544
          %v1546 = vrot.slane %v1545, 2
          %v1547 = vadd.f32 %v1545, %v1546
          %v1548 = vrot.slane %v1547, 1
          %v1549 = vadd.f32 %v1547, %v1548
          %v1550 = vrot.slane %v1517, 4
          %v1551 = vadd.f32 %v1517, %v1550
          %v1552 = vrot.slane %v1551, 2
          %v1553 = vadd.f32 %v1551, %v1552
          %v1554 = vrot.slane %v1553, 1
          %v1555 = vadd.f32 %v1553, %v1554
          %v1556 = vrot.slane %v1518, 4
          %v1557 = vadd.f32 %v1518, %v1556
          %v1558 = vrot.slane %v1557, 2
          %v1559 = vadd.f32 %v1557, %v1558
          %v1560 = vrot.slane %v1559, 1
          %v1561 = vadd.f32 %v1559, %v1560
          %v1562 = vrot.slane %v1519, 4
          %v1563 = vadd.f32 %v1519, %v1562
          %v1564 = vrot.slane %v1563, 2
          %v1565 = vadd.f32 %v1563, %v1564
          %v1566 = vrot.slane %v1565, 1
          %v1567 = vadd.f32 %v1565, %v1566
          %v1568 = vld [vmem:[#allocation14] sm:$0xff]
          %v1569 = vld [vmem:[#allocation14 + $0x8] sm:$0xff]
          %v1570 = vld [vmem:[#allocation14 + $0x10] sm:$0xff]
          %v1571 = vld [vmem:[#allocation14 + $0x18] sm:$0xff]
          %v1572 = vld [vmem:[#allocation14 + $0x20] sm:$0xff]
          %v1573 = vld [vmem:[#allocation14 + $0x28] sm:$0xff]
          %v1574 = vld [vmem:[#allocation14 + $0x30] sm:$0xff]
          %v1575 = vld [vmem:[#allocation14 + $0x38] sm:$0xff]
          %v1576 = vld [vmem:[#allocation14 + $0x40] sm:$0xff]
          %v1577 = vld [vmem:[#allocation14 + $0x48] sm:$0xff]
          %v1578 = vld [vmem:[#allocation14 + $0x50] sm:$0xff]
          %v1579 = vld [vmem:[#allocation14 + $0x58] sm:$0xff]
          %v1580 = vld [vmem:[#allocation14 + $0x60] sm:$0xff]
          %v1581 = vld [vmem:[#allocation14 + $0x68] sm:$0xff]
          %v1582 = vld [vmem:[#allocation14 + $0x70] sm:$0xff]
          %v1583 = vld [vmem:[#allocation14 + $0x78] sm:$0xff]
          %v1584 = vld [vmem:[#allocation16] sm:$0xff]
          %v1585 = vld [vmem:[#allocation16 + $0x8] sm:$0xff]
          %v1586 = vld [vmem:[#allocation16 + $0x10] sm:$0xff]
          %v1587 = vld [vmem:[#allocation16 + $0x18] sm:$0xff]
          %v1588 = vld [vmem:[#allocation16 + $0x20] sm:$0xff]
          %v1589 = vld [vmem:[#allocation16 + $0x28] sm:$0xff]
          %v1590 = vld [vmem:[#allocation16 + $0x30] sm:$0xff]
          %v1591 = vld [vmem:[#allocation16 + $0x38] sm:$0xff]
          %v1592 = vld [vmem:[#allocation16 + $0x40] sm:$0xff]
          %v1593 = vld [vmem:[#allocation16 + $0x48] sm:$0xff]
          %v1594 = vld [vmem:[#allocation16 + $0x50] sm:$0xff]
          %v1595 = vld [vmem:[#allocation16 + $0x58] sm:$0xff]
          %v1596 = vld [vmem:[#allocation16 + $0x60] sm:$0xff]
          %v1597 = vld [vmem:[#allocation16 + $0x68] sm:$0xff]
          %v1598 = vld [vmem:[#allocation16 + $0x70] sm:$0xff]
          %v1599 = vld [vmem:[#allocation16 + $0x78] sm:$0xff]
          %v1608 = vsel %vm1256, %v1531, %v1525
          %v1609 = vsel %vm1258, %v1537, %v1608
          %v1610 = vsel %vm1260, %v1543, %v1609
          %v1611 = vsel %vm1262, %v1549, %v1610
          %v1612 = vsel %vm1264, %v1555, %v1611
          %v1613 = vsel %vm1266, %v1561, %v1612
          %v1614 = vsel %vm1268, %v1567, %v1613
          %1616 = vmatprep.subr.mxu0 0.0
          %1617 = vmatpush1.msra.mxu0 %v1599
          %1618 = vmatprep.subr.mxu0 0.0
          %1619 = vmatpush1.msra.mxu0 %v1598
          %1620 = vmatprep.subr.mxu0 0.0
          %1621 = vmatpush1.msra.mxu0 %v1597
          %1622 = vmatprep.subr.mxu0 0.0
          %1623 = vmatpush1.msra.mxu0 %v1596
          %1624 = vmatprep.subr.mxu0 0.0
          %1625 = vmatpush1.msra.mxu0 %v1595
          %1626 = vmatprep.subr.mxu0 0.0
          %1627 = vmatpush1.msra.mxu0 %v1594
          %1628 = vmatprep.subr.mxu0 0.0
          %1629 = vmatpush1.msra.mxu0 %v1593
          %1630 = vmatprep.subr.mxu0 0.0
          %1631 = vmatpush1.msra.mxu0 %v1592
          %1632 = vmatprep.subr.mxu0 0.0
          %1633 = vmatpush1.msra.mxu0 %v1591
          %1634 = vmatprep.subr.mxu0 0.0
          %1635 = vmatpush1.msra.mxu0 %v1590
          %1636 = vmatprep.subr.mxu0 0.0
          %1637 = vmatpush1.msra.mxu0 %v1589
          %1638 = vmatprep.subr.mxu0 0.0
          %1639 = vmatpush1.msra.mxu0 %v1588
          %1640 = vmatprep.subr.mxu0 0.0
          %1641 = vmatpush1.msra.mxu0 %v1587
          %1642 = vmatprep.subr.mxu0 0.0
          %1643 = vmatpush1.msra.mxu0 %v1586
          %1644 = vmatprep.subr.mxu0 0.0
          %1645 = vmatpush1.msra.mxu0 %v1585
          %1646 = vmatprep.subr.mxu0 0.0
          %1647 = vmatpush1.msra.mxu0 %v1584
          %1648 = vmatprep.subr.mxu0 0.0
          %1649 = vmatpush2.msra.mxu0 0.0
          %1650 = vmatprep.subr.mxu0 0.0
          %1651 = vmatpush2.msra.mxu0 0.0
          %1652 = vmatprep.subr.mxu0 0.0
          %1653 = vmatpush2.msra.mxu0 0.0
          %1654 = vmatprep.subr.mxu0 0.0
          %1655 = vmatpush2.msra.mxu0 0.0
          %1656 = vmatprep.subr.mxu0 0.0
          %1657 = vmatpush2.msra.mxu0 0.0
          %1658 = vmatprep.subr.mxu0 0.0
          %1659 = vmatpush2.msra.mxu0 0.0
          %1660 = vmatprep.subr.mxu0 0.0
          %1661 = vmatpush2.msra.mxu0 0.0
          %1662 = vmatprep.subr.mxu0 0.0
          %1663 = vmatpush2.msra.mxu0 0.0
          %1664 = vmatprep.subr.mxu0 0.0
          %1665 = vmatpush2.msra.mxu0 0.0
          %1666 = vmatprep.subr.mxu0 0.0
          %1667 = vmatpush2.msra.mxu0 0.0
          %1668 = vmatprep.subr.mxu0 0.0
          %1669 = vmatpush2.msra.mxu0 0.0
          %1670 = vmatprep.subr.mxu0 0.0
          %1671 = vmatpush2.msra.mxu0 0.0
          %1672 = vmatprep.subr.mxu0 0.0
          %1673 = vmatpush2.msra.mxu0 0.0
          %1674 = vmatprep.subr.mxu0 0.0
          %1675 = vmatpush2.msra.mxu0 0.0
          %1676 = vmatprep.subr.mxu0 0.0
          %1677 = vmatpush2.msra.mxu0 0.0
          %1678 = vmatprep.subr.mxu0 0.0
          %1679 = vmatpush2.msra.mxu0 0.0
          %1680 = vmatprep.mubr.f32.mxu0 0.0
          %1681 = vmatmul.mubr.f32.gmra.mxu0 %v1614
          %v1682 = vpop.f32.mrf.mxu0
          %v1683 = vadd.f32 0.0, %v1682
          %v1684 = vpop.f32.mrf.mxu0
          %1685 = vdwg.mxu0
          %1686 = vmatprep.subr.mxu0 0.0
          %1687 = vmatpush1.msra.mxu0 %v1583
          %1688 = vmatprep.subr.mxu0 0.0
          %1689 = vmatpush1.msra.mxu0 %v1582
          %1690 = vmatprep.subr.mxu0 0.0
          %1691 = vmatpush1.msra.mxu0 %v1581
          %1692 = vmatprep.subr.mxu0 0.0
          %1693 = vmatpush1.msra.mxu0 %v1580
          %1694 = vmatprep.subr.mxu0 0.0
          %1695 = vmatpush1.msra.mxu0 %v1579
          %1696 = vmatprep.subr.mxu0 0.0
          %1697 = vmatpush1.msra.mxu0 %v1578
          %1698 = vmatprep.subr.mxu0 0.0
          %1699 = vmatpush1.msra.mxu0 %v1577
          %1700 = vmatprep.subr.mxu0 0.0
          %1701 = vmatpush1.msra.mxu0 %v1576
          %1702 = vmatprep.subr.mxu0 0.0
          %1703 = vmatpush1.msra.mxu0 %v1575
          %1704 = vmatprep.subr.mxu0 0.0
          %1705 = vmatpush1.msra.mxu0 %v1574
          %1706 = vmatprep.subr.mxu0 0.0
          %1707 = vmatpush1.msra.mxu0 %v1573
          %1708 = vmatprep.subr.mxu0 0.0
          %1709 = vmatpush1.msra.mxu0 %v1572
          %1710 = vmatprep.subr.mxu0 0.0
          %1711 = vmatpush1.msra.mxu0 %v1571
          %1712 = vmatprep.subr.mxu0 0.0
          %1713 = vmatpush1.msra.mxu0 %v1570
          %1714 = vmatprep.subr.mxu0 0.0
          %1715 = vmatpush1.msra.mxu0 %v1569
          %1716 = vmatprep.subr.mxu0 0.0
          %1717 = vmatpush1.msra.mxu0 %v1568
          %1718 = vmatprep.subr.mxu0 0.0
          %1719 = vmatpush2.msra.mxu0 0.0
          %1720 = vmatprep.subr.mxu0 0.0
          %1721 = vmatpush2.msra.mxu0 0.0
          %1722 = vmatprep.subr.mxu0 0.0
          %1723 = vmatpush2.msra.mxu0 0.0
          %1724 = vmatprep.subr.mxu0 0.0
          %1725 = vmatpush2.msra.mxu0 0.0
          %1726 = vmatprep.subr.mxu0 0.0
          %1727 = vmatpush2.msra.mxu0 0.0
          %1728 = vmatprep.subr.mxu0 0.0
          %1729 = vmatpush2.msra.mxu0 0.0
          %1730 = vmatprep.subr.mxu0 0.0
          %1731 = vmatpush2.msra.mxu0 0.0
          %1732 = vmatprep.subr.mxu0 0.0
          %1733 = vmatpush2.msra.mxu0 0.0
          %1734 = vmatprep.subr.mxu0 0.0
          %1735 = vmatpush2.msra.mxu0 0.0
          %1736 = vmatprep.subr.mxu0 0.0
          %1737 = vmatpush2.msra.mxu0 0.0
          %1738 = vmatprep.subr.mxu0 0.0
          %1739 = vmatpush2.msra.mxu0 0.0
          %1740 = vmatprep.subr.mxu0 0.0
          %1741 = vmatpush2.msra.mxu0 0.0
          %1742 = vmatprep.subr.mxu0 0.0
          %1743 = vmatpush2.msra.mxu0 0.0
          %1744 = vmatprep.subr.mxu0 0.0
          %1745 = vmatpush2.msra.mxu0 0.0
          %1746 = vmatprep.subr.mxu0 0.0
          %1747 = vmatpush2.msra.mxu0 0.0
          %1748 = vmatprep.subr.mxu0 0.0
          %1749 = vmatpush2.msra.mxu0 0.0
          %1750 = vmatprep.mubr.f32.mxu0 0.0
          %1751 = vmatmul.mubr.f32.gmra.mxu0 %v1091
          %v1752 = vpop.f32.mrf.mxu0
          %v1753 = vadd.f32 %v1683, %v1752
          %v1754 = vpop.f32.mrf.mxu0
          %1755 = vdwg.mxu0
          %v1756 = vld [vmem:[#allocation17] sm:$0x1]
          %v1758 = vlaneseq
          %v1759 = vshrl.u32 %v1758, 7
          %v1760 = vsub.s32 0, %v1759
          %v1761 = vrot.slane %v1756, %v1760
          %v1763 = vadd.f32 %v1753, %v1761
          %v1764 = vtanh.pop %v1763
          %1765 = vst [vmem:[%s14] sm:$0xff] %v1091
          %1766 = vst [vmem:[#allocation2] sm:$0xff] %v1764
        $region120: #{_lambda_.1} parent=71 // pred_fallthru
          _
        %v1767 = vld [vmem:[%s581] sm:$0xff]
        %v1768 = vld [vmem:[%s581 + $0x8] sm:$0xff]
        %v1769 = vld [vmem:[%s581 + $0x10] sm:$0xff]
        %v1770 = vld [vmem:[%s581 + $0x18] sm:$0xff]
        %v1771 = vld [vmem:[%s581 + $0x20] sm:$0xff]
        %v1772 = vld [vmem:[%s581 + $0x28] sm:$0xff]
        %v1773 = vld [vmem:[%s581 + $0x30] sm:$0xff]
        %v1774 = vld [vmem:[%s581 + $0x38] sm:$0xff]
        %v1775 = vld [vmem:[%s581 + $0x40] sm:$0xff]
        %v1776 = vld [vmem:[%s581 + $0x48] sm:$0xff]
        %v1777 = vld [vmem:[%s581 + $0x50] sm:$0xff]
        %v1778 = vld [vmem:[%s581 + $0x58] sm:$0xff]
        %v1779 = vld [vmem:[%s581 + $0x60] sm:$0xff]
        %v1780 = vld [vmem:[%s581 + $0x68] sm:$0xff]
        %v1781 = vld [vmem:[%s581 + $0x70] sm:$0xff]
        %v1782 = vld [vmem:[%s581 + $0x78] sm:$0xff]
        %v1783 = vld [vmem:[%s581 + $0x80] sm:$0xff]
        %v1784 = vld [vmem:[%s581 + $0x88] sm:$0xff]
        %v1785 = vld [vmem:[%s581 + $0x90] sm:$0xff]
        %v1786 = vld [vmem:[%s581 + $0x98] sm:$0xff]
        %v1787 = vld [vmem:[%s581 + $0xa0] sm:$0xff]
        %v1788 = vld [vmem:[%s581 + $0xa8] sm:$0xff]
        %v1789 = vld [vmem:[%s581 + $0xb0] sm:$0xff]
        %v1790 = vld [vmem:[%s581 + $0xb8] sm:$0xff]
        %v1791 = vld [vmem:[%s581 + $0xc0] sm:$0xff]
        %v1792 = vld [vmem:[%s581 + $0xc8] sm:$0xff]
        %v1793 = vld [vmem:[%s581 + $0xd0] sm:$0xff]
        %v1794 = vld [vmem:[%s581 + $0xd8] sm:$0xff]
        %v1795 = vld [vmem:[%s581 + $0xe0] sm:$0xff]
        %v1796 = vld [vmem:[%s581 + $0xe8] sm:$0xff]
        %v1797 = vld [vmem:[%s581 + $0xf0] sm:$0xff]
        %v1798 = vld [vmem:[%s581 + $0xf8] sm:$0xff]
        %v1799 = vld [vmem:[%s581 + $0x100] sm:$0xff]
        %v1800 = vld [vmem:[%s581 + $0x108] sm:$0xff]
        %v1801 = vld [vmem:[%s581 + $0x110] sm:$0xff]
        %v1802 = vld [vmem:[%s581 + $0x118] sm:$0xff]
        %v1803 = vld [vmem:[%s581 + $0x120] sm:$0xff]
        %v1804 = vld [vmem:[%s581 + $0x128] sm:$0xff]
        %v1805 = vld [vmem:[%s581 + $0x130] sm:$0xff]
        %v1806 = vld [vmem:[%s581 + $0x138] sm:$0xff]
        %v1807 = vld [vmem:[%s581 + $0x140] sm:$0xff]
        %v1808 = vld [vmem:[%s581 + $0x148] sm:$0xff]
        %v1809 = vld [vmem:[%s581 + $0x150] sm:$0xff]
        %v1810 = vld [vmem:[%s581 + $0x158] sm:$0xff]
        %v1811 = vld [vmem:[%s581 + $0x160] sm:$0xff]
        %v1812 = vld [vmem:[%s581 + $0x168] sm:$0xff]
        %v1813 = vld [vmem:[%s581 + $0x170] sm:$0xff]
        %v1814 = vld [vmem:[%s581 + $0x178] sm:$0xff]
        %v1815 = vld [vmem:[%s581 + $0x180] sm:$0xff]
        %v1816 = vld [vmem:[%s581 + $0x188] sm:$0xff]
        %v1817 = vld [vmem:[%s581 + $0x190] sm:$0xff]
        %v1818 = vld [vmem:[%s581 + $0x198] sm:$0xff]
        %v1819 = vld [vmem:[%s581 + $0x1a0] sm:$0xff]
        %v1820 = vld [vmem:[%s581 + $0x1a8] sm:$0xff]
        %v1821 = vld [vmem:[%s581 + $0x1b0] sm:$0xff]
        %v1822 = vld [vmem:[%s581 + $0x1b8] sm:$0xff]
        %v1823 = vld [vmem:[%s581 + $0x1c0] sm:$0xff]
        %v1824 = vld [vmem:[%s581 + $0x1c8] sm:$0xff]
        %v1825 = vld [vmem:[%s581 + $0x1d0] sm:$0xff]
        %v1826 = vld [vmem:[%s581 + $0x1d8] sm:$0xff]
        %v1827 = vld [vmem:[%s581 + $0x1e0] sm:$0xff]
        %v1828 = vld [vmem:[%s581 + $0x1e8] sm:$0xff]
        %v1829 = vld [vmem:[%s581 + $0x1f0] sm:$0xff]
        %v1830 = vld [vmem:[%s581 + $0x1f8] sm:$0xff]
        %v1831 = vunpack.c.l.s8.bf16 %v1767
        %v1832 = vunpack.c.l.s8.bf16 %v1768
        %v1833 = vunpack.c.l.s8.bf16 %v1769
        %v1834 = vunpack.c.l.s8.bf16 %v1770
        %v1835 = vunpack.c.l.s8.bf16 %v1771
        %v1836 = vunpack.c.l.s8.bf16 %v1772
        %v1837 = vunpack.c.l.s8.bf16 %v1773
        %v1838 = vunpack.c.l.s8.bf16 %v1774
        %v1839 = vunpack.c.l.s8.bf16 %v1775
        %v1840 = vunpack.c.l.s8.bf16 %v1776
        %v1841 = vunpack.c.l.s8.bf16 %v1777
        %v1842 = vunpack.c.l.s8.bf16 %v1778
        %v1843 = vunpack.c.l.s8.bf16 %v1779
        %v1844 = vunpack.c.l.s8.bf16 %v1780
        %v1845 = vunpack.c.l.s8.bf16 %v1781
        %v1846 = vunpack.c.l.s8.bf16 %v1782
        %v1847 = vunpack.c.h.s8.bf16 %v1767
        %v1848 = vunpack.c.h.s8.bf16 %v1768
        %v1849 = vunpack.c.h.s8.bf16 %v1769
        %v1850 = vunpack.c.h.s8.bf16 %v1770
        %v1851 = vunpack.c.h.s8.bf16 %v1771
        %v1852 = vunpack.c.h.s8.bf16 %v1772
        %v1853 = vunpack.c.h.s8.bf16 %v1773
        %v1854 = vunpack.c.h.s8.bf16 %v1774
        %v1855 = vunpack.c.h.s8.bf16 %v1775
        %v1856 = vunpack.c.h.s8.bf16 %v1776
        %v1857 = vunpack.c.h.s8.bf16 %v1777
        %v1858 = vunpack.c.h.s8.bf16 %v1778
        %v1859 = vunpack.c.h.s8.bf16 %v1779
        %v1860 = vunpack.c.h.s8.bf16 %v1780
        %v1861 = vunpack.c.h.s8.bf16 %v1781
        %v1862 = vunpack.c.h.s8.bf16 %v1782
        %v1863 = vunpack.c.l.s8.bf16 %v1783
        %v1864 = vunpack.c.l.s8.bf16 %v1784
        %v1865 = vunpack.c.l.s8.bf16 %v1785
        %v1866 = vunpack.c.l.s8.bf16 %v1786
        %v1867 = vunpack.c.l.s8.bf16 %v1787
        %v1868 = vunpack.c.l.s8.bf16 %v1788
        %v1869 = vunpack.c.l.s8.bf16 %v1789
        %v1870 = vunpack.c.l.s8.bf16 %v1790
        %v1871 = vunpack.c.l.s8.bf16 %v1791
        %v1872 = vunpack.c.l.s8.bf16 %v1792
        %v1873 = vunpack.c.l.s8.bf16 %v1793
        %v1874 = vunpack.c.l.s8.bf16 %v1794
        %v1875 = vunpack.c.l.s8.bf16 %v1795
        %v1876 = vunpack.c.l.s8.bf16 %v1796
        %v1877 = vunpack.c.l.s8.bf16 %v1797
        %v1878 = vunpack.c.l.s8.bf16 %v1798
        %v1879 = vunpack.c.h.s8.bf16 %v1783
        %v1880 = vunpack.c.h.s8.bf16 %v1784
        %v1881 = vunpack.c.h.s8.bf16 %v1785
        %v1882 = vunpack.c.h.s8.bf16 %v1786
        %v1883 = vunpack.c.h.s8.bf16 %v1787
        %v1884 = vunpack.c.h.s8.bf16 %v1788
        %v1885 = vunpack.c.h.s8.bf16 %v1789
        %v1886 = vunpack.c.h.s8.bf16 %v1790
        %v1887 = vunpack.c.h.s8.bf16 %v1791
        %v1888 = vunpack.c.h.s8.bf16 %v1792
        %v1889 = vunpack.c.h.s8.bf16 %v1793
        %v1890 = vunpack.c.h.s8.bf16 %v1794
        %v1891 = vunpack.c.h.s8.bf16 %v1795
        %v1892 = vunpack.c.h.s8.bf16 %v1796
        %v1893 = vunpack.c.h.s8.bf16 %v1797
        %v1894 = vunpack.c.h.s8.bf16 %v1798
        %v1895 = vunpack.c.l.s8.bf16 %v1799
        %v1896 = vunpack.c.l.s8.bf16 %v1800
        %v1897 = vunpack.c.l.s8.bf16 %v1801
        %v1898 = vunpack.c.l.s8.bf16 %v1802
        %v1899 = vunpack.c.l.s8.bf16 %v1803
        %v1900 = vunpack.c.l.s8.bf16 %v1804
        %v1901 = vunpack.c.l.s8.bf16 %v1805
        %v1902 = vunpack.c.l.s8.bf16 %v1806
        %v1903 = vunpack.c.l.s8.bf16 %v1807
        %v1904 = vunpack.c.l.s8.bf16 %v1808
        %v1905 = vunpack.c.l.s8.bf16 %v1809
        %v1906 = vunpack.c.l.s8.bf16 %v1810
        %v1907 = vunpack.c.l.s8.bf16 %v1811
        %v1908 = vunpack.c.l.s8.bf16 %v1812
        %v1909 = vunpack.c.l.s8.bf16 %v1813
        %v1910 = vunpack.c.l.s8.bf16 %v1814
        %v1911 = vunpack.c.h.s8.bf16 %v1799
        %v1912 = vunpack.c.h.s8.bf16 %v1800
        %v1913 = vunpack.c.h.s8.bf16 %v1801
        %v1914 = vunpack.c.h.s8.bf16 %v1802
        %v1915 = vunpack.c.h.s8.bf16 %v1803
        %v1916 = vunpack.c.h.s8.bf16 %v1804
        %v1917 = vunpack.c.h.s8.bf16 %v1805
        %v1918 = vunpack.c.h.s8.bf16 %v1806
        %v1919 = vunpack.c.h.s8.bf16 %v1807
        %v1920 = vunpack.c.h.s8.bf16 %v1808
        %v1921 = vunpack.c.h.s8.bf16 %v1809
        %v1922 = vunpack.c.h.s8.bf16 %v1810
        %v1923 = vunpack.c.h.s8.bf16 %v1811
        %v1924 = vunpack.c.h.s8.bf16 %v1812
        %v1925 = vunpack.c.h.s8.bf16 %v1813
        %v1926 = vunpack.c.h.s8.bf16 %v1814
        %v1927 = vunpack.c.l.s8.bf16 %v1815
        %v1928 = vunpack.c.l.s8.bf16 %v1816
        %v1929 = vunpack.c.l.s8.bf16 %v1817
        %v1930 = vunpack.c.l.s8.bf16 %v1818
        %v1931 = vunpack.c.l.s8.bf16 %v1819
        %v1932 = vunpack.c.l.s8.bf16 %v1820
        %v1933 = vunpack.c.l.s8.bf16 %v1821
        %v1934 = vunpack.c.l.s8.bf16 %v1822
        %v1935 = vunpack.c.l.s8.bf16 %v1823
        %v1936 = vunpack.c.l.s8.bf16 %v1824
        %v1937 = vunpack.c.l.s8.bf16 %v1825
        %v1938 = vunpack.c.l.s8.bf16 %v1826
        %v1939 = vunpack.c.l.s8.bf16 %v1827
        %v1940 = vunpack.c.l.s8.bf16 %v1828
        %v1941 = vunpack.c.l.s8.bf16 %v1829
        %v1942 = vunpack.c.l.s8.bf16 %v1830
        %v1943 = vunpack.c.h.s8.bf16 %v1815
        %v1944 = vunpack.c.h.s8.bf16 %v1816
        %v1945 = vunpack.c.h.s8.bf16 %v1817
        %v1946 = vunpack.c.h.s8.bf16 %v1818
        %v1947 = vunpack.c.h.s8.bf16 %v1819
        %v1948 = vunpack.c.h.s8.bf16 %v1820
        %v1949 = vunpack.c.h.s8.bf16 %v1821
        %v1950 = vunpack.c.h.s8.bf16 %v1822
        %v1951 = vunpack.c.h.s8.bf16 %v1823
        %v1952 = vunpack.c.h.s8.bf16 %v1824
        %v1953 = vunpack.c.h.s8.bf16 %v1825
        %v1954 = vunpack.c.h.s8.bf16 %v1826
        %v1955 = vunpack.c.h.s8.bf16 %v1827
        %v1956 = vunpack.c.h.s8.bf16 %v1828
        %v1957 = vunpack.c.h.s8.bf16 %v1829
        %v1958 = vunpack.c.h.s8.bf16 %v1830
        %v1959 = vld [vmem:[#allocation2] sm:$0xff]
        %v1960 = vpack.c.bf16 %v1959, %v1959
        %1961 = vmatprep.subr.bf16.mxu0 %v1944
        %1962 = vmatpush1.bf16.msra.mxu0 %v1943
        %1963 = vmatprep.subr.bf16.mxu0 %v1928
        %1964 = vmatpush1.bf16.msra.mxu0 %v1927
        %1965 = vmatprep.subr.bf16.mxu0 %v1912
        %1966 = vmatpush1.bf16.msra.mxu0 %v1911
        %1967 = vmatprep.subr.bf16.mxu0 %v1896
        %1968 = vmatpush1.bf16.msra.mxu0 %v1895
        %1969 = vmatprep.subr.bf16.mxu0 %v1880
        %1970 = vmatpush1.bf16.msra.mxu0 %v1879
        %1971 = vmatprep.subr.bf16.mxu0 %v1864
        %1972 = vmatpush1.bf16.msra.mxu0 %v1863
        %1973 = vmatprep.subr.bf16.mxu0 %v1848
        %1974 = vmatpush1.bf16.msra.mxu0 %v1847
        %1975 = vmatprep.subr.bf16.mxu0 %v1832
        %1976 = vmatpush1.bf16.msra.mxu0 %v1831
        %1977 = vmatprep.subr.bf16.mxu0 0
        %1978 = vmatpush2.bf16.msra.mxu0 0
        %1979 = vmatprep.subr.bf16.mxu0 0
        %1980 = vmatpush2.bf16.msra.mxu0 0
        %1981 = vmatprep.subr.bf16.mxu0 0
        %1982 = vmatpush2.bf16.msra.mxu0 0
        %1983 = vmatprep.subr.bf16.mxu0 0
        %1984 = vmatpush2.bf16.msra.mxu0 0
        %1985 = vmatprep.subr.bf16.mxu0 0
        %1986 = vmatpush2.bf16.msra.mxu0 0
        %1987 = vmatprep.subr.bf16.mxu0 0
        %1988 = vmatpush2.bf16.msra.mxu0 0
        %1989 = vmatprep.subr.bf16.mxu0 0
        %1990 = vmatpush2.bf16.msra.mxu0 0
        %1991 = vmatprep.subr.bf16.mxu0 0
        %1992 = vmatpush2.bf16.msra.mxu0 0
        %1993 = vmatprep.mubr.bf16.mxu0 0
        %1994 = vmatmul.mubr.bf16.gmra.mxu0 %v1960
        %v1995 = vpop.f32.mrf.mxu0
        %v1996 = vadd.f32 0.0, %v1995
        %v1997 = vpop.f32.mrf.mxu0
        %v1998 = vadd.f32 0.0, %v1997
        %v1999 = vpop.f32.mrf.mxu0
        %v2000 = vpop.f32.mrf.mxu0
        %2001 = vdwg.mxu0
        %2002 = vmatprep.subr.bf16.mxu0 %v1946
        %2003 = vmatpush1.bf16.msra.mxu0 %v1945
        %2004 = vmatprep.subr.bf16.mxu0 %v1930
        %2005 = vmatpush1.bf16.msra.mxu0 %v1929
        %2006 = vmatprep.subr.bf16.mxu0 %v1914
        %2007 = vmatpush1.bf16.msra.mxu0 %v1913
        %2008 = vmatprep.subr.bf16.mxu0 %v1898
        %2009 = vmatpush1.bf16.msra.mxu0 %v1897
        %2010 = vmatprep.subr.bf16.mxu0 %v1882
        %2011 = vmatpush1.bf16.msra.mxu0 %v1881
        %2012 = vmatprep.subr.bf16.mxu0 %v1866
        %2013 = vmatpush1.bf16.msra.mxu0 %v1865
        %2014 = vmatprep.subr.bf16.mxu0 %v1850
        %2015 = vmatpush1.bf16.msra.mxu0 %v1849
        %2016 = vmatprep.subr.bf16.mxu0 %v1834
        %2017 = vmatpush1.bf16.msra.mxu0 %v1833
        %2018 = vmatprep.subr.bf16.mxu0 0
        %2019 = vmatpush2.bf16.msra.mxu0 0
        %2020 = vmatprep.subr.bf16.mxu0 0
        %2021 = vmatpush2.bf16.msra.mxu0 0
        %2022 = vmatprep.subr.bf16.mxu0 0
        %2023 = vmatpush2.bf16.msra.mxu0 0
        %2024 = vmatprep.subr.bf16.mxu0 0
        %2025 = vmatpush2.bf16.msra.mxu0 0
        %2026 = vmatprep.subr.bf16.mxu0 0
        %2027 = vmatpush2.bf16.msra.mxu0 0
        %2028 = vmatprep.subr.bf16.mxu0 0
        %2029 = vmatpush2.bf16.msra.mxu0 0
        %2030 = vmatprep.subr.bf16.mxu0 0
        %2031 = vmatpush2.bf16.msra.mxu0 0
        %2032 = vmatprep.subr.bf16.mxu0 0
        %2033 = vmatpush2.bf16.msra.mxu0 0
        %2034 = vmatprep.mubr.bf16.mxu0 0
        %2035 = vmatmul.mubr.bf16.gmra.mxu0 %v1960
        %v2036 = vpop.f32.mrf.mxu0
        %v2037 = vadd.f32 0.0, %v2036
        %v2038 = vpop.f32.mrf.mxu0
        %v2039 = vadd.f32 0.0, %v2038
        %v2040 = vpop.f32.mrf.mxu0
        %v2041 = vpop.f32.mrf.mxu0
        %2042 = vdwg.mxu0
        %2043 = vmatprep.subr.bf16.mxu0 %v1948
        %2044 = vmatpush1.bf16.msra.mxu0 %v1947
        %2045 = vmatprep.subr.bf16.mxu0 %v1932
        %2046 = vmatpush1.bf16.msra.mxu0 %v1931
        %2047 = vmatprep.subr.bf16.mxu0 %v1916
        %2048 = vmatpush1.bf16.msra.mxu0 %v1915
        %2049 = vmatprep.subr.bf16.mxu0 %v1900
        %2050 = vmatpush1.bf16.msra.mxu0 %v1899
        %2051 = vmatprep.subr.bf16.mxu0 %v1884
        %2052 = vmatpush1.bf16.msra.mxu0 %v1883
        %2053 = vmatprep.subr.bf16.mxu0 %v1868
        %2054 = vmatpush1.bf16.msra.mxu0 %v1867
        %2055 = vmatprep.subr.bf16.mxu0 %v1852
        %2056 = vmatpush1.bf16.msra.mxu0 %v1851
        %2057 = vmatprep.subr.bf16.mxu0 %v1836
        %2058 = vmatpush1.bf16.msra.mxu0 %v1835
        %2059 = vmatprep.subr.bf16.mxu0 0
        %2060 = vmatpush2.bf16.msra.mxu0 0
        %2061 = vmatprep.subr.bf16.mxu0 0
        %2062 = vmatpush2.bf16.msra.mxu0 0
        %2063 = vmatprep.subr.bf16.mxu0 0
        %2064 = vmatpush2.bf16.msra.mxu0 0
        %2065 = vmatprep.subr.bf16.mxu0 0
        %2066 = vmatpush2.bf16.msra.mxu0 0
        %2067 = vmatprep.subr.bf16.mxu0 0
        %2068 = vmatpush2.bf16.msra.mxu0 0
        %2069 = vmatprep.subr.bf16.mxu0 0
        %2070 = vmatpush2.bf16.msra.mxu0 0
        %2071 = vmatprep.subr.bf16.mxu0 0
        %2072 = vmatpush2.bf16.msra.mxu0 0
        %2073 = vmatprep.subr.bf16.mxu0 0
        %2074 = vmatpush2.bf16.msra.mxu0 0
        %2075 = vmatprep.mubr.bf16.mxu0 0
        %2076 = vmatmul.mubr.bf16.gmra.mxu0 %v1960
        %v2077 = vpop.f32.mrf.mxu0
        %v2078 = vadd.f32 0.0, %v2077
        %v2079 = vpop.f32.mrf.mxu0
        %v2080 = vadd.f32 0.0, %v2079
        %v2081 = vpop.f32.mrf.mxu0
        %v2082 = vpop.f32.mrf.mxu0
        %2083 = vdwg.mxu0
        %2084 = vmatprep.subr.bf16.mxu0 %v1950
        %2085 = vmatpush1.bf16.msra.mxu0 %v1949
        %2086 = vmatprep.subr.bf16.mxu0 %v1934
        %2087 = vmatpush1.bf16.msra.mxu0 %v1933
        %2088 = vmatprep.subr.bf16.mxu0 %v1918
        %2089 = vmatpush1.bf16.msra.mxu0 %v1917
        %2090 = vmatprep.subr.bf16.mxu0 %v1902
        %2091 = vmatpush1.bf16.msra.mxu0 %v1901
        %2092 = vmatprep.subr.bf16.mxu0 %v1886
        %2093 = vmatpush1.bf16.msra.mxu0 %v1885
        %2094 = vmatprep.subr.bf16.mxu0 %v1870
        %2095 = vmatpush1.bf16.msra.mxu0 %v1869
        %2096 = vmatprep.subr.bf16.mxu0 %v1854
        %2097 = vmatpush1.bf16.msra.mxu0 %v1853
        %2098 = vmatprep.subr.bf16.mxu0 %v1838
        %2099 = vmatpush1.bf16.msra.mxu0 %v1837
        %2100 = vmatprep.subr.bf16.mxu0 0
        %2101 = vmatpush2.bf16.msra.mxu0 0
        %2102 = vmatprep.subr.bf16.mxu0 0
        %2103 = vmatpush2.bf16.msra.mxu0 0
        %2104 = vmatprep.subr.bf16.mxu0 0
        %2105 = vmatpush2.bf16.msra.mxu0 0
        %2106 = vmatprep.subr.bf16.mxu0 0
        %2107 = vmatpush2.bf16.msra.mxu0 0
        %2108 = vmatprep.subr.bf16.mxu0 0
        %2109 = vmatpush2.bf16.msra.mxu0 0
        %2110 = vmatprep.subr.bf16.mxu0 0
        %2111 = vmatpush2.bf16.msra.mxu0 0
        %2112 = vmatprep.subr.bf16.mxu0 0
        %2113 = vmatpush2.bf16.msra.mxu0 0
        %2114 = vmatprep.subr.bf16.mxu0 0
        %2115 = vmatpush2.bf16.msra.mxu0 0
        %2116 = vmatprep.mubr.bf16.mxu0 0
        %2117 = vmatmul.mubr.bf16.gmra.mxu0 %v1960
        %v2118 = vpop.f32.mrf.mxu0
        %v2119 = vadd.f32 0.0, %v2118
        %v2120 = vpop.f32.mrf.mxu0
        %v2121 = vadd.f32 0.0, %v2120
        %v2122 = vpop.f32.mrf.mxu0
        %v2123 = vpop.f32.mrf.mxu0
        %2124 = vdwg.mxu0
        %2125 = vmatprep.subr.bf16.mxu0 %v1952
        %2126 = vmatpush1.bf16.msra.mxu0 %v1951
        %2127 = vmatprep.subr.bf16.mxu0 %v1936
        %2128 = vmatpush1.bf16.msra.mxu0 %v1935
        %2129 = vmatprep.subr.bf16.mxu0 %v1920
        %2130 = vmatpush1.bf16.msra.mxu0 %v1919
        %2131 = vmatprep.subr.bf16.mxu0 %v1904
        %2132 = vmatpush1.bf16.msra.mxu0 %v1903
        %2133 = vmatprep.subr.bf16.mxu0 %v1888
        %2134 = vmatpush1.bf16.msra.mxu0 %v1887
        %2135 = vmatprep.subr.bf16.mxu0 %v1872
        %2136 = vmatpush1.bf16.msra.mxu0 %v1871
        %2137 = vmatprep.subr.bf16.mxu0 %v1856
        %2138 = vmatpush1.bf16.msra.mxu0 %v1855
        %2139 = vmatprep.subr.bf16.mxu0 %v1840
        %2140 = vmatpush1.bf16.msra.mxu0 %v1839
        %2141 = vmatprep.subr.bf16.mxu0 0
        %2142 = vmatpush2.bf16.msra.mxu0 0
        %2143 = vmatprep.subr.bf16.mxu0 0
        %2144 = vmatpush2.bf16.msra.mxu0 0
        %2145 = vmatprep.subr.bf16.mxu0 0
        %2146 = vmatpush2.bf16.msra.mxu0 0
        %2147 = vmatprep.subr.bf16.mxu0 0
        %2148 = vmatpush2.bf16.msra.mxu0 0
        %2149 = vmatprep.subr.bf16.mxu0 0
        %2150 = vmatpush2.bf16.msra.mxu0 0
        %2151 = vmatprep.subr.bf16.mxu0 0
        %2152 = vmatpush2.bf16.msra.mxu0 0
        %2153 = vmatprep.subr.bf16.mxu0 0
        %2154 = vmatpush2.bf16.msra.mxu0 0
        %2155 = vmatprep.subr.bf16.mxu0 0
        %2156 = vmatpush2.bf16.msra.mxu0 0
        %2157 = vmatprep.mubr.bf16.mxu0 0
        %2158 = vmatmul.mubr.bf16.gmra.mxu0 %v1960
        %v2159 = vpop.f32.mrf.mxu0
        %v2160 = vadd.f32 0.0, %v2159
        %v2161 = vpop.f32.mrf.mxu0
        %v2162 = vadd.f32 0.0, %v2161
        %v2163 = vpop.f32.mrf.mxu0
        %v2164 = vpop.f32.mrf.mxu0
        %2165 = vdwg.mxu0
        %2166 = vmatprep.subr.bf16.mxu0 %v1954
        %2167 = vmatpush1.bf16.msra.mxu0 %v1953
        %2168 = vmatprep.subr.bf16.mxu0 %v1938
        %2169 = vmatpush1.bf16.msra.mxu0 %v1937
        %2170 = vmatprep.subr.bf16.mxu0 %v1922
        %2171 = vmatpush1.bf16.msra.mxu0 %v1921
        %2172 = vmatprep.subr.bf16.mxu0 %v1906
        %2173 = vmatpush1.bf16.msra.mxu0 %v1905
        %2174 = vmatprep.subr.bf16.mxu0 %v1890
        %2175 = vmatpush1.bf16.msra.mxu0 %v1889
        %2176 = vmatprep.subr.bf16.mxu0 %v1874
        %2177 = vmatpush1.bf16.msra.mxu0 %v1873
        %2178 = vmatprep.subr.bf16.mxu0 %v1858
        %2179 = vmatpush1.bf16.msra.mxu0 %v1857
        %2180 = vmatprep.subr.bf16.mxu0 %v1842
        %2181 = vmatpush1.bf16.msra.mxu0 %v1841
        %2182 = vmatprep.subr.bf16.mxu0 0
        %2183 = vmatpush2.bf16.msra.mxu0 0
        %2184 = vmatprep.subr.bf16.mxu0 0
        %2185 = vmatpush2.bf16.msra.mxu0 0
        %2186 = vmatprep.subr.bf16.mxu0 0
        %2187 = vmatpush2.bf16.msra.mxu0 0
        %2188 = vmatprep.subr.bf16.mxu0 0
        %2189 = vmatpush2.bf16.msra.mxu0 0
        %2190 = vmatprep.subr.bf16.mxu0 0
        %2191 = vmatpush2.bf16.msra.mxu0 0
        %2192 = vmatprep.subr.bf16.mxu0 0
        %2193 = vmatpush2.bf16.msra.mxu0 0
        %2194 = vmatprep.subr.bf16.mxu0 0
        %2195 = vmatpush2.bf16.msra.mxu0 0
        %2196 = vmatprep.subr.bf16.mxu0 0
        %2197 = vmatpush2.bf16.msra.mxu0 0
        %2198 = vmatprep.mubr.bf16.mxu0 0
        %2199 = vmatmul.mubr.bf16.gmra.mxu0 %v1960
        %v2200 = vpop.f32.mrf.mxu0
        %v2201 = vadd.f32 0.0, %v2200
        %v2202 = vpop.f32.mrf.mxu0
        %v2203 = vadd.f32 0.0, %v2202
        %v2204 = vpop.f32.mrf.mxu0
        %v2205 = vpop.f32.mrf.mxu0
        %2206 = vdwg.mxu0
        %2207 = vmatprep.subr.bf16.mxu0 %v1956
        %2208 = vmatpush1.bf16.msra.mxu0 %v1955
        %2209 = vmatprep.subr.bf16.mxu0 %v1940
        %2210 = vmatpush1.bf16.msra.mxu0 %v1939
        %2211 = vmatprep.subr.bf16.mxu0 %v1924
        %2212 = vmatpush1.bf16.msra.mxu0 %v1923
        %2213 = vmatprep.subr.bf16.mxu0 %v1908
        %2214 = vmatpush1.bf16.msra.mxu0 %v1907
        %2215 = vmatprep.subr.bf16.mxu0 %v1892
        %2216 = vmatpush1.bf16.msra.mxu0 %v1891
        %2217 = vmatprep.subr.bf16.mxu0 %v1876
        %2218 = vmatpush1.bf16.msra.mxu0 %v1875
        %2219 = vmatprep.subr.bf16.mxu0 %v1860
        %2220 = vmatpush1.bf16.msra.mxu0 %v1859
        %2221 = vmatprep.subr.bf16.mxu0 %v1844
        %2222 = vmatpush1.bf16.msra.mxu0 %v1843
        %2223 = vmatprep.subr.bf16.mxu0 0
        %2224 = vmatpush2.bf16.msra.mxu0 0
        %2225 = vmatprep.subr.bf16.mxu0 0
        %2226 = vmatpush2.bf16.msra.mxu0 0
        %2227 = vmatprep.subr.bf16.mxu0 0
        %2228 = vmatpush2.bf16.msra.mxu0 0
        %2229 = vmatprep.subr.bf16.mxu0 0
        %2230 = vmatpush2.bf16.msra.mxu0 0
        %2231 = vmatprep.subr.bf16.mxu0 0
        %2232 = vmatpush2.bf16.msra.mxu0 0
        %2233 = vmatprep.subr.bf16.mxu0 0
        %2234 = vmatpush2.bf16.msra.mxu0 0
        %2235 = vmatprep.subr.bf16.mxu0 0
        %2236 = vmatpush2.bf16.msra.mxu0 0
        %2237 = vmatprep.subr.bf16.mxu0 0
        %2238 = vmatpush2.bf16.msra.mxu0 0
        %2239 = vmatprep.mubr.bf16.mxu0 0
        %2240 = vmatmul.mubr.bf16.gmra.mxu0 %v1960
        %v2241 = vpop.f32.mrf.mxu0
        %v2242 = vadd.f32 0.0, %v2241
        %v2243 = vpop.f32.mrf.mxu0
        %v2244 = vadd.f32 0.0, %v2243
        %v2245 = vpop.f32.mrf.mxu0
        %v2246 = vpop.f32.mrf.mxu0
        %2247 = vdwg.mxu0
        %2248 = vmatprep.subr.bf16.mxu0 %v1958
        %2249 = vmatpush1.bf16.msra.mxu0 %v1957
        %2250 = vmatprep.subr.bf16.mxu0 %v1942
        %2251 = vmatpush1.bf16.msra.mxu0 %v1941
        %2252 = vmatprep.subr.bf16.mxu0 %v1926
        %2253 = vmatpush1.bf16.msra.mxu0 %v1925
        %2254 = vmatprep.subr.bf16.mxu0 %v1910
        %2255 = vmatpush1.bf16.msra.mxu0 %v1909
        %2256 = vmatprep.subr.bf16.mxu0 %v1894
        %2257 = vmatpush1.bf16.msra.mxu0 %v1893
        %2258 = vmatprep.subr.bf16.mxu0 %v1878
        %2259 = vmatpush1.bf16.msra.mxu0 %v1877
        %2260 = vmatprep.subr.bf16.mxu0 %v1862
        %2261 = vmatpush1.bf16.msra.mxu0 %v1861
        %2262 = vmatprep.subr.bf16.mxu0 %v1846
        %2263 = vmatpush1.bf16.msra.mxu0 %v1845
        %2264 = vmatprep.subr.bf16.mxu0 0
        %2265 = vmatpush2.bf16.msra.mxu0 0
        %2266 = vmatprep.subr.bf16.mxu0 0
        %2267 = vmatpush2.bf16.msra.mxu0 0
        %2268 = vmatprep.subr.bf16.mxu0 0
        %2269 = vmatpush2.bf16.msra.mxu0 0
        %2270 = vmatprep.subr.bf16.mxu0 0
        %2271 = vmatpush2.bf16.msra.mxu0 0
        %2272 = vmatprep.subr.bf16.mxu0 0
        %2273 = vmatpush2.bf16.msra.mxu0 0
        %2274 = vmatprep.subr.bf16.mxu0 0
        %2275 = vmatpush2.bf16.msra.mxu0 0
        %2276 = vmatprep.subr.bf16.mxu0 0
        %2277 = vmatpush2.bf16.msra.mxu0 0
        %2278 = vmatprep.subr.bf16.mxu0 0
        %2279 = vmatpush2.bf16.msra.mxu0 0
        %2280 = vmatprep.mubr.bf16.mxu0 0
        %2281 = vmatmul.mubr.bf16.gmra.mxu0 %v1960
        %v2282 = vpop.f32.mrf.mxu0
        %v2283 = vadd.f32 0.0, %v2282
        %v2284 = vpop.f32.mrf.mxu0
        %v2285 = vadd.f32 0.0, %v2284
        %v2286 = vpop.f32.mrf.mxu0
        %v2287 = vpop.f32.mrf.mxu0
        %2288 = vdwg.mxu0
        %v2289 = vld [vmem:[%s590] sm:$0xff]
        %v2290 = vld [vmem:[%s590 + $0x8] sm:$0xff]
        %v2293 = vlaneseq
        %v2294 = vshrl.u32 %v2293, 7
        %v2295 = vsub.s32 0, %v2294
        %v2296 = vrot.slane %v2289, %v2295
        %v2297 = vlaneseq
        %v2298 = vshrl.u32 %v2297, 7
        %v2299 = vsub.s32 1, %v2298
        %v2300 = vrot.slane %v2289, %v2299
        %v2301 = vlaneseq
        %v2302 = vshrl.u32 %v2301, 7
        %v2303 = vsub.s32 2, %v2302
        %v2304 = vrot.slane %v2289, %v2303
        %v2305 = vlaneseq
        %v2306 = vshrl.u32 %v2305, 7
        %v2307 = vsub.s32 3, %v2306
        %v2308 = vrot.slane %v2289, %v2307
        %v2309 = vlaneseq
        %v2310 = vshrl.u32 %v2309, 7
        %v2311 = vsub.s32 4, %v2310
        %v2312 = vrot.slane %v2289, %v2311
        %v2313 = vlaneseq
        %v2314 = vshrl.u32 %v2313, 7
        %v2315 = vsub.s32 5, %v2314
        %v2316 = vrot.slane %v2289, %v2315
        %v2317 = vlaneseq
        %v2318 = vshrl.u32 %v2317, 7
        %v2319 = vsub.s32 6, %v2318
        %v2320 = vrot.slane %v2289, %v2319
        %v2321 = vlaneseq
        %v2322 = vshrl.u32 %v2321, 7
        %v2323 = vsub.s32 7, %v2322
        %v2324 = vrot.slane %v2289, %v2323
        %v2325 = vlaneseq
        %v2326 = vshrl.u32 %v2325, 7
        %v2327 = vsub.s32 0, %v2326
        %v2328 = vrot.slane %v2290, %v2327
        %v2329 = vlaneseq
        %v2330 = vshrl.u32 %v2329, 7
        %v2331 = vsub.s32 1, %v2330
        %v2332 = vrot.slane %v2290, %v2331
        %v2333 = vlaneseq
        %v2334 = vshrl.u32 %v2333, 7
        %v2335 = vsub.s32 2, %v2334
        %v2336 = vrot.slane %v2290, %v2335
        %v2337 = vlaneseq
        %v2338 = vshrl.u32 %v2337, 7
        %v2339 = vsub.s32 3, %v2338
        %v2340 = vrot.slane %v2290, %v2339
        %v2341 = vlaneseq
        %v2342 = vshrl.u32 %v2341, 7
        %v2343 = vsub.s32 4, %v2342
        %v2344 = vrot.slane %v2290, %v2343
        %v2345 = vlaneseq
        %v2346 = vshrl.u32 %v2345, 7
        %v2347 = vsub.s32 5, %v2346
        %v2348 = vrot.slane %v2290, %v2347
        %v2349 = vlaneseq
        %v2350 = vshrl.u32 %v2349, 7
        %v2351 = vsub.s32 6, %v2350
        %v2352 = vrot.slane %v2290, %v2351
        %v2353 = vlaneseq
        %v2354 = vshrl.u32 %v2353, 7
        %v2355 = vsub.s32 7, %v2354
        %v2356 = vrot.slane %v2290, %v2355
        %v2373 = vmul.f32 %v1996, %v2296
        %v2374 = vmul.f32 %v1998, %v2300
        %v2375 = vmul.f32 %v2037, %v2304
        %v2376 = vmul.f32 %v2039, %v2308
        %v2377 = vmul.f32 %v2078, %v2312
        %v2378 = vmul.f32 %v2080, %v2316
        %v2379 = vmul.f32 %v2119, %v2320
        %v2380 = vmul.f32 %v2121, %v2324
        %v2381 = vmul.f32 %v2160, %v2328
        %v2382 = vmul.f32 %v2162, %v2332
        %v2383 = vmul.f32 %v2201, %v2336
        %v2384 = vmul.f32 %v2203, %v2340
        %v2385 = vmul.f32 %v2242, %v2344
        %v2386 = vmul.f32 %v2244, %v2348
        %v2387 = vmul.f32 %v2283, %v2352
        %v2388 = vmul.f32 %v2285, %v2356
        %v2389 = vld [vmem:[%s599] sm:$0xff]
        %v2390 = vld [vmem:[%s599 + $0x8] sm:$0xff]
        %v2393 = vlaneseq
        %v2394 = vshrl.u32 %v2393, 7
        %v2395 = vsub.s32 0, %v2394
        %v2396 = vrot.slane %v2389, %v2395
        %v2397 = vlaneseq
        %v2398 = vshrl.u32 %v2397, 7
        %v2399 = vsub.s32 1, %v2398
        %v2400 = vrot.slane %v2389, %v2399
        %v2401 = vlaneseq
        %v2402 = vshrl.u32 %v2401, 7
        %v2403 = vsub.s32 2, %v2402
        %v2404 = vrot.slane %v2389, %v2403
        %v2405 = vlaneseq
        %v2406 = vshrl.u32 %v2405, 7
        %v2407 = vsub.s32 3, %v2406
        %v2408 = vrot.slane %v2389, %v2407
        %v2409 = vlaneseq
        %v2410 = vshrl.u32 %v2409, 7
        %v2411 = vsub.s32 4, %v2410
        %v2412 = vrot.slane %v2389, %v2411
        %v2413 = vlaneseq
        %v2414 = vshrl.u32 %v2413, 7
        %v2415 = vsub.s32 5, %v2414
        %v2416 = vrot.slane %v2389, %v2415
        %v2417 = vlaneseq
        %v2418 = vshrl.u32 %v2417, 7
        %v2419 = vsub.s32 6, %v2418
        %v2420 = vrot.slane %v2389, %v2419
        %v2421 = vlaneseq
        %v2422 = vshrl.u32 %v2421, 7
        %v2423 = vsub.s32 7, %v2422
        %v2424 = vrot.slane %v2389, %v2423
        %v2425 = vlaneseq
        %v2426 = vshrl.u32 %v2425, 7
        %v2427 = vsub.s32 0, %v2426
        %v2428 = vrot.slane %v2390, %v2427
        %v2429 = vlaneseq
        %v2430 = vshrl.u32 %v2429, 7
        %v2431 = vsub.s32 1, %v2430
        %v2432 = vrot.slane %v2390, %v2431
        %v2433 = vlaneseq
        %v2434 = vshrl.u32 %v2433, 7
        %v2435 = vsub.s32 2, %v2434
        %v2436 = vrot.slane %v2390, %v2435
        %v2437 = vlaneseq
        %v2438 = vshrl.u32 %v2437, 7
        %v2439 = vsub.s32 3, %v2438
        %v2440 = vrot.slane %v2390, %v2439
        %v2441 = vlaneseq
        %v2442 = vshrl.u32 %v2441, 7
        %v2443 = vsub.s32 4, %v2442
        %v2444 = vrot.slane %v2390, %v2443
        %v2445 = vlaneseq
        %v2446 = vshrl.u32 %v2445, 7
        %v2447 = vsub.s32 5, %v2446
        %v2448 = vrot.slane %v2390, %v2447
        %v2449 = vlaneseq
        %v2450 = vshrl.u32 %v2449, 7
        %v2451 = vsub.s32 6, %v2450
        %v2452 = vrot.slane %v2390, %v2451
        %v2453 = vlaneseq
        %v2454 = vshrl.u32 %v2453, 7
        %v2455 = vsub.s32 7, %v2454
        %v2456 = vrot.slane %v2390, %v2455
        %v2473 = vadd.f32 %v2373, %v2396
        %v2474 = vadd.f32 %v2374, %v2400
        %v2475 = vadd.f32 %v2375, %v2404
        %v2476 = vadd.f32 %v2376, %v2408
        %v2477 = vadd.f32 %v2377, %v2412
        %v2478 = vadd.f32 %v2378, %v2416
        %v2479 = vadd.f32 %v2379, %v2420
        %v2480 = vadd.f32 %v2380, %v2424
        %v2481 = vadd.f32 %v2381, %v2428
        %v2482 = vadd.f32 %v2382, %v2432
        %v2483 = vadd.f32 %v2383, %v2436
        %v2484 = vadd.f32 %v2384, %v2440
        %v2485 = vadd.f32 %v2385, %v2444
        %v2486 = vadd.f32 %v2386, %v2448
        %v2487 = vadd.f32 %v2387, %v2452
        %v2488 = vadd.f32 %v2388, %v2456
        %s2489 = smul.u32 %s31, 16
        %s2490 = smul.addr %s2489, 8
        %s2491 = scalar_lea.vmem [#allocation3], %s2490
        %2492 = vst [vmem:[%s2491] sm:$0xff] %v2473
        %2493 = vst [vmem:[%s2491 + $0x8] sm:$0xff] %v2474
        %2494 = vst [vmem:[%s2491 + $0x10] sm:$0xff] %v2475
        %2495 = vst [vmem:[%s2491 + $0x18] sm:$0xff] %v2476
        %2496 = vst [vmem:[%s2491 + $0x20] sm:$0xff] %v2477
        %2497 = vst [vmem:[%s2491 + $0x28] sm:$0xff] %v2478
        %2498 = vst [vmem:[%s2491 + $0x30] sm:$0xff] %v2479
        %2499 = vst [vmem:[%s2491 + $0x38] sm:$0xff] %v2480
        %2500 = vst [vmem:[%s2491 + $0x40] sm:$0xff] %v2481
        %2501 = vst [vmem:[%s2491 + $0x48] sm:$0xff] %v2482
        %2502 = vst [vmem:[%s2491 + $0x50] sm:$0xff] %v2483
        %2503 = vst [vmem:[%s2491 + $0x58] sm:$0xff] %v2484
        %2504 = vst [vmem:[%s2491 + $0x60] sm:$0xff] %v2485
        %2505 = vst [vmem:[%s2491 + $0x68] sm:$0xff] %v2486
        %2506 = vst [vmem:[%s2491 + $0x70] sm:$0xff] %v2487
        %2507 = vst [vmem:[%s2491 + $0x78] sm:$0xff] %v2488
        %v2508 = vmax.f32 %v2473, %v2477
        %v2509 = vmax.f32 %v2474, %v2478
        %v2510 = vmax.f32 %v2475, %v2479
        %v2511 = vmax.f32 %v2476, %v2480
        %v2512 = vmax.f32 %v2508, %v2481
        %v2513 = vmax.f32 %v2509, %v2482
        %v2514 = vmax.f32 %v2510, %v2483
        %v2515 = vmax.f32 %v2511, %v2484
        %v2516 = vmax.f32 %v2512, %v2485
        %v2517 = vmax.f32 %v2513, %v2486
        %v2518 = vmax.f32 %v2514, %v2487
        %v2519 = vmax.f32 %v2515, %v2488
        %v2520 = vmax.f32 %v2516, %v2517
        %v2521 = vmax.f32 %v2518, %v2519
        %v2522 = vmax.f32 %v2520, %v2521
        %2523 = vmax.xlane.f32.xlu0 %v2522
        %v2524 = vpop.xlane.xlu0 %2523
        // Predicated region
        $region121: #{_lambda_.1} parent=71 // pred_check
          %p2525 = pneg %p653
        $region122: #{_lambda_.1} parent=71 // pred_check_branch
          %2527 = sbr.rel (%p2525) target = $region124
        $region123: #{_lambda_.1} parent=71 // pred_region
          %vm2528 = vcmask 7168
          %2529 = vst.msk [vmem:[#allocation4] sm:$0xff] %vm2528, %v2524
          %v2530 = vsub.f32 %v2473, %v2524
          %v2531 = vsub.f32 %v2474, %v2524
          %v2532 = vsub.f32 %v2475, %v2524
          %v2533 = vsub.f32 %v2476, %v2524
          %v2534 = vsub.f32 %v2477, %v2524
          %v2535 = vsub.f32 %v2478, %v2524
          %v2536 = vsub.f32 %v2479, %v2524
          %v2537 = vsub.f32 %v2480, %v2524
          %v2538 = vsub.f32 %v2481, %v2524
          %v2539 = vsub.f32 %v2482, %v2524
          %v2540 = vsub.f32 %v2483, %v2524
          %v2541 = vsub.f32 %v2484, %v2524
          %v2542 = vsub.f32 %v2485, %v2524
          %v2543 = vsub.f32 %v2486, %v2524
          %v2544 = vsub.f32 %v2487, %v2524
          %v2545 = vsub.f32 %v2488, %v2524
          %v2546 = vmul.f32 %v2530, 1.442695
          %v2547 = vpow.pop %v2546
          %v2548 = vmul.f32 %v2531, 1.442695
          %v2549 = vpow.pop %v2548
          %v2550 = vmul.f32 %v2532, 1.442695
          %v2551 = vpow.pop %v2550
          %v2552 = vmul.f32 %v2533, 1.442695
          %v2553 = vpow.pop %v2552
          %v2554 = vmul.f32 %v2534, 1.442695
          %v2555 = vpow.pop %v2554
          %v2556 = vmul.f32 %v2535, 1.442695
          %v2557 = vpow.pop %v2556
          %v2558 = vmul.f32 %v2536, 1.442695
          %v2559 = vpow.pop %v2558
          %v2560 = vmul.f32 %v2537, 1.442695
          %v2561 = vpow.pop %v2560
          %v2562 = vmul.f32 %v2538, 1.442695
          %v2563 = vpow.pop %v2562
          %v2564 = vmul.f32 %v2539, 1.442695
          %v2565 = vpow.pop %v2564
          %v2566 = vmul.f32 %v2540, 1.442695
          %v2567 = vpow.pop %v2566
          %v2568 = vmul.f32 %v2541, 1.442695
          %v2569 = vpow.pop %v2568
          %v2570 = vmul.f32 %v2542, 1.442695
          %v2571 = vpow.pop %v2570
          %v2572 = vmul.f32 %v2543, 1.442695
          %v2573 = vpow.pop %v2572
          %v2574 = vmul.f32 %v2544, 1.442695
          %v2575 = vpow.pop %v2574
          %v2576 = vmul.f32 %v2545, 1.442695
          %v2577 = vpow.pop %v2576
          %v2578 = vadd.f32 %v2547, %v2549
          %v2579 = vadd.f32 %v2578, %v2551
          %v2580 = vadd.f32 %v2579, %v2553
          %v2581 = vadd.f32 %v2580, %v2555
          %v2582 = vadd.f32 %v2581, %v2557
          %v2583 = vadd.f32 %v2582, %v2559
          %v2584 = vadd.f32 %v2583, %v2561
          %v2585 = vadd.f32 %v2584, %v2563
          %v2586 = vadd.f32 %v2585, %v2565
          %v2587 = vadd.f32 %v2586, %v2567
          %v2588 = vadd.f32 %v2587, %v2569
          %v2589 = vadd.f32 %v2588, %v2571
          %v2590 = vadd.f32 %v2589, %v2573
          %v2591 = vadd.f32 %v2590, %v2575
          %v2592 = vadd.f32 %v2591, %v2577
          %2593 = vadd.xlane.f32.xlu0 %v2592
          %v2594 = vpop.xlane.xlu0 %2593
          %2595 = vst.msk [vmem:[#allocation5] sm:$0xff] %vm2528, %v2594
        $region124: #{_lambda_.1} parent=71 // pred_fallthru
          _
        %p2596 = scmp.gt.s32.totalorder %s31, 0
        // Predicated region
        $region125: #{_lambda_.1} parent=71 // pred_check
          %p2597 = pneg %p2596
        $region126: #{_lambda_.1} parent=71 // pred_check_branch
          %2599 = sbr.rel (%p2597) target = $region128
        $region127: #{_lambda_.1} parent=71 // pred_region
          %v2600 = vld [vmem:[#allocation4] sm:$0xff]
          %v2601 = vmax.f32 %v2600, %v2524
          %v2602 = vld [vmem:[#allocation5] sm:$0xff]
          %v2603 = vsub.f32 %v2600, %v2601
          %v2604 = vmul.f32 %v2603, 1.442695
          %v2605 = vpow.pop %v2604
          %v2606 = vmul.f32 %v2602, %v2605
          %2608 = vset.pattern.permute.xlu0 0
          %2609 = vperm.xlu0 %2608, %v2601
          %v2610 = vpop.permute.xlu0 %2609
          %v2612 = vsub.f32 %v2473, %v2610
          %v2613 = vsub.f32 %v2474, %v2610
          %v2614 = vsub.f32 %v2475, %v2610
          %v2615 = vsub.f32 %v2476, %v2610
          %v2616 = vsub.f32 %v2477, %v2610
          %v2617 = vsub.f32 %v2478, %v2610
          %v2618 = vsub.f32 %v2479, %v2610
          %v2619 = vsub.f32 %v2480, %v2610
          %v2620 = vsub.f32 %v2481, %v2610
          %v2621 = vsub.f32 %v2482, %v2610
          %v2622 = vsub.f32 %v2483, %v2610
          %v2623 = vsub.f32 %v2484, %v2610
          %v2624 = vsub.f32 %v2485, %v2610
          %v2625 = vsub.f32 %v2486, %v2610
          %v2626 = vsub.f32 %v2487, %v2610
          %v2627 = vsub.f32 %v2488, %v2610
          %v2628 = vmul.f32 %v2612, 1.442695
          %v2629 = vpow.pop %v2628
          %v2630 = vmul.f32 %v2613, 1.442695
          %v2631 = vpow.pop %v2630
          %v2632 = vmul.f32 %v2614, 1.442695
          %v2633 = vpow.pop %v2632
          %v2634 = vmul.f32 %v2615, 1.442695
          %v2635 = vpow.pop %v2634
          %v2636 = vmul.f32 %v2616, 1.442695
          %v2637 = vpow.pop %v2636
          %v2638 = vmul.f32 %v2617, 1.442695
          %v2639 = vpow.pop %v2638
          %v2640 = vmul.f32 %v2618, 1.442695
          %v2641 = vpow.pop %v2640
          %v2642 = vmul.f32 %v2619, 1.442695
          %v2643 = vpow.pop %v2642
          %v2644 = vmul.f32 %v2620, 1.442695
          %v2645 = vpow.pop %v2644
          %v2646 = vmul.f32 %v2621, 1.442695
          %v2647 = vpow.pop %v2646
          %v2648 = vmul.f32 %v2622, 1.442695
          %v2649 = vpow.pop %v2648
          %v2650 = vmul.f32 %v2623, 1.442695
          %v2651 = vpow.pop %v2650
          %v2652 = vmul.f32 %v2624, 1.442695
          %v2653 = vpow.pop %v2652
          %v2654 = vmul.f32 %v2625, 1.442695
          %v2655 = vpow.pop %v2654
          %v2656 = vmul.f32 %v2626, 1.442695
          %v2657 = vpow.pop %v2656
          %v2658 = vmul.f32 %v2627, 1.442695
          %v2659 = vpow.pop %v2658
          %v2660 = vadd.f32 %v2629, %v2631
          %v2661 = vadd.f32 %v2660, %v2633
          %v2662 = vadd.f32 %v2661, %v2635
          %v2663 = vadd.f32 %v2662, %v2637
          %v2664 = vadd.f32 %v2663, %v2639
          %v2665 = vadd.f32 %v2664, %v2641
          %v2666 = vadd.f32 %v2665, %v2643
          %v2667 = vadd.f32 %v2666, %v2645
          %v2668 = vadd.f32 %v2667, %v2647
          %v2669 = vadd.f32 %v2668, %v2649
          %v2670 = vadd.f32 %v2669, %v2651
          %v2671 = vadd.f32 %v2670, %v2653
          %v2672 = vadd.f32 %v2671, %v2655
          %v2673 = vadd.f32 %v2672, %v2657
          %v2674 = vadd.f32 %v2673, %v2659
          %2675 = vadd.xlane.f32.xlu0 %v2674
          %v2676 = vpop.xlane.xlu0 %2675
          %v2677 = vadd.f32 %v2606, %v2676
          %vm2678 = vcmask 7168
          %2679 = vst.msk [vmem:[#allocation5] sm:$0xff] %vm2678, %v2677
          %2680 = vst.msk [vmem:[#allocation4] sm:$0xff] %vm2678, %v2601
        $region128: #{_lambda_.1} parent=71 // pred_fallthru
          _
        %p2681 = scmp.eq.s32.totalorder %s31, 1
        // Predicated region
        $region129: #{_lambda_.1} parent=71 // pred_check
          %p2682 = pneg %p2681
        $region130: #{_lambda_.1} parent=71 // pred_check_branch
          %2684 = sbr.rel (%p2682) target = $region132
        $region131: #{_lambda_.1} parent=71 // pred_region
          %v2685 = vld [vmem:[#allocation4] sm:$0xff]
          %v2686 = vld [vmem:[#allocation5] sm:$0xff]
          %v2687 = vrcp.pop %v2686
          %v2688 = vmul.f32 1.0, %v2687
          %v2689 = vld [vmem:[#allocation3] sm:$0xff]
          %v2690 = vld [vmem:[#allocation3 + $0x8] sm:$0xff]
          %v2691 = vld [vmem:[#allocation3 + $0x10] sm:$0xff]
          %v2692 = vld [vmem:[#allocation3 + $0x18] sm:$0xff]
          %v2693 = vld [vmem:[#allocation3 + $0x20] sm:$0xff]
          %v2694 = vld [vmem:[#allocation3 + $0x28] sm:$0xff]
          %v2695 = vld [vmem:[#allocation3 + $0x30] sm:$0xff]
          %v2696 = vld [vmem:[#allocation3 + $0x38] sm:$0xff]
          %v2697 = vld [vmem:[#allocation3 + $0x40] sm:$0xff]
          %v2698 = vld [vmem:[#allocation3 + $0x48] sm:$0xff]
          %v2699 = vld [vmem:[#allocation3 + $0x50] sm:$0xff]
          %v2700 = vld [vmem:[#allocation3 + $0x58] sm:$0xff]
          %v2701 = vld [vmem:[#allocation3 + $0x60] sm:$0xff]
          %v2702 = vld [vmem:[#allocation3 + $0x68] sm:$0xff]
          %v2703 = vld [vmem:[#allocation3 + $0x70] sm:$0xff]
          %v2704 = vld [vmem:[#allocation3 + $0x78] sm:$0xff]
          %2706 = vset.pattern.permute.xlu0 0
          %2707 = vperm.xlu0 %2706, %v2685
          %v2708 = vpop.permute.xlu0 %2707
          %v2710 = vsub.f32 %v2689, %v2708
          %v2711 = vsub.f32 %v2690, %v2708
          %v2712 = vsub.f32 %v2691, %v2708
          %v2713 = vsub.f32 %v2692, %v2708
          %v2714 = vsub.f32 %v2693, %v2708
          %v2715 = vsub.f32 %v2694, %v2708
          %v2716 = vsub.f32 %v2695, %v2708
          %v2717 = vsub.f32 %v2696, %v2708
          %v2718 = vsub.f32 %v2697, %v2708
          %v2719 = vsub.f32 %v2698, %v2708
          %v2720 = vsub.f32 %v2699, %v2708
          %v2721 = vsub.f32 %v2700, %v2708
          %v2722 = vsub.f32 %v2701, %v2708
          %v2723 = vsub.f32 %v2702, %v2708
          %v2724 = vsub.f32 %v2703, %v2708
          %v2725 = vsub.f32 %v2704, %v2708
          %v2726 = vmul.f32 %v2710, 1.442695
          %v2727 = vpow.pop %v2726
          %v2728 = vmul.f32 %v2711, 1.442695
          %v2729 = vpow.pop %v2728
          %v2730 = vmul.f32 %v2712, 1.442695
          %v2731 = vpow.pop %v2730
          %v2732 = vmul.f32 %v2713, 1.442695
          %v2733 = vpow.pop %v2732
          %v2734 = vmul.f32 %v2714, 1.442695
          %v2735 = vpow.pop %v2734
          %v2736 = vmul.f32 %v2715, 1.442695
          %v2737 = vpow.pop %v2736
          %v2738 = vmul.f32 %v2716, 1.442695
          %v2739 = vpow.pop %v2738
          %v2740 = vmul.f32 %v2717, 1.442695
          %v2741 = vpow.pop %v2740
          %v2742 = vmul.f32 %v2718, 1.442695
          %v2743 = vpow.pop %v2742
          %v2744 = vmul.f32 %v2719, 1.442695
          %v2745 = vpow.pop %v2744
          %v2746 = vmul.f32 %v2720, 1.442695
          %v2747 = vpow.pop %v2746
          %v2748 = vmul.f32 %v2721, 1.442695
          %v2749 = vpow.pop %v2748
          %v2750 = vmul.f32 %v2722, 1.442695
          %v2751 = vpow.pop %v2750
          %v2752 = vmul.f32 %v2723, 1.442695
          %v2753 = vpow.pop %v2752
          %v2754 = vmul.f32 %v2724, 1.442695
          %v2755 = vpow.pop %v2754
          %v2756 = vmul.f32 %v2725, 1.442695
          %v2757 = vpow.pop %v2756
          %2759 = vset.pattern.permute.xlu0 0
          %2760 = vperm.xlu0 %2759, %v2688
          %v2761 = vpop.permute.xlu0 %2760
          %v2763 = vmul.f32 %v2727, %v2761
          %v2764 = vmul.f32 %v2729, %v2761
          %v2765 = vmul.f32 %v2731, %v2761
          %v2766 = vmul.f32 %v2733, %v2761
          %v2767 = vmul.f32 %v2735, %v2761
          %v2768 = vmul.f32 %v2737, %v2761
          %v2769 = vmul.f32 %v2739, %v2761
          %v2770 = vmul.f32 %v2741, %v2761
          %v2771 = vmul.f32 %v2743, %v2761
          %v2772 = vmul.f32 %v2745, %v2761
          %v2773 = vmul.f32 %v2747, %v2761
          %v2774 = vmul.f32 %v2749, %v2761
          %v2775 = vmul.f32 %v2751, %v2761
          %v2776 = vmul.f32 %v2753, %v2761
          %v2777 = vmul.f32 %v2755, %v2761
          %v2778 = vmul.f32 %v2757, %v2761
          %2779 = vst [vmem:[%s13] sm:$0xff] %v2763
          %2780 = vst [vmem:[%s13 + $0x8] sm:$0xff] %v2764
          %2781 = vst [vmem:[%s13 + $0x10] sm:$0xff] %v2765
          %2782 = vst [vmem:[%s13 + $0x18] sm:$0xff] %v2766
          %2783 = vst [vmem:[%s13 + $0x20] sm:$0xff] %v2767
          %2784 = vst [vmem:[%s13 + $0x28] sm:$0xff] %v2768
          %2785 = vst [vmem:[%s13 + $0x30] sm:$0xff] %v2769
          %2786 = vst [vmem:[%s13 + $0x38] sm:$0xff] %v2770
          %2787 = vst [vmem:[%s13 + $0x40] sm:$0xff] %v2771
          %2788 = vst [vmem:[%s13 + $0x48] sm:$0xff] %v2772
          %2789 = vst [vmem:[%s13 + $0x50] sm:$0xff] %v2773
          %2790 = vst [vmem:[%s13 + $0x58] sm:$0xff] %v2774
          %2791 = vst [vmem:[%s13 + $0x60] sm:$0xff] %v2775
          %2792 = vst [vmem:[%s13 + $0x68] sm:$0xff] %v2776
          %2793 = vst [vmem:[%s13 + $0x70] sm:$0xff] %v2777
          %2794 = vst [vmem:[%s13 + $0x78] sm:$0xff] %v2778
          %s2795 = scalar_lea.vmem [#allocation3], 128
          %v2796 = vld [vmem:[%s2795] sm:$0xff]
          %v2797 = vld [vmem:[%s2795 + $0x8] sm:$0xff]
          %v2798 = vld [vmem:[%s2795 + $0x10] sm:$0xff]
          %v2799 = vld [vmem:[%s2795 + $0x18] sm:$0xff]
          %v2800 = vld [vmem:[%s2795 + $0x20] sm:$0xff]
          %v2801 = vld [vmem:[%s2795 + $0x28] sm:$0xff]
          %v2802 = vld [vmem:[%s2795 + $0x30] sm:$0xff]
          %v2803 = vld [vmem:[%s2795 + $0x38] sm:$0xff]
          %v2804 = vld [vmem:[%s2795 + $0x40] sm:$0xff]
          %v2805 = vld [vmem:[%s2795 + $0x48] sm:$0xff]
          %v2806 = vld [vmem:[%s2795 + $0x50] sm:$0xff]
          %v2807 = vld [vmem:[%s2795 + $0x58] sm:$0xff]
          %v2808 = vld [vmem:[%s2795 + $0x60] sm:$0xff]
          %v2809 = vld [vmem:[%s2795 + $0x68] sm:$0xff]
          %v2810 = vld [vmem:[%s2795 + $0x70] sm:$0xff]
          %v2811 = vld [vmem:[%s2795 + $0x78] sm:$0xff]
          %v2812 = vsub.f32 %v2796, %v2708
          %v2813 = vsub.f32 %v2797, %v2708
          %v2814 = vsub.f32 %v2798, %v2708
          %v2815 = vsub.f32 %v2799, %v2708
          %v2816 = vsub.f32 %v2800, %v2708
          %v2817 = vsub.f32 %v2801, %v2708
          %v2818 = vsub.f32 %v2802, %v2708
          %v2819 = vsub.f32 %v2803, %v2708
          %v2820 = vsub.f32 %v2804, %v2708
          %v2821 = vsub.f32 %v2805, %v2708
          %v2822 = vsub.f32 %v2806, %v2708
          %v2823 = vsub.f32 %v2807, %v2708
          %v2824 = vsub.f32 %v2808, %v2708
          %v2825 = vsub.f32 %v2809, %v2708
          %v2826 = vsub.f32 %v2810, %v2708
          %v2827 = vsub.f32 %v2811, %v2708
          %v2828 = vmul.f32 %v2812, 1.442695
          %v2829 = vpow.pop %v2828
          %v2830 = vmul.f32 %v2813, 1.442695
          %v2831 = vpow.pop %v2830
          %v2832 = vmul.f32 %v2814, 1.442695
          %v2833 = vpow.pop %v2832
          %v2834 = vmul.f32 %v2815, 1.442695
          %v2835 = vpow.pop %v2834
          %v2836 = vmul.f32 %v2816, 1.442695
          %v2837 = vpow.pop %v2836
          %v2838 = vmul.f32 %v2817, 1.442695
          %v2839 = vpow.pop %v2838
          %v2840 = vmul.f32 %v2818, 1.442695
          %v2841 = vpow.pop %v2840
          %v2842 = vmul.f32 %v2819, 1.442695
          %v2843 = vpow.pop %v2842
          %v2844 = vmul.f32 %v2820, 1.442695
          %v2845 = vpow.pop %v2844
          %v2846 = vmul.f32 %v2821, 1.442695
          %v2847 = vpow.pop %v2846
          %v2848 = vmul.f32 %v2822, 1.442695
          %v2849 = vpow.pop %v2848
          %v2850 = vmul.f32 %v2823, 1.442695
          %v2851 = vpow.pop %v2850
          %v2852 = vmul.f32 %v2824, 1.442695
          %v2853 = vpow.pop %v2852
          %v2854 = vmul.f32 %v2825, 1.442695
          %v2855 = vpow.pop %v2854
          %v2856 = vmul.f32 %v2826, 1.442695
          %v2857 = vpow.pop %v2856
          %v2858 = vmul.f32 %v2827, 1.442695
          %v2859 = vpow.pop %v2858
          %v2860 = vmul.f32 %v2829, %v2761
          %v2861 = vmul.f32 %v2831, %v2761
          %v2862 = vmul.f32 %v2833, %v2761
          %v2863 = vmul.f32 %v2835, %v2761
          %v2864 = vmul.f32 %v2837, %v2761
          %v2865 = vmul.f32 %v2839, %v2761
          %v2866 = vmul.f32 %v2841, %v2761
          %v2867 = vmul.f32 %v2843, %v2761
          %v2868 = vmul.f32 %v2845, %v2761
          %v2869 = vmul.f32 %v2847, %v2761
          %v2870 = vmul.f32 %v2849, %v2761
          %v2871 = vmul.f32 %v2851, %v2761
          %v2872 = vmul.f32 %v2853, %v2761
          %v2873 = vmul.f32 %v2855, %v2761
          %v2874 = vmul.f32 %v2857, %v2761
          %v2875 = vmul.f32 %v2859, %v2761
          %2876 = vst [vmem:[%s13 + $0x80] sm:$0xff] %v2860
          %2877 = vst [vmem:[%s13 + $0x88] sm:$0xff] %v2861
          %2878 = vst [vmem:[%s13 + $0x90] sm:$0xff] %v2862
          %2879 = vst [vmem:[%s13 + $0x98] sm:$0xff] %v2863
          %2880 = vst [vmem:[%s13 + $0xa0] sm:$0xff] %v2864
          %2881 = vst [vmem:[%s13 + $0xa8] sm:$0xff] %v2865
          %2882 = vst [vmem:[%s13 + $0xb0] sm:$0xff] %v2866
          %2883 = vst [vmem:[%s13 + $0xb8] sm:$0xff] %v2867
          %2884 = vst [vmem:[%s13 + $0xc0] sm:$0xff] %v2868
          %2885 = vst [vmem:[%s13 + $0xc8] sm:$0xff] %v2869
          %2886 = vst [vmem:[%s13 + $0xd0] sm:$0xff] %v2870
          %2887 = vst [vmem:[%s13 + $0xd8] sm:$0xff] %v2871
          %2888 = vst [vmem:[%s13 + $0xe0] sm:$0xff] %v2872
          %2889 = vst [vmem:[%s13 + $0xe8] sm:$0xff] %v2873
          %2890 = vst [vmem:[%s13 + $0xf0] sm:$0xff] %v2874
          %2891 = vst [vmem:[%s13 + $0xf8] sm:$0xff] %v2875
        $region132: #{_lambda_.1} parent=71 // pred_fallthru
          _
        // Predicated region
        $region133: #{_lambda_.1} parent=71 // pred_check
          %p2892 = pneg %p332
        $region134: #{_lambda_.1} parent=71 // pred_check_branch
          %2894 = sbr.rel (%p2892) target = $region136
        $region135: #{_lambda_.1} parent=71 // pred_region
          _
        $region136: #{_lambda_.1} parent=71 // pred_fallthru
          _
        // Predicated region
        $region137: #{_lambda_.1} parent=71 // pred_check
          %p2895 = pneg %p353
        $region138: #{_lambda_.1} parent=71 // pred_check_branch
          %2897 = sbr.rel (%p2895) target = $region140
        $region139: #{_lambda_.1} parent=71 // pred_region
          _
        $region140: #{_lambda_.1} parent=71 // pred_fallthru
          _
        // Predicated region
        $region141: #{_lambda_.1} parent=71 // pred_check
          %p2898 = pneg %p332
        $region142: #{_lambda_.1} parent=71 // pred_check_branch
          %2900 = sbr.rel (%p2898) target = $region144
        $region143: #{_lambda_.1} parent=71 // pred_region
          _
        $region144: #{_lambda_.1} parent=71 // pred_fallthru
          _
        // Predicated region
        $region145: #{_lambda_.1} parent=71 // pred_check
          %p2901 = pneg %p353
        $region146: #{_lambda_.1} parent=71 // pred_check_branch
          %2903 = sbr.rel (%p2901) target = $region148
        $region147: #{_lambda_.1} parent=71 // pred_region
          _
        $region148: #{_lambda_.1} parent=71 // pred_fallthru
          _
      $region72: #{_lambda_.1} parent=5 // pred_fallthru
        _
      %p2904 = scmp.le.s32.totalorder 2, %s26
      // Predicated region
      $region149: #{_lambda_.1} parent=5 // pred_check
        %p2905 = pneg %p2904
      $region150: #{_lambda_.1} parent=5 // pred_check_branch
        %2907 = sbr.rel (%p2905) target = $region152
      $region151: #{_lambda_.1} parent=5 // pred_region
        %s2908 = ssub.s32 %s26, 2
      $region152: #{_lambda_.1} parent=5 // pred_fallthru
        _
    $region6: #{_lambda_.1} parent=1 // loop_footer
      %s30 = sadd.s32 1, %s26
    $region7: #{_lambda_.1} parent=1 // loop_footer_branch
      %25 = sbr.rel target = $region3
    $region8: #{_lambda_.1} parent=1 // loop_exit
      _
    %2909 = vsyncpa [#allocation7], 1
    %s2910 = scalar_lea.sflag [#allocation7], 1
    %2911 = vsyncpa %s2910, 1
    %2912 = vsyncpa [#allocation9], 1
    %2913 = vsyncpa [#allocation12], 1
    %2914 = vsyncpa [#allocation15], 1
    %2915 = vsyncpa [#allocation18], 1

</llo_original>
